<compile_context>
chip_gen: v6e
topology: v6e:2x2x1
jax: 0.10.0
libtpu: 0.0.40
codegen_flags: <defaults>
</compile_context>

<pallas_src>
import functools

import jax
import jax.numpy as jnp
import numpy as np
from jax.experimental import pallas as pl
from jax.experimental.pallas import tpu as pltpu

INPUT_DIM = 12      # number of BERT layers attended over
_GROUP = 128        # original rows folded into one lane-dense row (lane width)
_TILE_R = 512       # max dense rows per grid step (512 * 1536 * 4B = 3 MiB f32)
_TILE_R_MIN = 64    # don't bother with blocks smaller than ~384 KiB (f32)
_MIN_GRID = 8       # aim for >= 8 grid steps (>= 4 per v7x TensorCore)


def _pick_tile_r(rows):
    """Dense-row tile size: big contiguous blocks, >= _MIN_GRID steps when possible."""
    if rows >= _MIN_GRID * _TILE_R:
        return _TILE_R
    if rows >= _MIN_GRID * _TILE_R_MIN:
        # Enough work to split into ~_MIN_GRID pipelined steps.
        return max(_TILE_R_MIN, (rows // _MIN_GRID) // 8 * 8)
    return rows      # tiny problem: a single full-extent block is fine


def _layer_att_kernel(x_ref, b_ref, o_ref, *, precision):
    # x_ref: (tile_r, L*G)  lane-dense slab holding G original rows per dense row
    # b_ref: (L*G, G)       block-diagonal softmax weights (resident across grid)
    # o_ref: (tile_r, G)    lane-dense weighted sums
    o_ref[...] = jnp.dot(
        x_ref[...], b_ref[...],
        preferred_element_type=jnp.float32,
        precision=precision,
    ).astype(o_ref.dtype)


def layer_att(inputs, weight):
    """inputs: (..., L) with L == weight.shape[0]; returns inputs.shape[:-1]."""
    L = weight.shape[0]
    assert inputs.shape[-1] == L
    lead_shape = inputs.shape[:-1]
    m = int(np.prod(lead_shape)) if lead_shape else 1
    dtype = inputs.dtype

    # Softmax over the L layer weights: L scalars, hoisted out of the kernel.
    sw = jax.nn.softmax(weight.astype(jnp.float32), axis=0)          # (L, 1)

    x2d = inputs.reshape(m, L)
    g = _GROUP
    m_pad = ((m + g - 1) // g) * g
    if m_pad != m:
        # TODO(synk): replace this pad with a masked final block for ragged M.
        x2d = jnp.pad(x2d, ((0, m_pad - m), (0, 0)))
    rows = m_pad // g
    x_dense = x2d.reshape(rows, L * g)       # free contiguous view, lane-dense

    # Block-diagonal weights: out[r, j] = sum_l X[r, j*L + l] * sw[l].
    b = jnp.kron(jnp.eye(g, dtype=jnp.float32), sw).astype(dtype)    # (L*g, g)

    tile_r = _pick_tile_r(rows)
    grid = (pl.cdiv(rows, tile_r),)

    precision = (jax.lax.Precision.HIGHEST if dtype == jnp.float32
                 else jax.lax.Precision.DEFAULT)

    out_dense = pl.pallas_call(
        functools.partial(_layer_att_kernel, precision=precision),
        out_shape=jax.ShapeDtypeStruct((rows, g), dtype),
        grid_spec=pltpu.PrefetchScalarGridSpec(
            num_scalar_prefetch=0,
            grid=grid,
            in_specs=[
                pl.BlockSpec((tile_r, L * g), lambda i: (i, 0)),   # input slab
                pl.BlockSpec((L * g, g), lambda i: (0, 0)),        # weights, DMA'd once
            ],
            out_specs=pl.BlockSpec((tile_r, g), lambda i: (i, 0)),
        ),
        compiler_params=pltpu.CompilerParams(
            dimension_semantics=("parallel",),
        ),
    )(x_dense, b)

    return out_dense.reshape(m_pad)[:m].reshape(lead_shape)


if __name__ == "__main__":
    key = jax.random.PRNGKey(0)
    k_w, k_x = jax.random.split(key)

    # torch.randn(12, 1) analogue.
    weight = jax.random.normal(k_w, (INPUT_DIM, 1), dtype=jnp.float32)

    # Stacked per-layer BERT hidden states: (batch=2, seq=8, hidden=32, layers=12).
    inputs = jax.random.normal(k_x, (2, 8, 32, INPUT_DIM), dtype=jnp.float32)

    out = jax.block_until_ready(layer_att(inputs, weight))

    # Reference (plain JAX), mirrors the PyTorch forward exactly.
    sw = jax.nn.softmax(weight, axis=0)
    ref = jnp.squeeze(jnp.matmul(inputs, sw), axis=-1)
    assert out.shape == ref.shape == (2, 8, 32)
    np.testing.assert_allclose(np.asarray(out), np.asarray(ref),
                               rtol=1e-5, atol=1e-5)

    print("KERNEL_OK")
</pallas_src>

<mosaic_0001>
module attributes {stable_mosaic.version = 11 : i64} {
  func.func @_layer_att_kernel(%arg0: i32, %arg1: memref<4x1536xf32, #tpu.memory_space<vmem>>, %arg2: memref<1536x128xf32, #tpu.memory_space<vmem>>, %arg3: memref<4x128xf32, #tpu.memory_space<vmem>>) attributes {dimension_semantics = [#tpu.dimension_semantics<parallel>], iteration_bounds = array<i64: 1>, scalar_prefetch = 0 : i64, scratch_operands = 0 : i64, tpu.core_type = #tpu.core_type<tc>, window_params = [{transform_indices = @transform_0, window_bounds = array<i64: 4, 1536>}, {pipeline_mode = #tpu.pipeline_mode<synchronous>, transform_indices = @transform_1, window_bounds = array<i64: 1536, 128>}, {transform_indices = @transform_2, window_bounds = array<i64: 4, 128>}]} {
    %c0 = arith.constant 0 : index
    %c0_0 = arith.constant 0 : index
    %0 = vector.load %arg1[%c0, %c0_0] : memref<4x1536xf32, #tpu.memory_space<vmem>>, vector<4x1536xf32>
    %c0_1 = arith.constant 0 : index
    %c0_2 = arith.constant 0 : index
    %1 = vector.load %arg2[%c0_1, %c0_2] : memref<1536x128xf32, #tpu.memory_space<vmem>>, vector<1536x128xf32>
    %cst = arith.constant dense<0.000000e+00> : vector<4x128xf32>
    %2 = tpu.matmul %0, %1, %cst {dimension_numbers = #tpu.dot_dimension_numbers<[1], [0], [0], [1], [0, 0, 1, 1], [], []>, precision = #tpu.contract_precision<fp32>} : vector<4x1536xf32>, vector<1536x128xf32>, vector<4x128xf32> -> vector<4x128xf32>
    %c0_3 = arith.constant 0 : index
    %c0_4 = arith.constant 0 : index
    %3 = vector.load %arg3[%c0_3, %c0_4] : memref<4x128xf32, #tpu.memory_space<vmem>>, vector<4x128xf32>
    tpu.vector_store %arg3[%c0_3, %c0_4], %2 {strides = array<i32>} : memref<4x128xf32, #tpu.memory_space<vmem>>, vector<4x128xf32>,
    return
  }
  func.func @transform_0(%arg0: i32) -> (i32, i32) {
    %c0_i32 = arith.constant 0 : i32
    %c0_i32_0 = arith.constant 0 : i32
    return %arg0, %c0_i32 : i32, i32
  }
  func.func @transform_1(%arg0: i32) -> (i32, i32) {
    %c0_i32 = arith.constant 0 : i32
    %c0_i32_0 = arith.constant 0 : i32
    %c0_i32_1 = arith.constant 0 : i32
    return %c0_i32, %c0_i32_0 : i32, i32
  }
  func.func @transform_2(%arg0: i32) -> (i32, i32) {
    %c0_i32 = arith.constant 0 : i32
    %c0_i32_0 = arith.constant 0 : i32
    return %arg0, %c0_i32 : i32, i32
  }
}

</mosaic_0001>

<llo_original>
// kernel: tpu_custom_call.1
$region0: #{tpu_custom_call.1}
  #allocation0 [shape = 'u32[]', space=smem, size = 0x4, offset = 0x4, fixed_abs, tag = 'smem constant byte address 0x4 - core index']
  #allocation1 [shape = 'u32[144,128]{1,0:T(1,128)}', space=vmem, size = 0x12000, scoped, tag = 'internal scratch']
  %s0 = inlined_call_operand.hbm [shape: f32[4,1536], index: 0, kind: input, shape index: {}]
  %s1 = inlined_call_operand.hbm [shape: f32[1536,128], index: 1, kind: input, shape index: {}]
  %s2 = inlined_call_operand.hbm [shape: f32[4,128], index: 2, kind: output, shape index: {}]
  %s3 = sld [smem:[#allocation0]]
  $region26: #{tpu_custom_call.1} parent=0
    _
  %s5 = ssub.s32 1, %s3
  %s6 = scalar_select 0, %s5, %s3
  $region1: #{tpu_custom_call.1} parent=0
    #allocation2 [shape = 'u8[24576]{0}', space=vmem, size = 0x6000, scoped, tag = 'input window, operand 0, single buffered']
    #allocation3 [shape = 's32[1]{0}', space=sflag, size = 0x4, scoped, tag = 'scoped memory for tpu_custom_call.1']
    #allocation4 [shape = 's32[1]{0}', space=sflag, size = 0x4, scoped, tag = 'scoped memory for tpu_custom_call.1']
    #allocation5 [shape = 'u8[786432]{0}', space=vmem, size = 0xc0000, scoped, tag = 'input window, operand 1, single buffered']
    #allocation6 [shape = 's32[1]{0}', space=sflag, size = 0x4, scoped, tag = 'scoped memory for tpu_custom_call.1']
    #allocation7 [shape = 'u8[2048]{0}', space=vmem, size = 0x800, scoped, tag = 'output window, operand 0, single buffered']
    %7 = vsyncpa [#allocation3], 0
    %8 = vsyncpa [#allocation6], 0
    %9 = vsyncpa [#allocation4], 0
    // Predicated region
    $region2: #{tpu_custom_call.1} parent=1 // pred_check
      _
    $region3: #{tpu_custom_call.1} parent=1 // pred_check_branch
      %11 = sbr.rel (0) target = $region5
    $region4: #{tpu_custom_call.1} parent=1 // pred_region
      %s13 = ssub.s32 768, 768
      %14 = vsyncadd [#allocation3], %s13
      %s16 = sshll.u32 [#allocation2], 4
      %s17 = int_to_ptr.vmem [resolvable:$true] %s16
      %19 = dma.hbm_to_vmem [thread:$0]  %s0, 768, %s17, [#allocation3]
    $region5: #{tpu_custom_call.1} parent=1 // pred_fallthru
      _
    // Predicated region
    $region6: #{tpu_custom_call.1} parent=1 // pred_check
      _
    $region7: #{tpu_custom_call.1} parent=1 // pred_check_branch
      %21 = sbr.rel (0) target = $region9
    $region8: #{tpu_custom_call.1} parent=1 // pred_region
      %s23 = ssub.s32 24576, 24576
      %24 = vsyncadd [#allocation6], %s23
      %s25 = sshll.u32 [#allocation5], 4
      %s26 = int_to_ptr.vmem [resolvable:$true] %s25
      %31 = dma.hbm_to_vmem [thread:$0]  %s1, 24576, %s26, [#allocation6], 128, 128, 8
    $region9: #{tpu_custom_call.1} parent=1 // pred_fallthru
      _
    // Predicated region
    $region10: #{tpu_custom_call.1} parent=1 // pred_check
      _
    $region11: #{tpu_custom_call.1} parent=1 // pred_check_branch
      %33 = sbr.rel (0) target = $region13
    $region12: #{tpu_custom_call.1} parent=1 // pred_region
      %34 = dma.done [#allocation3], 768
    $region13: #{tpu_custom_call.1} parent=1 // pred_fallthru
      _
    // Predicated region
    $region14: #{tpu_custom_call.1} parent=1 // pred_check
      _
    $region15: #{tpu_custom_call.1} parent=1 // pred_check_branch
      %36 = sbr.rel (0) target = $region17
    $region16: #{tpu_custom_call.1} parent=1 // pred_region
      %37 = dma.done [#allocation6], 24576
    $region17: #{tpu_custom_call.1} parent=1 // pred_fallthru
      _
    %v38 = vld [vmem:[#allocation2] sm:$0xff]
    %v39 = vld [vmem:[#allocation2 + $0x8] sm:$0xff]
    %v40 = vld [vmem:[#allocation2 + $0x10] sm:$0xff]
    %v41 = vld [vmem:[#allocation2 + $0x18] sm:$0xff]
    %v42 = vld [vmem:[#allocation2 + $0x20] sm:$0xff]
    %v43 = vld [vmem:[#allocation2 + $0x28] sm:$0xff]
    %v44 = vld [vmem:[#allocation5] sm:$0xff]
    %v45 = vld [vmem:[#allocation5 + $0x8] sm:$0xff]
    %v46 = vld [vmem:[#allocation5 + $0x10] sm:$0xff]
    %v47 = vld [vmem:[#allocation5 + $0x18] sm:$0xff]
    %v48 = vld [vmem:[#allocation5 + $0x20] sm:$0xff]
    %v49 = vld [vmem:[#allocation5 + $0x28] sm:$0xff]
    %v50 = vld [vmem:[#allocation5 + $0x30] sm:$0xff]
    %v51 = vld [vmem:[#allocation5 + $0x38] sm:$0xff]
    %v52 = vld [vmem:[#allocation5 + $0x40] sm:$0xff]
    %v53 = vld [vmem:[#allocation5 + $0x48] sm:$0xff]
    %v54 = vld [vmem:[#allocation5 + $0x50] sm:$0xff]
    %v55 = vld [vmem:[#allocation5 + $0x58] sm:$0xff]
    %v56 = vld [vmem:[#allocation5 + $0x60] sm:$0xff]
    %v57 = vld [vmem:[#allocation5 + $0x68] sm:$0xff]
    %v58 = vld [vmem:[#allocation5 + $0x70] sm:$0xff]
    %v59 = vld [vmem:[#allocation5 + $0x78] sm:$0xff]
    %v60 = vld [vmem:[#allocation5 + $0x80] sm:$0xff]
    %v61 = vld [vmem:[#allocation5 + $0x88] sm:$0xff]
    %v62 = vld [vmem:[#allocation5 + $0x90] sm:$0xff]
    %v63 = vld [vmem:[#allocation5 + $0x98] sm:$0xff]
    %v64 = vld [vmem:[#allocation5 + $0xa0] sm:$0xff]
    %v65 = vld [vmem:[#allocation5 + $0xa8] sm:$0xff]
    %v66 = vld [vmem:[#allocation5 + $0xb0] sm:$0xff]
    %v67 = vld [vmem:[#allocation5 + $0xb8] sm:$0xff]
    %v68 = vld [vmem:[#allocation5 + $0xc0] sm:$0xff]
    %v69 = vld [vmem:[#allocation5 + $0xc8] sm:$0xff]
    %v70 = vld [vmem:[#allocation5 + $0xd0] sm:$0xff]
    %v71 = vld [vmem:[#allocation5 + $0xd8] sm:$0xff]
    %v72 = vld [vmem:[#allocation5 + $0xe0] sm:$0xff]
    %v73 = vld [vmem:[#allocation5 + $0xe8] sm:$0xff]
    %v74 = vld [vmem:[#allocation5 + $0xf0] sm:$0xff]
    %v75 = vld [vmem:[#allocation5 + $0xf8] sm:$0xff]
    %v76 = vld [vmem:[#allocation5 + $0x100] sm:$0xff]
    %v77 = vld [vmem:[#allocation5 + $0x108] sm:$0xff]
    %v78 = vld [vmem:[#allocation5 + $0x110] sm:$0xff]
    %v79 = vld [vmem:[#allocation5 + $0x118] sm:$0xff]
    %v80 = vld [vmem:[#allocation5 + $0x120] sm:$0xff]
    %v81 = vld [vmem:[#allocation5 + $0x128] sm:$0xff]
    %v82 = vld [vmem:[#allocation5 + $0x130] sm:$0xff]
    %v83 = vld [vmem:[#allocation5 + $0x138] sm:$0xff]
    %v84 = vld [vmem:[#allocation5 + $0x140] sm:$0xff]
    %v85 = vld [vmem:[#allocation5 + $0x148] sm:$0xff]
    %v86 = vld [vmem:[#allocation5 + $0x150] sm:$0xff]
    %v87 = vld [vmem:[#allocation5 + $0x158] sm:$0xff]
    %v88 = vld [vmem:[#allocation5 + $0x160] sm:$0xff]
    %v89 = vld [vmem:[#allocation5 + $0x168] sm:$0xff]
    %v90 = vld [vmem:[#allocation5 + $0x170] sm:$0xff]
    %v91 = vld [vmem:[#allocation5 + $0x178] sm:$0xff]
    %v92 = vld [vmem:[#allocation5 + $0x180] sm:$0xff]
    %v93 = vld [vmem:[#allocation5 + $0x188] sm:$0xff]
    %v94 = vld [vmem:[#allocation5 + $0x190] sm:$0xff]
    %v95 = vld [vmem:[#allocation5 + $0x198] sm:$0xff]
    %v96 = vld [vmem:[#allocation5 + $0x1a0] sm:$0xff]
    %v97 = vld [vmem:[#allocation5 + $0x1a8] sm:$0xff]
    %v98 = vld [vmem:[#allocation5 + $0x1b0] sm:$0xff]
    %v99 = vld [vmem:[#allocation5 + $0x1b8] sm:$0xff]
    %v100 = vld [vmem:[#allocation5 + $0x1c0] sm:$0xff]
    %v101 = vld [vmem:[#allocation5 + $0x1c8] sm:$0xff]
    %v102 = vld [vmem:[#allocation5 + $0x1d0] sm:$0xff]
    %v103 = vld [vmem:[#allocation5 + $0x1d8] sm:$0xff]
    %v104 = vld [vmem:[#allocation5 + $0x1e0] sm:$0xff]
    %v105 = vld [vmem:[#allocation5 + $0x1e8] sm:$0xff]
    %v106 = vld [vmem:[#allocation5 + $0x1f0] sm:$0xff]
    %v107 = vld [vmem:[#allocation5 + $0x1f8] sm:$0xff]
    %v108 = vld [vmem:[#allocation5 + $0x200] sm:$0xff]
    %v109 = vld [vmem:[#allocation5 + $0x208] sm:$0xff]
    %v110 = vld [vmem:[#allocation5 + $0x210] sm:$0xff]
    %v111 = vld [vmem:[#allocation5 + $0x218] sm:$0xff]
    %v112 = vld [vmem:[#allocation5 + $0x220] sm:$0xff]
    %v113 = vld [vmem:[#allocation5 + $0x228] sm:$0xff]
    %v114 = vld [vmem:[#allocation5 + $0x230] sm:$0xff]
    %v115 = vld [vmem:[#allocation5 + $0x238] sm:$0xff]
    %v116 = vld [vmem:[#allocation5 + $0x240] sm:$0xff]
    %v117 = vld [vmem:[#allocation5 + $0x248] sm:$0xff]
    %v118 = vld [vmem:[#allocation5 + $0x250] sm:$0xff]
    %v119 = vld [vmem:[#allocation5 + $0x258] sm:$0xff]
    %v120 = vld [vmem:[#allocation5 + $0x260] sm:$0xff]
    %v121 = vld [vmem:[#allocation5 + $0x268] sm:$0xff]
    %v122 = vld [vmem:[#allocation5 + $0x270] sm:$0xff]
    %v123 = vld [vmem:[#allocation5 + $0x278] sm:$0xff]
    %v124 = vld [vmem:[#allocation5 + $0x280] sm:$0xff]
    %v125 = vld [vmem:[#allocation5 + $0x288] sm:$0xff]
    %v126 = vld [vmem:[#allocation5 + $0x290] sm:$0xff]
    %v127 = vld [vmem:[#allocation5 + $0x298] sm:$0xff]
    %v128 = vld [vmem:[#allocation5 + $0x2a0] sm:$0xff]
    %v129 = vld [vmem:[#allocation5 + $0x2a8] sm:$0xff]
    %v130 = vld [vmem:[#allocation5 + $0x2b0] sm:$0xff]
    %v131 = vld [vmem:[#allocation5 + $0x2b8] sm:$0xff]
    %v132 = vld [vmem:[#allocation5 + $0x2c0] sm:$0xff]
    %v133 = vld [vmem:[#allocation5 + $0x2c8] sm:$0xff]
    %v134 = vld [vmem:[#allocation5 + $0x2d0] sm:$0xff]
    %v135 = vld [vmem:[#allocation5 + $0x2d8] sm:$0xff]
    %v136 = vld [vmem:[#allocation5 + $0x2e0] sm:$0xff]
    %v137 = vld [vmem:[#allocation5 + $0x2e8] sm:$0xff]
    %v138 = vld [vmem:[#allocation5 + $0x2f0] sm:$0xff]
    %v139 = vld [vmem:[#allocation5 + $0x2f8] sm:$0xff]
    %v140 = vld [vmem:[#allocation5 + $0x300] sm:$0xff]
    %v141 = vld [vmem:[#allocation5 + $0x308] sm:$0xff]
    %v142 = vld [vmem:[#allocation5 + $0x310] sm:$0xff]
    %v143 = vld [vmem:[#allocation5 + $0x318] sm:$0xff]
    %v144 = vld [vmem:[#allocation5 + $0x320] sm:$0xff]
    %v145 = vld [vmem:[#allocation5 + $0x328] sm:$0xff]
    %v146 = vld [vmem:[#allocation5 + $0x330] sm:$0xff]
    %v147 = vld [vmem:[#allocation5 + $0x338] sm:$0xff]
    %v148 = vld [vmem:[#allocation5 + $0x340] sm:$0xff]
    %v149 = vld [vmem:[#allocation5 + $0x348] sm:$0xff]
    %v150 = vld [vmem:[#allocation5 + $0x350] sm:$0xff]
    %v151 = vld [vmem:[#allocation5 + $0x358] sm:$0xff]
    %v152 = vld [vmem:[#allocation5 + $0x360] sm:$0xff]
    %v153 = vld [vmem:[#allocation5 + $0x368] sm:$0xff]
    %v154 = vld [vmem:[#allocation5 + $0x370] sm:$0xff]
    %v155 = vld [vmem:[#allocation5 + $0x378] sm:$0xff]
    %v156 = vld [vmem:[#allocation5 + $0x380] sm:$0xff]
    %v157 = vld [vmem:[#allocation5 + $0x388] sm:$0xff]
    %v158 = vld [vmem:[#allocation5 + $0x390] sm:$0xff]
    %v159 = vld [vmem:[#allocation5 + $0x398] sm:$0xff]
    %v160 = vld [vmem:[#allocation5 + $0x3a0] sm:$0xff]
    %v161 = vld [vmem:[#allocation5 + $0x3a8] sm:$0xff]
    %v162 = vld [vmem:[#allocation5 + $0x3b0] sm:$0xff]
    %v163 = vld [vmem:[#allocation5 + $0x3b8] sm:$0xff]
    %v164 = vld [vmem:[#allocation5 + $0x3c0] sm:$0xff]
    %v165 = vld [vmem:[#allocation5 + $0x3c8] sm:$0xff]
    %v166 = vld [vmem:[#allocation5 + $0x3d0] sm:$0xff]
    %v167 = vld [vmem:[#allocation5 + $0x3d8] sm:$0xff]
    %v168 = vld [vmem:[#allocation5 + $0x3e0] sm:$0xff]
    %v169 = vld [vmem:[#allocation5 + $0x3e8] sm:$0xff]
    %v170 = vld [vmem:[#allocation5 + $0x3f0] sm:$0xff]
    %v171 = vld [vmem:[#allocation5 + $0x3f8] sm:$0xff]
    %v172 = vld [vmem:[#allocation5 + $0x400] sm:$0xff]
    %v173 = vld [vmem:[#allocation5 + $0x408] sm:$0xff]
    %v174 = vld [vmem:[#allocation5 + $0x410] sm:$0xff]
    %v175 = vld [vmem:[#allocation5 + $0x418] sm:$0xff]
    %v176 = vld [vmem:[#allocation5 + $0x420] sm:$0xff]
    %v177 = vld [vmem:[#allocation5 + $0x428] sm:$0xff]
    %v178 = vld [vmem:[#allocation5 + $0x430] sm:$0xff]
    %v179 = vld [vmem:[#allocation5 + $0x438] sm:$0xff]
    %v180 = vld [vmem:[#allocation5 + $0x440] sm:$0xff]
    %v181 = vld [vmem:[#allocation5 + $0x448] sm:$0xff]
    %v182 = vld [vmem:[#allocation5 + $0x450] sm:$0xff]
    %v183 = vld [vmem:[#allocation5 + $0x458] sm:$0xff]
    %v184 = vld [vmem:[#allocation5 + $0x460] sm:$0xff]
    %v185 = vld [vmem:[#allocation5 + $0x468] sm:$0xff]
    %v186 = vld [vmem:[#allocation5 + $0x470] sm:$0xff]
    %v187 = vld [vmem:[#allocation5 + $0x478] sm:$0xff]
    %v188 = vld [vmem:[#allocation5 + $0x480] sm:$0xff]
    %v189 = vld [vmem:[#allocation5 + $0x488] sm:$0xff]
    %v190 = vld [vmem:[#allocation5 + $0x490] sm:$0xff]
    %v191 = vld [vmem:[#allocation5 + $0x498] sm:$0xff]
    %v192 = vld [vmem:[#allocation5 + $0x4a0] sm:$0xff]
    %v193 = vld [vmem:[#allocation5 + $0x4a8] sm:$0xff]
    %v194 = vld [vmem:[#allocation5 + $0x4b0] sm:$0xff]
    %v195 = vld [vmem:[#allocation5 + $0x4b8] sm:$0xff]
    %v196 = vld [vmem:[#allocation5 + $0x4c0] sm:$0xff]
    %v197 = vld [vmem:[#allocation5 + $0x4c8] sm:$0xff]
    %v198 = vld [vmem:[#allocation5 + $0x4d0] sm:$0xff]
    %v199 = vld [vmem:[#allocation5 + $0x4d8] sm:$0xff]
    %v200 = vld [vmem:[#allocation5 + $0x4e0] sm:$0xff]
    %v201 = vld [vmem:[#allocation5 + $0x4e8] sm:$0xff]
    %v202 = vld [vmem:[#allocation5 + $0x4f0] sm:$0xff]
    %v203 = vld [vmem:[#allocation5 + $0x4f8] sm:$0xff]
    %v204 = vld [vmem:[#allocation5 + $0x500] sm:$0xff]
    %v205 = vld [vmem:[#allocation5 + $0x508] sm:$0xff]
    %v206 = vld [vmem:[#allocation5 + $0x510] sm:$0xff]
    %v207 = vld [vmem:[#allocation5 + $0x518] sm:$0xff]
    %v208 = vld [vmem:[#allocation5 + $0x520] sm:$0xff]
    %v209 = vld [vmem:[#allocation5 + $0x528] sm:$0xff]
    %v210 = vld [vmem:[#allocation5 + $0x530] sm:$0xff]
    %v211 = vld [vmem:[#allocation5 + $0x538] sm:$0xff]
    %v212 = vld [vmem:[#allocation5 + $0x540] sm:$0xff]
    %v213 = vld [vmem:[#allocation5 + $0x548] sm:$0xff]
    %v214 = vld [vmem:[#allocation5 + $0x550] sm:$0xff]
    %v215 = vld [vmem:[#allocation5 + $0x558] sm:$0xff]
    %v216 = vld [vmem:[#allocation5 + $0x560] sm:$0xff]
    %v217 = vld [vmem:[#allocation5 + $0x568] sm:$0xff]
    %v218 = vld [vmem:[#allocation5 + $0x570] sm:$0xff]
    %v219 = vld [vmem:[#allocation5 + $0x578] sm:$0xff]
    %v220 = vld [vmem:[#allocation5 + $0x580] sm:$0xff]
    %v221 = vld [vmem:[#allocation5 + $0x588] sm:$0xff]
    %v222 = vld [vmem:[#allocation5 + $0x590] sm:$0xff]
    %v223 = vld [vmem:[#allocation5 + $0x598] sm:$0xff]
    %v224 = vld [vmem:[#allocation5 + $0x5a0] sm:$0xff]
    %v225 = vld [vmem:[#allocation5 + $0x5a8] sm:$0xff]
    %v226 = vld [vmem:[#allocation5 + $0x5b0] sm:$0xff]
    %v227 = vld [vmem:[#allocation5 + $0x5b8] sm:$0xff]
    %v228 = vld [vmem:[#allocation5 + $0x5c0] sm:$0xff]
    %v229 = vld [vmem:[#allocation5 + $0x5c8] sm:$0xff]
    %v230 = vld [vmem:[#allocation5 + $0x5d0] sm:$0xff]
    %v231 = vld [vmem:[#allocation5 + $0x5d8] sm:$0xff]
    %v232 = vld [vmem:[#allocation5 + $0x5e0] sm:$0xff]
    %v233 = vld [vmem:[#allocation5 + $0x5e8] sm:$0xff]
    %v234 = vld [vmem:[#allocation5 + $0x5f0] sm:$0xff]
    %v235 = vld [vmem:[#allocation5 + $0x5f8] sm:$0xff]
    %v242 = vcombine.high %v38, %v38
    %v243 = vcombine.high %v39, %v39
    %v244 = vcombine.high %v40, %v40
    %v245 = vcombine.high %v41, %v41
    %v246 = vcombine.high %v42, %v42
    %v247 = vcombine.high %v43, %v43
    %254 = vmatprep.subr.mxu0 0.0
    %v255 = vand.u32 %v59, 4294901760
    %256 = vmatpush1.msra.mxu0 %v255
    %257 = vmatprep.subr.mxu0 0.0
    %v258 = vand.u32 %v58, 4294901760
    %259 = vmatpush1.msra.mxu0 %v258
    %260 = vmatprep.subr.mxu0 0.0
    %v261 = vand.u32 %v57, 4294901760
    %262 = vmatpush1.msra.mxu0 %v261
    %263 = vmatprep.subr.mxu0 0.0
    %v264 = vand.u32 %v56, 4294901760
    %265 = vmatpush1.msra.mxu0 %v264
    %266 = vmatprep.subr.mxu0 0.0
    %v267 = vand.u32 %v55, 4294901760
    %268 = vmatpush1.msra.mxu0 %v267
    %269 = vmatprep.subr.mxu0 0.0
    %v270 = vand.u32 %v54, 4294901760
    %271 = vmatpush1.msra.mxu0 %v270
    %272 = vmatprep.subr.mxu0 0.0
    %v273 = vand.u32 %v53, 4294901760
    %274 = vmatpush1.msra.mxu0 %v273
    %275 = vmatprep.subr.mxu0 0.0
    %v276 = vand.u32 %v52, 4294901760
    %277 = vmatpush1.msra.mxu0 %v276
    %278 = vmatprep.subr.mxu0 0.0
    %v279 = vand.u32 %v51, 4294901760
    %280 = vmatpush1.msra.mxu0 %v279
    %281 = vmatprep.subr.mxu0 0.0
    %v282 = vand.u32 %v50, 4294901760
    %283 = vmatpush1.msra.mxu0 %v282
    %284 = vmatprep.subr.mxu0 0.0
    %v285 = vand.u32 %v49, 4294901760
    %286 = vmatpush1.msra.mxu0 %v285
    %287 = vmatprep.subr.mxu0 0.0
    %v288 = vand.u32 %v48, 4294901760
    %289 = vmatpush1.msra.mxu0 %v288
    %290 = vmatprep.subr.mxu0 0.0
    %v291 = vand.u32 %v47, 4294901760
    %292 = vmatpush1.msra.mxu0 %v291
    %293 = vmatprep.subr.mxu0 0.0
    %v294 = vand.u32 %v46, 4294901760
    %295 = vmatpush1.msra.mxu0 %v294
    %296 = vmatprep.subr.mxu0 0.0
    %v297 = vand.u32 %v45, 4294901760
    %298 = vmatpush1.msra.mxu0 %v297
    %299 = vmatprep.subr.mxu0 0.0
    %v300 = vand.u32 %v44, 4294901760
    %301 = vmatpush1.msra.mxu0 %v300
    %302 = vmatprep.subr.mxu0 0.0
    %v303 = vand.u32 %v75, 4294901760
    %304 = vmatpush2.msra.mxu0 %v303
    %305 = vmatprep.subr.mxu0 0.0
    %v306 = vand.u32 %v74, 4294901760
    %307 = vmatpush2.msra.mxu0 %v306
    %308 = vmatprep.subr.mxu0 0.0
    %v309 = vand.u32 %v73, 4294901760
    %310 = vmatpush2.msra.mxu0 %v309
    %311 = vmatprep.subr.mxu0 0.0
    %v312 = vand.u32 %v72, 4294901760
    %313 = vmatpush2.msra.mxu0 %v312
    %314 = vmatprep.subr.mxu0 0.0
    %v315 = vand.u32 %v71, 4294901760
    %316 = vmatpush2.msra.mxu0 %v315
    %317 = vmatprep.subr.mxu0 0.0
    %v318 = vand.u32 %v70, 4294901760
    %319 = vmatpush2.msra.mxu0 %v318
    %320 = vmatprep.subr.mxu0 0.0
    %v321 = vand.u32 %v69, 4294901760
    %322 = vmatpush2.msra.mxu0 %v321
    %323 = vmatprep.subr.mxu0 0.0
    %v324 = vand.u32 %v68, 4294901760
    %325 = vmatpush2.msra.mxu0 %v324
    %326 = vmatprep.subr.mxu0 0.0
    %v327 = vand.u32 %v67, 4294901760
    %328 = vmatpush2.msra.mxu0 %v327
    %329 = vmatprep.subr.mxu0 0.0
    %v330 = vand.u32 %v66, 4294901760
    %331 = vmatpush2.msra.mxu0 %v330
    %332 = vmatprep.subr.mxu0 0.0
    %v333 = vand.u32 %v65, 4294901760
    %334 = vmatpush2.msra.mxu0 %v333
    %335 = vmatprep.subr.mxu0 0.0
    %v336 = vand.u32 %v64, 4294901760
    %337 = vmatpush2.msra.mxu0 %v336
    %338 = vmatprep.subr.mxu0 0.0
    %v339 = vand.u32 %v63, 4294901760
    %340 = vmatpush2.msra.mxu0 %v339
    %341 = vmatprep.subr.mxu0 0.0
    %v342 = vand.u32 %v62, 4294901760
    %343 = vmatpush2.msra.mxu0 %v342
    %344 = vmatprep.subr.mxu0 0.0
    %v345 = vand.u32 %v61, 4294901760
    %346 = vmatpush2.msra.mxu0 %v345
    %347 = vmatprep.subr.mxu0 0.0
    %v348 = vand.u32 %v60, 4294901760
    %349 = vmatpush2.msra.mxu0 %v348
    %v350 = vand.u32 %v242, 4294901760
    %v351 = vsub.f32 %v242, %v350
    %v352 = vand.u32 %v351, 4294901760
    %v353 = vsub.f32 %v351, %v352
    %v354 = vand.u32 %v353, 4294901760
    %355 = vmatprep.mubr.f32.mxu0 %v354
    %v356 = vand.u32 %v38, 4294901760
    %v357 = vsub.f32 %v38, %v356
    %v358 = vand.u32 %v357, 4294901760
    %v359 = vsub.f32 %v357, %v358
    %v360 = vand.u32 %v359, 4294901760
    %361 = vmatmul.mubr.f32.gmra.mxu0 %v360
    %v362 = vpop.f32.mrf.mxu0
    %v363 = vadd.f32 0.0, %v362
    %v364 = vpop.f32.mrf.mxu0
    %365 = vdwg.mxu0
    %366 = vmatprep.subr.mxu0 0.0
    %v367 = vand.u32 %v59, 4294901760
    %v368 = vsub.f32 %v59, %v367
    %v369 = vand.u32 %v368, 4294901760
    %v370 = vsub.f32 %v368, %v369
    %v371 = vand.u32 %v370, 4294901760
    %372 = vmatpush1.msra.mxu0 %v371
    %373 = vmatprep.subr.mxu0 0.0
    %v374 = vand.u32 %v58, 4294901760
    %v375 = vsub.f32 %v58, %v374
    %v376 = vand.u32 %v375, 4294901760
    %v377 = vsub.f32 %v375, %v376
    %v378 = vand.u32 %v377, 4294901760
    %379 = vmatpush1.msra.mxu0 %v378
    %380 = vmatprep.subr.mxu0 0.0
    %v381 = vand.u32 %v57, 4294901760
    %v382 = vsub.f32 %v57, %v381
    %v383 = vand.u32 %v382, 4294901760
    %v384 = vsub.f32 %v382, %v383
    %v385 = vand.u32 %v384, 4294901760
    %386 = vmatpush1.msra.mxu0 %v385
    %387 = vmatprep.subr.mxu0 0.0
    %v388 = vand.u32 %v56, 4294901760
    %v389 = vsub.f32 %v56, %v388
    %v390 = vand.u32 %v389, 4294901760
    %v391 = vsub.f32 %v389, %v390
    %v392 = vand.u32 %v391, 4294901760
    %393 = vmatpush1.msra.mxu0 %v392
    %394 = vmatprep.subr.mxu0 0.0
    %v395 = vand.u32 %v55, 4294901760
    %v396 = vsub.f32 %v55, %v395
    %v397 = vand.u32 %v396, 4294901760
    %v398 = vsub.f32 %v396, %v397
    %v399 = vand.u32 %v398, 4294901760
    %400 = vmatpush1.msra.mxu0 %v399
    %401 = vmatprep.subr.mxu0 0.0
    %v402 = vand.u32 %v54, 4294901760
    %v403 = vsub.f32 %v54, %v402
    %v404 = vand.u32 %v403, 4294901760
    %v405 = vsub.f32 %v403, %v404
    %v406 = vand.u32 %v405, 4294901760
    %407 = vmatpush1.msra.mxu0 %v406
    %408 = vmatprep.subr.mxu0 0.0
    %v409 = vand.u32 %v53, 4294901760
    %v410 = vsub.f32 %v53, %v409
    %v411 = vand.u32 %v410, 4294901760
    %v412 = vsub.f32 %v410, %v411
    %v413 = vand.u32 %v412, 4294901760
    %414 = vmatpush1.msra.mxu0 %v413
    %415 = vmatprep.subr.mxu0 0.0
    %v416 = vand.u32 %v52, 4294901760
    %v417 = vsub.f32 %v52, %v416
    %v418 = vand.u32 %v417, 4294901760
    %v419 = vsub.f32 %v417, %v418
    %v420 = vand.u32 %v419, 4294901760
    %421 = vmatpush1.msra.mxu0 %v420
    %422 = vmatprep.subr.mxu0 0.0
    %v423 = vand.u32 %v51, 4294901760
    %v424 = vsub.f32 %v51, %v423
    %v425 = vand.u32 %v424, 4294901760
    %v426 = vsub.f32 %v424, %v425
    %v427 = vand.u32 %v426, 4294901760
    %428 = vmatpush1.msra.mxu0 %v427
    %429 = vmatprep.subr.mxu0 0.0
    %v430 = vand.u32 %v50, 4294901760
    %v431 = vsub.f32 %v50, %v430
    %v432 = vand.u32 %v431, 4294901760
    %v433 = vsub.f32 %v431, %v432
    %v434 = vand.u32 %v433, 4294901760
    %435 = vmatpush1.msra.mxu0 %v434
    %436 = vmatprep.subr.mxu0 0.0
    %v437 = vand.u32 %v49, 4294901760
    %v438 = vsub.f32 %v49, %v437
    %v439 = vand.u32 %v438, 4294901760
    %v440 = vsub.f32 %v438, %v439
    %v441 = vand.u32 %v440, 4294901760
    %442 = vmatpush1.msra.mxu0 %v441
    %443 = vmatprep.subr.mxu0 0.0
    %v444 = vand.u32 %v48, 4294901760
    %v445 = vsub.f32 %v48, %v444
    %v446 = vand.u32 %v445, 4294901760
    %v447 = vsub.f32 %v445, %v446
    %v448 = vand.u32 %v447, 4294901760
    %449 = vmatpush1.msra.mxu0 %v448
    %450 = vmatprep.subr.mxu0 0.0
    %v451 = vand.u32 %v47, 4294901760
    %v452 = vsub.f32 %v47, %v451
    %v453 = vand.u32 %v452, 4294901760
    %v454 = vsub.f32 %v452, %v453
    %v455 = vand.u32 %v454, 4294901760
    %456 = vmatpush1.msra.mxu0 %v455
    %457 = vmatprep.subr.mxu0 0.0
    %v458 = vand.u32 %v46, 4294901760
    %v459 = vsub.f32 %v46, %v458
    %v460 = vand.u32 %v459, 4294901760
    %v461 = vsub.f32 %v459, %v460
    %v462 = vand.u32 %v461, 4294901760
    %463 = vmatpush1.msra.mxu0 %v462
    %464 = vmatprep.subr.mxu0 0.0
    %v465 = vand.u32 %v45, 4294901760
    %v466 = vsub.f32 %v45, %v465
    %v467 = vand.u32 %v466, 4294901760
    %v468 = vsub.f32 %v466, %v467
    %v469 = vand.u32 %v468, 4294901760
    %470 = vmatpush1.msra.mxu0 %v469
    %471 = vmatprep.subr.mxu0 0.0
    %v472 = vand.u32 %v44, 4294901760
    %v473 = vsub.f32 %v44, %v472
    %v474 = vand.u32 %v473, 4294901760
    %v475 = vsub.f32 %v473, %v474
    %v476 = vand.u32 %v475, 4294901760
    %477 = vmatpush1.msra.mxu0 %v476
    %478 = vmatprep.subr.mxu0 0.0
    %v479 = vand.u32 %v75, 4294901760
    %v480 = vsub.f32 %v75, %v479
    %v481 = vand.u32 %v480, 4294901760
    %v482 = vsub.f32 %v480, %v481
    %v483 = vand.u32 %v482, 4294901760
    %484 = vmatpush2.msra.mxu0 %v483
    %485 = vmatprep.subr.mxu0 0.0
    %v486 = vand.u32 %v74, 4294901760
    %v487 = vsub.f32 %v74, %v486
    %v488 = vand.u32 %v487, 4294901760
    %v489 = vsub.f32 %v487, %v488
    %v490 = vand.u32 %v489, 4294901760
    %491 = vmatpush2.msra.mxu0 %v490
    %492 = vmatprep.subr.mxu0 0.0
    %v493 = vand.u32 %v73, 4294901760
    %v494 = vsub.f32 %v73, %v493
    %v495 = vand.u32 %v494, 4294901760
    %v496 = vsub.f32 %v494, %v495
    %v497 = vand.u32 %v496, 4294901760
    %498 = vmatpush2.msra.mxu0 %v497
    %499 = vmatprep.subr.mxu0 0.0
    %v500 = vand.u32 %v72, 4294901760
    %v501 = vsub.f32 %v72, %v500
    %v502 = vand.u32 %v501, 4294901760
    %v503 = vsub.f32 %v501, %v502
    %v504 = vand.u32 %v503, 4294901760
    %505 = vmatpush2.msra.mxu0 %v504
    %506 = vmatprep.subr.mxu0 0.0
    %v507 = vand.u32 %v71, 4294901760
    %v508 = vsub.f32 %v71, %v507
    %v509 = vand.u32 %v508, 4294901760
    %v510 = vsub.f32 %v508, %v509
    %v511 = vand.u32 %v510, 4294901760
    %512 = vmatpush2.msra.mxu0 %v511
    %513 = vmatprep.subr.mxu0 0.0
    %v514 = vand.u32 %v70, 4294901760
    %v515 = vsub.f32 %v70, %v514
    %v516 = vand.u32 %v515, 4294901760
    %v517 = vsub.f32 %v515, %v516
    %v518 = vand.u32 %v517, 4294901760
    %519 = vmatpush2.msra.mxu0 %v518
    %520 = vmatprep.subr.mxu0 0.0
    %v521 = vand.u32 %v69, 4294901760
    %v522 = vsub.f32 %v69, %v521
    %v523 = vand.u32 %v522, 4294901760
    %v524 = vsub.f32 %v522, %v523
    %v525 = vand.u32 %v524, 4294901760
    %526 = vmatpush2.msra.mxu0 %v525
    %527 = vmatprep.subr.mxu0 0.0
    %v528 = vand.u32 %v68, 4294901760
    %v529 = vsub.f32 %v68, %v528
    %v530 = vand.u32 %v529, 4294901760
    %v531 = vsub.f32 %v529, %v530
    %v532 = vand.u32 %v531, 4294901760
    %533 = vmatpush2.msra.mxu0 %v532
    %534 = vmatprep.subr.mxu0 0.0
    %v535 = vand.u32 %v67, 4294901760
    %v536 = vsub.f32 %v67, %v535
    %v537 = vand.u32 %v536, 4294901760
    %v538 = vsub.f32 %v536, %v537
    %v539 = vand.u32 %v538, 4294901760
    %540 = vmatpush2.msra.mxu0 %v539
    %541 = vmatprep.subr.mxu0 0.0
    %v542 = vand.u32 %v66, 4294901760
    %v543 = vsub.f32 %v66, %v542
    %v544 = vand.u32 %v543, 4294901760
    %v545 = vsub.f32 %v543, %v544
    %v546 = vand.u32 %v545, 4294901760
    %547 = vmatpush2.msra.mxu0 %v546
    %548 = vmatprep.subr.mxu0 0.0
    %v549 = vand.u32 %v65, 4294901760
    %v550 = vsub.f32 %v65, %v549
    %v551 = vand.u32 %v550, 4294901760
    %v552 = vsub.f32 %v550, %v551
    %v553 = vand.u32 %v552, 4294901760
    %554 = vmatpush2.msra.mxu0 %v553
    %555 = vmatprep.subr.mxu0 0.0
    %v556 = vand.u32 %v64, 4294901760
    %v557 = vsub.f32 %v64, %v556
    %v558 = vand.u32 %v557, 4294901760
    %v559 = vsub.f32 %v557, %v558
    %v560 = vand.u32 %v559, 4294901760
    %561 = vmatpush2.msra.mxu0 %v560
    %562 = vmatprep.subr.mxu0 0.0
    %v563 = vand.u32 %v63, 4294901760
    %v564 = vsub.f32 %v63, %v563
    %v565 = vand.u32 %v564, 4294901760
    %v566 = vsub.f32 %v564, %v565
    %v567 = vand.u32 %v566, 4294901760
    %568 = vmatpush2.msra.mxu0 %v567
    %569 = vmatprep.subr.mxu0 0.0
    %v570 = vand.u32 %v62, 4294901760
    %v571 = vsub.f32 %v62, %v570
    %v572 = vand.u32 %v571, 4294901760
    %v573 = vsub.f32 %v571, %v572
    %v574 = vand.u32 %v573, 4294901760
    %575 = vmatpush2.msra.mxu0 %v574
    %576 = vmatprep.subr.mxu0 0.0
    %v577 = vand.u32 %v61, 4294901760
    %v578 = vsub.f32 %v61, %v577
    %v579 = vand.u32 %v578, 4294901760
    %v580 = vsub.f32 %v578, %v579
    %v581 = vand.u32 %v580, 4294901760
    %582 = vmatpush2.msra.mxu0 %v581
    %583 = vmatprep.subr.mxu0 0.0
    %v584 = vand.u32 %v60, 4294901760
    %v585 = vsub.f32 %v60, %v584
    %v586 = vand.u32 %v585, 4294901760
    %v587 = vsub.f32 %v585, %v586
    %v588 = vand.u32 %v587, 4294901760
    %589 = vmatpush2.msra.mxu0 %v588
    %v590 = vand.u32 %v242, 4294901760
    %591 = vmatprep.mubr.f32.mxu0 %v590
    %v592 = vand.u32 %v38, 4294901760
    %593 = vmatmul.mubr.f32.gmra.mxu0 %v592
    %v594 = vpop.f32.mrf.mxu0
    %v595 = vadd.f32 %v363, %v594
    %v596 = vpop.f32.mrf.mxu0
    %597 = vdwg.mxu0
    %598 = vmatprep.subr.mxu0 0.0
    %v599 = vand.u32 %v59, 4294901760
    %v600 = vsub.f32 %v59, %v599
    %601 = vmatpush1.msra.mxu0 %v600
    %602 = vmatprep.subr.mxu0 0.0
    %v603 = vand.u32 %v58, 4294901760
    %v604 = vsub.f32 %v58, %v603
    %605 = vmatpush1.msra.mxu0 %v604
    %606 = vmatprep.subr.mxu0 0.0
    %v607 = vand.u32 %v57, 4294901760
    %v608 = vsub.f32 %v57, %v607
    %609 = vmatpush1.msra.mxu0 %v608
    %610 = vmatprep.subr.mxu0 0.0
    %v611 = vand.u32 %v56, 4294901760
    %v612 = vsub.f32 %v56, %v611
    %613 = vmatpush1.msra.mxu0 %v612
    %614 = vmatprep.subr.mxu0 0.0
    %v615 = vand.u32 %v55, 4294901760
    %v616 = vsub.f32 %v55, %v615
    %617 = vmatpush1.msra.mxu0 %v616
    %618 = vmatprep.subr.mxu0 0.0
    %v619 = vand.u32 %v54, 4294901760
    %v620 = vsub.f32 %v54, %v619
    %621 = vmatpush1.msra.mxu0 %v620
    %622 = vmatprep.subr.mxu0 0.0
    %v623 = vand.u32 %v53, 4294901760
    %v624 = vsub.f32 %v53, %v623
    %625 = vmatpush1.msra.mxu0 %v624
    %626 = vmatprep.subr.mxu0 0.0
    %v627 = vand.u32 %v52, 4294901760
    %v628 = vsub.f32 %v52, %v627
    %629 = vmatpush1.msra.mxu0 %v628
    %630 = vmatprep.subr.mxu0 0.0
    %v631 = vand.u32 %v51, 4294901760
    %v632 = vsub.f32 %v51, %v631
    %633 = vmatpush1.msra.mxu0 %v632
    %634 = vmatprep.subr.mxu0 0.0
    %v635 = vand.u32 %v50, 4294901760
    %v636 = vsub.f32 %v50, %v635
    %637 = vmatpush1.msra.mxu0 %v636
    %638 = vmatprep.subr.mxu0 0.0
    %v639 = vand.u32 %v49, 4294901760
    %v640 = vsub.f32 %v49, %v639
    %641 = vmatpush1.msra.mxu0 %v640
    %642 = vmatprep.subr.mxu0 0.0
    %v643 = vand.u32 %v48, 4294901760
    %v644 = vsub.f32 %v48, %v643
    %645 = vmatpush1.msra.mxu0 %v644
    %646 = vmatprep.subr.mxu0 0.0
    %v647 = vand.u32 %v47, 4294901760
    %v648 = vsub.f32 %v47, %v647
    %649 = vmatpush1.msra.mxu0 %v648
    %650 = vmatprep.subr.mxu0 0.0
    %v651 = vand.u32 %v46, 4294901760
    %v652 = vsub.f32 %v46, %v651
    %653 = vmatpush1.msra.mxu0 %v652
    %654 = vmatprep.subr.mxu0 0.0
    %v655 = vand.u32 %v45, 4294901760
    %v656 = vsub.f32 %v45, %v655
    %657 = vmatpush1.msra.mxu0 %v656
    %658 = vmatprep.subr.mxu0 0.0
    %v659 = vand.u32 %v44, 4294901760
    %v660 = vsub.f32 %v44, %v659
    %661 = vmatpush1.msra.mxu0 %v660
    %662 = vmatprep.subr.mxu0 0.0
    %v663 = vand.u32 %v75, 4294901760
    %v664 = vsub.f32 %v75, %v663
    %665 = vmatpush2.msra.mxu0 %v664
    %666 = vmatprep.subr.mxu0 0.0
    %v667 = vand.u32 %v74, 4294901760
    %v668 = vsub.f32 %v74, %v667
    %669 = vmatpush2.msra.mxu0 %v668
    %670 = vmatprep.subr.mxu0 0.0
    %v671 = vand.u32 %v73, 4294901760
    %v672 = vsub.f32 %v73, %v671
    %673 = vmatpush2.msra.mxu0 %v672
    %674 = vmatprep.subr.mxu0 0.0
    %v675 = vand.u32 %v72, 4294901760
    %v676 = vsub.f32 %v72, %v675
    %677 = vmatpush2.msra.mxu0 %v676
    %678 = vmatprep.subr.mxu0 0.0
    %v679 = vand.u32 %v71, 4294901760
    %v680 = vsub.f32 %v71, %v679
    %681 = vmatpush2.msra.mxu0 %v680
    %682 = vmatprep.subr.mxu0 0.0
    %v683 = vand.u32 %v70, 4294901760
    %v684 = vsub.f32 %v70, %v683
    %685 = vmatpush2.msra.mxu0 %v684
    %686 = vmatprep.subr.mxu0 0.0
    %v687 = vand.u32 %v69, 4294901760
    %v688 = vsub.f32 %v69, %v687
    %689 = vmatpush2.msra.mxu0 %v688
    %690 = vmatprep.subr.mxu0 0.0
    %v691 = vand.u32 %v68, 4294901760
    %v692 = vsub.f32 %v68, %v691
    %693 = vmatpush2.msra.mxu0 %v692
    %694 = vmatprep.subr.mxu0 0.0
    %v695 = vand.u32 %v67, 4294901760
    %v696 = vsub.f32 %v67, %v695
    %697 = vmatpush2.msra.mxu0 %v696
    %698 = vmatprep.subr.mxu0 0.0
    %v699 = vand.u32 %v66, 4294901760
    %v700 = vsub.f32 %v66, %v699
    %701 = vmatpush2.msra.mxu0 %v700
    %702 = vmatprep.subr.mxu0 0.0
    %v703 = vand.u32 %v65, 4294901760
    %v704 = vsub.f32 %v65, %v703
    %705 = vmatpush2.msra.mxu0 %v704
    %706 = vmatprep.subr.mxu0 0.0
    %v707 = vand.u32 %v64, 4294901760
    %v708 = vsub.f32 %v64, %v707
    %709 = vmatpush2.msra.mxu0 %v708
    %710 = vmatprep.subr.mxu0 0.0
    %v711 = vand.u32 %v63, 4294901760
    %v712 = vsub.f32 %v63, %v711
    %713 = vmatpush2.msra.mxu0 %v712
    %714 = vmatprep.subr.mxu0 0.0
    %v715 = vand.u32 %v62, 4294901760
    %v716 = vsub.f32 %v62, %v715
    %717 = vmatpush2.msra.mxu0 %v716
    %718 = vmatprep.subr.mxu0 0.0
    %v719 = vand.u32 %v61, 4294901760
    %v720 = vsub.f32 %v61, %v719
    %721 = vmatpush2.msra.mxu0 %v720
    %722 = vmatprep.subr.mxu0 0.0
    %v723 = vand.u32 %v60, 4294901760
    %v724 = vsub.f32 %v60, %v723
    %725 = vmatpush2.msra.mxu0 %v724
    %v726 = vand.u32 %v242, 4294901760
    %v727 = vsub.f32 %v242, %v726
    %728 = vmatprep.mubr.f32.mxu0 %v727
    %v729 = vand.u32 %v38, 4294901760
    %v730 = vsub.f32 %v38, %v729
    %731 = vmatmul.mubr.f32.gmra.mxu0 %v730
    %v732 = vpop.f32.mrf.mxu0
    %v733 = vadd.f32 %v595, %v732
    %v734 = vpop.f32.mrf.mxu0
    %735 = vdwg.mxu0
    %736 = vmatprep.subr.mxu0 0.0
    %v737 = vand.u32 %v59, 4294901760
    %738 = vmatpush1.msra.mxu0 %v737
    %739 = vmatprep.subr.mxu0 0.0
    %v740 = vand.u32 %v58, 4294901760
    %741 = vmatpush1.msra.mxu0 %v740
    %742 = vmatprep.subr.mxu0 0.0
    %v743 = vand.u32 %v57, 4294901760
    %744 = vmatpush1.msra.mxu0 %v743
    %745 = vmatprep.subr.mxu0 0.0
    %v746 = vand.u32 %v56, 4294901760
    %747 = vmatpush1.msra.mxu0 %v746
    %748 = vmatprep.subr.mxu0 0.0
    %v749 = vand.u32 %v55, 4294901760
    %750 = vmatpush1.msra.mxu0 %v749
    %751 = vmatprep.subr.mxu0 0.0
    %v752 = vand.u32 %v54, 4294901760
    %753 = vmatpush1.msra.mxu0 %v752
    %754 = vmatprep.subr.mxu0 0.0
    %v755 = vand.u32 %v53, 4294901760
    %756 = vmatpush1.msra.mxu0 %v755
    %757 = vmatprep.subr.mxu0 0.0
    %v758 = vand.u32 %v52, 4294901760
    %759 = vmatpush1.msra.mxu0 %v758
    %760 = vmatprep.subr.mxu0 0.0
    %v761 = vand.u32 %v51, 4294901760
    %762 = vmatpush1.msra.mxu0 %v761
    %763 = vmatprep.subr.mxu0 0.0
    %v764 = vand.u32 %v50, 4294901760
    %765 = vmatpush1.msra.mxu0 %v764
    %766 = vmatprep.subr.mxu0 0.0
    %v767 = vand.u32 %v49, 4294901760
    %768 = vmatpush1.msra.mxu0 %v767
    %769 = vmatprep.subr.mxu0 0.0
    %v770 = vand.u32 %v48, 4294901760
    %771 = vmatpush1.msra.mxu0 %v770
    %772 = vmatprep.subr.mxu0 0.0
    %v773 = vand.u32 %v47, 4294901760
    %774 = vmatpush1.msra.mxu0 %v773
    %775 = vmatprep.subr.mxu0 0.0
    %v776 = vand.u32 %v46, 4294901760
    %777 = vmatpush1.msra.mxu0 %v776
    %778 = vmatprep.subr.mxu0 0.0
    %v779 = vand.u32 %v45, 4294901760
    %780 = vmatpush1.msra.mxu0 %v779
    %781 = vmatprep.subr.mxu0 0.0
    %v782 = vand.u32 %v44, 4294901760
    %783 = vmatpush1.msra.mxu0 %v782
    %784 = vmatprep.subr.mxu0 0.0
    %v785 = vand.u32 %v75, 4294901760
    %786 = vmatpush2.msra.mxu0 %v785
    %787 = vmatprep.subr.mxu0 0.0
    %v788 = vand.u32 %v74, 4294901760
    %789 = vmatpush2.msra.mxu0 %v788
    %790 = vmatprep.subr.mxu0 0.0
    %v791 = vand.u32 %v73, 4294901760
    %792 = vmatpush2.msra.mxu0 %v791
    %793 = vmatprep.subr.mxu0 0.0
    %v794 = vand.u32 %v72, 4294901760
    %795 = vmatpush2.msra.mxu0 %v794
    %796 = vmatprep.subr.mxu0 0.0
    %v797 = vand.u32 %v71, 4294901760
    %798 = vmatpush2.msra.mxu0 %v797
    %799 = vmatprep.subr.mxu0 0.0
    %v800 = vand.u32 %v70, 4294901760
    %801 = vmatpush2.msra.mxu0 %v800
    %802 = vmatprep.subr.mxu0 0.0
    %v803 = vand.u32 %v69, 4294901760
    %804 = vmatpush2.msra.mxu0 %v803
    %805 = vmatprep.subr.mxu0 0.0
    %v806 = vand.u32 %v68, 4294901760
    %807 = vmatpush2.msra.mxu0 %v806
    %808 = vmatprep.subr.mxu0 0.0
    %v809 = vand.u32 %v67, 4294901760
    %810 = vmatpush2.msra.mxu0 %v809
    %811 = vmatprep.subr.mxu0 0.0
    %v812 = vand.u32 %v66, 4294901760
    %813 = vmatpush2.msra.mxu0 %v812
    %814 = vmatprep.subr.mxu0 0.0
    %v815 = vand.u32 %v65, 4294901760
    %816 = vmatpush2.msra.mxu0 %v815
    %817 = vmatprep.subr.mxu0 0.0
    %v818 = vand.u32 %v64, 4294901760
    %819 = vmatpush2.msra.mxu0 %v818
    %820 = vmatprep.subr.mxu0 0.0
    %v821 = vand.u32 %v63, 4294901760
    %822 = vmatpush2.msra.mxu0 %v821
    %823 = vmatprep.subr.mxu0 0.0
    %v824 = vand.u32 %v62, 4294901760
    %825 = vmatpush2.msra.mxu0 %v824
    %826 = vmatprep.subr.mxu0 0.0
    %v827 = vand.u32 %v61, 4294901760
    %828 = vmatpush2.msra.mxu0 %v827
    %829 = vmatprep.subr.mxu0 0.0
    %v830 = vand.u32 %v60, 4294901760
    %831 = vmatpush2.msra.mxu0 %v830
    %v832 = vand.u32 %v242, 4294901760
    %v833 = vsub.f32 %v242, %v832
    %v834 = vand.u32 %v833, 4294901760
    %835 = vmatprep.mubr.f32.mxu0 %v834
    %v836 = vand.u32 %v38, 4294901760
    %v837 = vsub.f32 %v38, %v836
    %v838 = vand.u32 %v837, 4294901760
    %839 = vmatmul.mubr.f32.gmra.mxu0 %v838
    %v840 = vpop.f32.mrf.mxu0
    %v841 = vadd.f32 %v733, %v840
    %v842 = vpop.f32.mrf.mxu0
    %843 = vdwg.mxu0
    %844 = vmatprep.subr.mxu0 0.0
    %v845 = vand.u32 %v59, 4294901760
    %v846 = vsub.f32 %v59, %v845
    %v847 = vand.u32 %v846, 4294901760
    %848 = vmatpush1.msra.mxu0 %v847
    %849 = vmatprep.subr.mxu0 0.0
    %v850 = vand.u32 %v58, 4294901760
    %v851 = vsub.f32 %v58, %v850
    %v852 = vand.u32 %v851, 4294901760
    %853 = vmatpush1.msra.mxu0 %v852
    %854 = vmatprep.subr.mxu0 0.0
    %v855 = vand.u32 %v57, 4294901760
    %v856 = vsub.f32 %v57, %v855
    %v857 = vand.u32 %v856, 4294901760
    %858 = vmatpush1.msra.mxu0 %v857
    %859 = vmatprep.subr.mxu0 0.0
    %v860 = vand.u32 %v56, 4294901760
    %v861 = vsub.f32 %v56, %v860
    %v862 = vand.u32 %v861, 4294901760
    %863 = vmatpush1.msra.mxu0 %v862
    %864 = vmatprep.subr.mxu0 0.0
    %v865 = vand.u32 %v55, 4294901760
    %v866 = vsub.f32 %v55, %v865
    %v867 = vand.u32 %v866, 4294901760
    %868 = vmatpush1.msra.mxu0 %v867
    %869 = vmatprep.subr.mxu0 0.0
    %v870 = vand.u32 %v54, 4294901760
    %v871 = vsub.f32 %v54, %v870
    %v872 = vand.u32 %v871, 4294901760
    %873 = vmatpush1.msra.mxu0 %v872
    %874 = vmatprep.subr.mxu0 0.0
    %v875 = vand.u32 %v53, 4294901760
    %v876 = vsub.f32 %v53, %v875
    %v877 = vand.u32 %v876, 4294901760
    %878 = vmatpush1.msra.mxu0 %v877
    %879 = vmatprep.subr.mxu0 0.0
    %v880 = vand.u32 %v52, 4294901760
    %v881 = vsub.f32 %v52, %v880
    %v882 = vand.u32 %v881, 4294901760
    %883 = vmatpush1.msra.mxu0 %v882
    %884 = vmatprep.subr.mxu0 0.0
    %v885 = vand.u32 %v51, 4294901760
    %v886 = vsub.f32 %v51, %v885
    %v887 = vand.u32 %v886, 4294901760
    %888 = vmatpush1.msra.mxu0 %v887
    %889 = vmatprep.subr.mxu0 0.0
    %v890 = vand.u32 %v50, 4294901760
    %v891 = vsub.f32 %v50, %v890
    %v892 = vand.u32 %v891, 4294901760
    %893 = vmatpush1.msra.mxu0 %v892
    %894 = vmatprep.subr.mxu0 0.0
    %v895 = vand.u32 %v49, 4294901760
    %v896 = vsub.f32 %v49, %v895
    %v897 = vand.u32 %v896, 4294901760
    %898 = vmatpush1.msra.mxu0 %v897
    %899 = vmatprep.subr.mxu0 0.0
    %v900 = vand.u32 %v48, 4294901760
    %v901 = vsub.f32 %v48, %v900
    %v902 = vand.u32 %v901, 4294901760
    %903 = vmatpush1.msra.mxu0 %v902
    %904 = vmatprep.subr.mxu0 0.0
    %v905 = vand.u32 %v47, 4294901760
    %v906 = vsub.f32 %v47, %v905
    %v907 = vand.u32 %v906, 4294901760
    %908 = vmatpush1.msra.mxu0 %v907
    %909 = vmatprep.subr.mxu0 0.0
    %v910 = vand.u32 %v46, 4294901760
    %v911 = vsub.f32 %v46, %v910
    %v912 = vand.u32 %v911, 4294901760
    %913 = vmatpush1.msra.mxu0 %v912
    %914 = vmatprep.subr.mxu0 0.0
    %v915 = vand.u32 %v45, 4294901760
    %v916 = vsub.f32 %v45, %v915
    %v917 = vand.u32 %v916, 4294901760
    %918 = vmatpush1.msra.mxu0 %v917
    %919 = vmatprep.subr.mxu0 0.0
    %v920 = vand.u32 %v44, 4294901760
    %v921 = vsub.f32 %v44, %v920
    %v922 = vand.u32 %v921, 4294901760
    %923 = vmatpush1.msra.mxu0 %v922
    %924 = vmatprep.subr.mxu0 0.0
    %v925 = vand.u32 %v75, 4294901760
    %v926 = vsub.f32 %v75, %v925
    %v927 = vand.u32 %v926, 4294901760
    %928 = vmatpush2.msra.mxu0 %v927
    %929 = vmatprep.subr.mxu0 0.0
    %v930 = vand.u32 %v74, 4294901760
    %v931 = vsub.f32 %v74, %v930
    %v932 = vand.u32 %v931, 4294901760
    %933 = vmatpush2.msra.mxu0 %v932
    %934 = vmatprep.subr.mxu0 0.0
    %v935 = vand.u32 %v73, 4294901760
    %v936 = vsub.f32 %v73, %v935
    %v937 = vand.u32 %v936, 4294901760
    %938 = vmatpush2.msra.mxu0 %v937
    %939 = vmatprep.subr.mxu0 0.0
    %v940 = vand.u32 %v72, 4294901760
    %v941 = vsub.f32 %v72, %v940
    %v942 = vand.u32 %v941, 4294901760
    %943 = vmatpush2.msra.mxu0 %v942
    %944 = vmatprep.subr.mxu0 0.0
    %v945 = vand.u32 %v71, 4294901760
    %v946 = vsub.f32 %v71, %v945
    %v947 = vand.u32 %v946, 4294901760
    %948 = vmatpush2.msra.mxu0 %v947
    %949 = vmatprep.subr.mxu0 0.0
    %v950 = vand.u32 %v70, 4294901760
    %v951 = vsub.f32 %v70, %v950
    %v952 = vand.u32 %v951, 4294901760
    %953 = vmatpush2.msra.mxu0 %v952
    %954 = vmatprep.subr.mxu0 0.0
    %v955 = vand.u32 %v69, 4294901760
    %v956 = vsub.f32 %v69, %v955
    %v957 = vand.u32 %v956, 4294901760
    %958 = vmatpush2.msra.mxu0 %v957
    %959 = vmatprep.subr.mxu0 0.0
    %v960 = vand.u32 %v68, 4294901760
    %v961 = vsub.f32 %v68, %v960
    %v962 = vand.u32 %v961, 4294901760
    %963 = vmatpush2.msra.mxu0 %v962
    %964 = vmatprep.subr.mxu0 0.0
    %v965 = vand.u32 %v67, 4294901760
    %v966 = vsub.f32 %v67, %v965
    %v967 = vand.u32 %v966, 4294901760
    %968 = vmatpush2.msra.mxu0 %v967
    %969 = vmatprep.subr.mxu0 0.0
    %v970 = vand.u32 %v66, 4294901760
    %v971 = vsub.f32 %v66, %v970
    %v972 = vand.u32 %v971, 4294901760
    %973 = vmatpush2.msra.mxu0 %v972
    %974 = vmatprep.subr.mxu0 0.0
    %v975 = vand.u32 %v65, 4294901760
    %v976 = vsub.f32 %v65, %v975
    %v977 = vand.u32 %v976, 4294901760
    %978 = vmatpush2.msra.mxu0 %v977
    %979 = vmatprep.subr.mxu0 0.0
    %v980 = vand.u32 %v64, 4294901760
    %v981 = vsub.f32 %v64, %v980
    %v982 = vand.u32 %v981, 4294901760
    %983 = vmatpush2.msra.mxu0 %v982
    %984 = vmatprep.subr.mxu0 0.0
    %v985 = vand.u32 %v63, 4294901760
    %v986 = vsub.f32 %v63, %v985
    %v987 = vand.u32 %v986, 4294901760
    %988 = vmatpush2.msra.mxu0 %v987
    %989 = vmatprep.subr.mxu0 0.0
    %v990 = vand.u32 %v62, 4294901760
    %v991 = vsub.f32 %v62, %v990
    %v992 = vand.u32 %v991, 4294901760
    %993 = vmatpush2.msra.mxu0 %v992
    %994 = vmatprep.subr.mxu0 0.0
    %v995 = vand.u32 %v61, 4294901760
    %v996 = vsub.f32 %v61, %v995
    %v997 = vand.u32 %v996, 4294901760
    %998 = vmatpush2.msra.mxu0 %v997
    %999 = vmatprep.subr.mxu0 0.0
    %v1000 = vand.u32 %v60, 4294901760
    %v1001 = vsub.f32 %v60, %v1000
    %v1002 = vand.u32 %v1001, 4294901760
    %1003 = vmatpush2.msra.mxu0 %v1002
    %v1004 = vand.u32 %v242, 4294901760
    %1005 = vmatprep.mubr.f32.mxu0 %v1004
    %v1006 = vand.u32 %v38, 4294901760
    %1007 = vmatmul.mubr.f32.gmra.mxu0 %v1006
    %v1008 = vpop.f32.mrf.mxu0
    %v1009 = vadd.f32 %v841, %v1008
    %v1010 = vpop.f32.mrf.mxu0
    %1011 = vdwg.mxu0
    %1012 = vmatprep.subr.mxu0 0.0
    %v1013 = vand.u32 %v59, 4294901760
    %1014 = vmatpush1.msra.mxu0 %v1013
    %1015 = vmatprep.subr.mxu0 0.0
    %v1016 = vand.u32 %v58, 4294901760
    %1017 = vmatpush1.msra.mxu0 %v1016
    %1018 = vmatprep.subr.mxu0 0.0
    %v1019 = vand.u32 %v57, 4294901760
    %1020 = vmatpush1.msra.mxu0 %v1019
    %1021 = vmatprep.subr.mxu0 0.0
    %v1022 = vand.u32 %v56, 4294901760
    %1023 = vmatpush1.msra.mxu0 %v1022
    %1024 = vmatprep.subr.mxu0 0.0
    %v1025 = vand.u32 %v55, 4294901760
    %1026 = vmatpush1.msra.mxu0 %v1025
    %1027 = vmatprep.subr.mxu0 0.0
    %v1028 = vand.u32 %v54, 4294901760
    %1029 = vmatpush1.msra.mxu0 %v1028
    %1030 = vmatprep.subr.mxu0 0.0
    %v1031 = vand.u32 %v53, 4294901760
    %1032 = vmatpush1.msra.mxu0 %v1031
    %1033 = vmatprep.subr.mxu0 0.0
    %v1034 = vand.u32 %v52, 4294901760
    %1035 = vmatpush1.msra.mxu0 %v1034
    %1036 = vmatprep.subr.mxu0 0.0
    %v1037 = vand.u32 %v51, 4294901760
    %1038 = vmatpush1.msra.mxu0 %v1037
    %1039 = vmatprep.subr.mxu0 0.0
    %v1040 = vand.u32 %v50, 4294901760
    %1041 = vmatpush1.msra.mxu0 %v1040
    %1042 = vmatprep.subr.mxu0 0.0
    %v1043 = vand.u32 %v49, 4294901760
    %1044 = vmatpush1.msra.mxu0 %v1043
    %1045 = vmatprep.subr.mxu0 0.0
    %v1046 = vand.u32 %v48, 4294901760
    %1047 = vmatpush1.msra.mxu0 %v1046
    %1048 = vmatprep.subr.mxu0 0.0
    %v1049 = vand.u32 %v47, 4294901760
    %1050 = vmatpush1.msra.mxu0 %v1049
    %1051 = vmatprep.subr.mxu0 0.0
    %v1052 = vand.u32 %v46, 4294901760
    %1053 = vmatpush1.msra.mxu0 %v1052
    %1054 = vmatprep.subr.mxu0 0.0
    %v1055 = vand.u32 %v45, 4294901760
    %1056 = vmatpush1.msra.mxu0 %v1055
    %1057 = vmatprep.subr.mxu0 0.0
    %v1058 = vand.u32 %v44, 4294901760
    %1059 = vmatpush1.msra.mxu0 %v1058
    %1060 = vmatprep.subr.mxu0 0.0
    %v1061 = vand.u32 %v75, 4294901760
    %1062 = vmatpush2.msra.mxu0 %v1061
    %1063 = vmatprep.subr.mxu0 0.0
    %v1064 = vand.u32 %v74, 4294901760
    %1065 = vmatpush2.msra.mxu0 %v1064
    %1066 = vmatprep.subr.mxu0 0.0
    %v1067 = vand.u32 %v73, 4294901760
    %1068 = vmatpush2.msra.mxu0 %v1067
    %1069 = vmatprep.subr.mxu0 0.0
    %v1070 = vand.u32 %v72, 4294901760
    %1071 = vmatpush2.msra.mxu0 %v1070
    %1072 = vmatprep.subr.mxu0 0.0
    %v1073 = vand.u32 %v71, 4294901760
    %1074 = vmatpush2.msra.mxu0 %v1073
    %1075 = vmatprep.subr.mxu0 0.0
    %v1076 = vand.u32 %v70, 4294901760
    %1077 = vmatpush2.msra.mxu0 %v1076
    %1078 = vmatprep.subr.mxu0 0.0
    %v1079 = vand.u32 %v69, 4294901760
    %1080 = vmatpush2.msra.mxu0 %v1079
    %1081 = vmatprep.subr.mxu0 0.0
    %v1082 = vand.u32 %v68, 4294901760
    %1083 = vmatpush2.msra.mxu0 %v1082
    %1084 = vmatprep.subr.mxu0 0.0
    %v1085 = vand.u32 %v67, 4294901760
    %1086 = vmatpush2.msra.mxu0 %v1085
    %1087 = vmatprep.subr.mxu0 0.0
    %v1088 = vand.u32 %v66, 4294901760
    %1089 = vmatpush2.msra.mxu0 %v1088
    %1090 = vmatprep.subr.mxu0 0.0
    %v1091 = vand.u32 %v65, 4294901760
    %1092 = vmatpush2.msra.mxu0 %v1091
    %1093 = vmatprep.subr.mxu0 0.0
    %v1094 = vand.u32 %v64, 4294901760
    %1095 = vmatpush2.msra.mxu0 %v1094
    %1096 = vmatprep.subr.mxu0 0.0
    %v1097 = vand.u32 %v63, 4294901760
    %1098 = vmatpush2.msra.mxu0 %v1097
    %1099 = vmatprep.subr.mxu0 0.0
    %v1100 = vand.u32 %v62, 4294901760
    %1101 = vmatpush2.msra.mxu0 %v1100
    %1102 = vmatprep.subr.mxu0 0.0
    %v1103 = vand.u32 %v61, 4294901760
    %1104 = vmatpush2.msra.mxu0 %v1103
    %1105 = vmatprep.subr.mxu0 0.0
    %v1106 = vand.u32 %v60, 4294901760
    %1107 = vmatpush2.msra.mxu0 %v1106
    %v1108 = vand.u32 %v242, 4294901760
    %1109 = vmatprep.mubr.f32.mxu0 %v1108
    %v1110 = vand.u32 %v38, 4294901760
    %1111 = vmatmul.mubr.f32.gmra.mxu0 %v1110
    %v1112 = vpop.f32.mrf.mxu0
    %v1113 = vadd.f32 %v1009, %v1112
    %v1114 = vpop.f32.mrf.mxu0
    %1115 = vdwg.mxu0
    %1116 = vmatprep.subr.mxu0 0.0
    %v1117 = vand.u32 %v91, 4294901760
    %1118 = vmatpush1.msra.mxu0 %v1117
    %1119 = vmatprep.subr.mxu0 0.0
    %v1120 = vand.u32 %v90, 4294901760
    %1121 = vmatpush1.msra.mxu0 %v1120
    %1122 = vmatprep.subr.mxu0 0.0
    %v1123 = vand.u32 %v89, 4294901760
    %1124 = vmatpush1.msra.mxu0 %v1123
    %1125 = vmatprep.subr.mxu0 0.0
    %v1126 = vand.u32 %v88, 4294901760
    %1127 = vmatpush1.msra.mxu0 %v1126
    %1128 = vmatprep.subr.mxu0 0.0
    %v1129 = vand.u32 %v87, 4294901760
    %1130 = vmatpush1.msra.mxu0 %v1129
    %1131 = vmatprep.subr.mxu0 0.0
    %v1132 = vand.u32 %v86, 4294901760
    %1133 = vmatpush1.msra.mxu0 %v1132
    %1134 = vmatprep.subr.mxu0 0.0
    %v1135 = vand.u32 %v85, 4294901760
    %1136 = vmatpush1.msra.mxu0 %v1135
    %1137 = vmatprep.subr.mxu0 0.0
    %v1138 = vand.u32 %v84, 4294901760
    %1139 = vmatpush1.msra.mxu0 %v1138
    %1140 = vmatprep.subr.mxu0 0.0
    %v1141 = vand.u32 %v83, 4294901760
    %1142 = vmatpush1.msra.mxu0 %v1141
    %1143 = vmatprep.subr.mxu0 0.0
    %v1144 = vand.u32 %v82, 4294901760
    %1145 = vmatpush1.msra.mxu0 %v1144
    %1146 = vmatprep.subr.mxu0 0.0
    %v1147 = vand.u32 %v81, 4294901760
    %1148 = vmatpush1.msra.mxu0 %v1147
    %1149 = vmatprep.subr.mxu0 0.0
    %v1150 = vand.u32 %v80, 4294901760
    %1151 = vmatpush1.msra.mxu0 %v1150
    %1152 = vmatprep.subr.mxu0 0.0
    %v1153 = vand.u32 %v79, 4294901760
    %1154 = vmatpush1.msra.mxu0 %v1153
    %1155 = vmatprep.subr.mxu0 0.0
    %v1156 = vand.u32 %v78, 4294901760
    %1157 = vmatpush1.msra.mxu0 %v1156
    %1158 = vmatprep.subr.mxu0 0.0
    %v1159 = vand.u32 %v77, 4294901760
    %1160 = vmatpush1.msra.mxu0 %v1159
    %1161 = vmatprep.subr.mxu0 0.0
    %v1162 = vand.u32 %v76, 4294901760
    %1163 = vmatpush1.msra.mxu0 %v1162
    %1164 = vmatprep.subr.mxu0 0.0
    %v1165 = vand.u32 %v107, 4294901760
    %1166 = vmatpush2.msra.mxu0 %v1165
    %1167 = vmatprep.subr.mxu0 0.0
    %v1168 = vand.u32 %v106, 4294901760
    %1169 = vmatpush2.msra.mxu0 %v1168
    %1170 = vmatprep.subr.mxu0 0.0
    %v1171 = vand.u32 %v105, 4294901760
    %1172 = vmatpush2.msra.mxu0 %v1171
    %1173 = vmatprep.subr.mxu0 0.0
    %v1174 = vand.u32 %v104, 4294901760
    %1175 = vmatpush2.msra.mxu0 %v1174
    %1176 = vmatprep.subr.mxu0 0.0
    %v1177 = vand.u32 %v103, 4294901760
    %1178 = vmatpush2.msra.mxu0 %v1177
    %1179 = vmatprep.subr.mxu0 0.0
    %v1180 = vand.u32 %v102, 4294901760
    %1181 = vmatpush2.msra.mxu0 %v1180
    %1182 = vmatprep.subr.mxu0 0.0
    %v1183 = vand.u32 %v101, 4294901760
    %1184 = vmatpush2.msra.mxu0 %v1183
    %1185 = vmatprep.subr.mxu0 0.0
    %v1186 = vand.u32 %v100, 4294901760
    %1187 = vmatpush2.msra.mxu0 %v1186
    %1188 = vmatprep.subr.mxu0 0.0
    %v1189 = vand.u32 %v99, 4294901760
    %1190 = vmatpush2.msra.mxu0 %v1189
    %1191 = vmatprep.subr.mxu0 0.0
    %v1192 = vand.u32 %v98, 4294901760
    %1193 = vmatpush2.msra.mxu0 %v1192
    %1194 = vmatprep.subr.mxu0 0.0
    %v1195 = vand.u32 %v97, 4294901760
    %1196 = vmatpush2.msra.mxu0 %v1195
    %1197 = vmatprep.subr.mxu0 0.0
    %v1198 = vand.u32 %v96, 4294901760
    %1199 = vmatpush2.msra.mxu0 %v1198
    %1200 = vmatprep.subr.mxu0 0.0
    %v1201 = vand.u32 %v95, 4294901760
    %1202 = vmatpush2.msra.mxu0 %v1201
    %1203 = vmatprep.subr.mxu0 0.0
    %v1204 = vand.u32 %v94, 4294901760
    %1205 = vmatpush2.msra.mxu0 %v1204
    %1206 = vmatprep.subr.mxu0 0.0
    %v1207 = vand.u32 %v93, 4294901760
    %1208 = vmatpush2.msra.mxu0 %v1207
    %1209 = vmatprep.subr.mxu0 0.0
    %v1210 = vand.u32 %v92, 4294901760
    %1211 = vmatpush2.msra.mxu0 %v1210
    %v1212 = vand.u32 %v243, 4294901760
    %v1213 = vsub.f32 %v243, %v1212
    %v1214 = vand.u32 %v1213, 4294901760
    %v1215 = vsub.f32 %v1213, %v1214
    %v1216 = vand.u32 %v1215, 4294901760
    %1217 = vmatprep.mubr.f32.mxu0 %v1216
    %v1218 = vand.u32 %v39, 4294901760
    %v1219 = vsub.f32 %v39, %v1218
    %v1220 = vand.u32 %v1219, 4294901760
    %v1221 = vsub.f32 %v1219, %v1220
    %v1222 = vand.u32 %v1221, 4294901760
    %1223 = vmatmul.mubr.f32.gmra.mxu0 %v1222
    %v1224 = vpop.f32.mrf.mxu0
    %v1225 = vadd.f32 %v1113, %v1224
    %v1226 = vpop.f32.mrf.mxu0
    %1227 = vdwg.mxu0
    %1228 = vmatprep.subr.mxu0 0.0
    %v1229 = vand.u32 %v91, 4294901760
    %v1230 = vsub.f32 %v91, %v1229
    %v1231 = vand.u32 %v1230, 4294901760
    %v1232 = vsub.f32 %v1230, %v1231
    %v1233 = vand.u32 %v1232, 4294901760
    %1234 = vmatpush1.msra.mxu0 %v1233
    %1235 = vmatprep.subr.mxu0 0.0
    %v1236 = vand.u32 %v90, 4294901760
    %v1237 = vsub.f32 %v90, %v1236
    %v1238 = vand.u32 %v1237, 4294901760
    %v1239 = vsub.f32 %v1237, %v1238
    %v1240 = vand.u32 %v1239, 4294901760
    %1241 = vmatpush1.msra.mxu0 %v1240
    %1242 = vmatprep.subr.mxu0 0.0
    %v1243 = vand.u32 %v89, 4294901760
    %v1244 = vsub.f32 %v89, %v1243
    %v1245 = vand.u32 %v1244, 4294901760
    %v1246 = vsub.f32 %v1244, %v1245
    %v1247 = vand.u32 %v1246, 4294901760
    %1248 = vmatpush1.msra.mxu0 %v1247
    %1249 = vmatprep.subr.mxu0 0.0
    %v1250 = vand.u32 %v88, 4294901760
    %v1251 = vsub.f32 %v88, %v1250
    %v1252 = vand.u32 %v1251, 4294901760
    %v1253 = vsub.f32 %v1251, %v1252
    %v1254 = vand.u32 %v1253, 4294901760
    %1255 = vmatpush1.msra.mxu0 %v1254
    %1256 = vmatprep.subr.mxu0 0.0
    %v1257 = vand.u32 %v87, 4294901760
    %v1258 = vsub.f32 %v87, %v1257
    %v1259 = vand.u32 %v1258, 4294901760
    %v1260 = vsub.f32 %v1258, %v1259
    %v1261 = vand.u32 %v1260, 4294901760
    %1262 = vmatpush1.msra.mxu0 %v1261
    %1263 = vmatprep.subr.mxu0 0.0
    %v1264 = vand.u32 %v86, 4294901760
    %v1265 = vsub.f32 %v86, %v1264
    %v1266 = vand.u32 %v1265, 4294901760
    %v1267 = vsub.f32 %v1265, %v1266
    %v1268 = vand.u32 %v1267, 4294901760
    %1269 = vmatpush1.msra.mxu0 %v1268
    %1270 = vmatprep.subr.mxu0 0.0
    %v1271 = vand.u32 %v85, 4294901760
    %v1272 = vsub.f32 %v85, %v1271
    %v1273 = vand.u32 %v1272, 4294901760
    %v1274 = vsub.f32 %v1272, %v1273
    %v1275 = vand.u32 %v1274, 4294901760
    %1276 = vmatpush1.msra.mxu0 %v1275
    %1277 = vmatprep.subr.mxu0 0.0
    %v1278 = vand.u32 %v84, 4294901760
    %v1279 = vsub.f32 %v84, %v1278
    %v1280 = vand.u32 %v1279, 4294901760
    %v1281 = vsub.f32 %v1279, %v1280
    %v1282 = vand.u32 %v1281, 4294901760
    %1283 = vmatpush1.msra.mxu0 %v1282
    %1284 = vmatprep.subr.mxu0 0.0
    %v1285 = vand.u32 %v83, 4294901760
    %v1286 = vsub.f32 %v83, %v1285
    %v1287 = vand.u32 %v1286, 4294901760
    %v1288 = vsub.f32 %v1286, %v1287
    %v1289 = vand.u32 %v1288, 4294901760
    %1290 = vmatpush1.msra.mxu0 %v1289
    %1291 = vmatprep.subr.mxu0 0.0
    %v1292 = vand.u32 %v82, 4294901760
    %v1293 = vsub.f32 %v82, %v1292
    %v1294 = vand.u32 %v1293, 4294901760
    %v1295 = vsub.f32 %v1293, %v1294
    %v1296 = vand.u32 %v1295, 4294901760
    %1297 = vmatpush1.msra.mxu0 %v1296
    %1298 = vmatprep.subr.mxu0 0.0
    %v1299 = vand.u32 %v81, 4294901760
    %v1300 = vsub.f32 %v81, %v1299
    %v1301 = vand.u32 %v1300, 4294901760
    %v1302 = vsub.f32 %v1300, %v1301
    %v1303 = vand.u32 %v1302, 4294901760
    %1304 = vmatpush1.msra.mxu0 %v1303
    %1305 = vmatprep.subr.mxu0 0.0
    %v1306 = vand.u32 %v80, 4294901760
    %v1307 = vsub.f32 %v80, %v1306
    %v1308 = vand.u32 %v1307, 4294901760
    %v1309 = vsub.f32 %v1307, %v1308
    %v1310 = vand.u32 %v1309, 4294901760
    %1311 = vmatpush1.msra.mxu0 %v1310
    %1312 = vmatprep.subr.mxu0 0.0
    %v1313 = vand.u32 %v79, 4294901760
    %v1314 = vsub.f32 %v79, %v1313
    %v1315 = vand.u32 %v1314, 4294901760
    %v1316 = vsub.f32 %v1314, %v1315
    %v1317 = vand.u32 %v1316, 4294901760
    %1318 = vmatpush1.msra.mxu0 %v1317
    %1319 = vmatprep.subr.mxu0 0.0
    %v1320 = vand.u32 %v78, 4294901760
    %v1321 = vsub.f32 %v78, %v1320
    %v1322 = vand.u32 %v1321, 4294901760
    %v1323 = vsub.f32 %v1321, %v1322
    %v1324 = vand.u32 %v1323, 4294901760
    %1325 = vmatpush1.msra.mxu0 %v1324
    %1326 = vmatprep.subr.mxu0 0.0
    %v1327 = vand.u32 %v77, 4294901760
    %v1328 = vsub.f32 %v77, %v1327
    %v1329 = vand.u32 %v1328, 4294901760
    %v1330 = vsub.f32 %v1328, %v1329
    %v1331 = vand.u32 %v1330, 4294901760
    %1332 = vmatpush1.msra.mxu0 %v1331
    %1333 = vmatprep.subr.mxu0 0.0
    %v1334 = vand.u32 %v76, 4294901760
    %v1335 = vsub.f32 %v76, %v1334
    %v1336 = vand.u32 %v1335, 4294901760
    %v1337 = vsub.f32 %v1335, %v1336
    %v1338 = vand.u32 %v1337, 4294901760
    %1339 = vmatpush1.msra.mxu0 %v1338
    %1340 = vmatprep.subr.mxu0 0.0
    %v1341 = vand.u32 %v107, 4294901760
    %v1342 = vsub.f32 %v107, %v1341
    %v1343 = vand.u32 %v1342, 4294901760
    %v1344 = vsub.f32 %v1342, %v1343
    %v1345 = vand.u32 %v1344, 4294901760
    %1346 = vmatpush2.msra.mxu0 %v1345
    %1347 = vmatprep.subr.mxu0 0.0
    %v1348 = vand.u32 %v106, 4294901760
    %v1349 = vsub.f32 %v106, %v1348
    %v1350 = vand.u32 %v1349, 4294901760
    %v1351 = vsub.f32 %v1349, %v1350
    %v1352 = vand.u32 %v1351, 4294901760
    %1353 = vmatpush2.msra.mxu0 %v1352
    %1354 = vmatprep.subr.mxu0 0.0
    %v1355 = vand.u32 %v105, 4294901760
    %v1356 = vsub.f32 %v105, %v1355
    %v1357 = vand.u32 %v1356, 4294901760
    %v1358 = vsub.f32 %v1356, %v1357
    %v1359 = vand.u32 %v1358, 4294901760
    %1360 = vmatpush2.msra.mxu0 %v1359
    %1361 = vmatprep.subr.mxu0 0.0
    %v1362 = vand.u32 %v104, 4294901760
    %v1363 = vsub.f32 %v104, %v1362
    %v1364 = vand.u32 %v1363, 4294901760
    %v1365 = vsub.f32 %v1363, %v1364
    %v1366 = vand.u32 %v1365, 4294901760
    %1367 = vmatpush2.msra.mxu0 %v1366
    %1368 = vmatprep.subr.mxu0 0.0
    %v1369 = vand.u32 %v103, 4294901760
    %v1370 = vsub.f32 %v103, %v1369
    %v1371 = vand.u32 %v1370, 4294901760
    %v1372 = vsub.f32 %v1370, %v1371
    %v1373 = vand.u32 %v1372, 4294901760
    %1374 = vmatpush2.msra.mxu0 %v1373
    %1375 = vmatprep.subr.mxu0 0.0
    %v1376 = vand.u32 %v102, 4294901760
    %v1377 = vsub.f32 %v102, %v1376
    %v1378 = vand.u32 %v1377, 4294901760
    %v1379 = vsub.f32 %v1377, %v1378
    %v1380 = vand.u32 %v1379, 4294901760
    %1381 = vmatpush2.msra.mxu0 %v1380
    %1382 = vmatprep.subr.mxu0 0.0
    %v1383 = vand.u32 %v101, 4294901760
    %v1384 = vsub.f32 %v101, %v1383
    %v1385 = vand.u32 %v1384, 4294901760
    %v1386 = vsub.f32 %v1384, %v1385
    %v1387 = vand.u32 %v1386, 4294901760
    %1388 = vmatpush2.msra.mxu0 %v1387
    %1389 = vmatprep.subr.mxu0 0.0
    %v1390 = vand.u32 %v100, 4294901760
    %v1391 = vsub.f32 %v100, %v1390
    %v1392 = vand.u32 %v1391, 4294901760
    %v1393 = vsub.f32 %v1391, %v1392
    %v1394 = vand.u32 %v1393, 4294901760
    %1395 = vmatpush2.msra.mxu0 %v1394
    %1396 = vmatprep.subr.mxu0 0.0
    %v1397 = vand.u32 %v99, 4294901760
    %v1398 = vsub.f32 %v99, %v1397
    %v1399 = vand.u32 %v1398, 4294901760
    %v1400 = vsub.f32 %v1398, %v1399
    %v1401 = vand.u32 %v1400, 4294901760
    %1402 = vmatpush2.msra.mxu0 %v1401
    %1403 = vmatprep.subr.mxu0 0.0
    %v1404 = vand.u32 %v98, 4294901760
    %v1405 = vsub.f32 %v98, %v1404
    %v1406 = vand.u32 %v1405, 4294901760
    %v1407 = vsub.f32 %v1405, %v1406
    %v1408 = vand.u32 %v1407, 4294901760
    %1409 = vmatpush2.msra.mxu0 %v1408
    %1410 = vmatprep.subr.mxu0 0.0
    %v1411 = vand.u32 %v97, 4294901760
    %v1412 = vsub.f32 %v97, %v1411
    %v1413 = vand.u32 %v1412, 4294901760
    %v1414 = vsub.f32 %v1412, %v1413
    %v1415 = vand.u32 %v1414, 4294901760
    %1416 = vmatpush2.msra.mxu0 %v1415
    %1417 = vmatprep.subr.mxu0 0.0
    %v1418 = vand.u32 %v96, 4294901760
    %v1419 = vsub.f32 %v96, %v1418
    %v1420 = vand.u32 %v1419, 4294901760
    %v1421 = vsub.f32 %v1419, %v1420
    %v1422 = vand.u32 %v1421, 4294901760
    %1423 = vmatpush2.msra.mxu0 %v1422
    %1424 = vmatprep.subr.mxu0 0.0
    %v1425 = vand.u32 %v95, 4294901760
    %v1426 = vsub.f32 %v95, %v1425
    %v1427 = vand.u32 %v1426, 4294901760
    %v1428 = vsub.f32 %v1426, %v1427
    %v1429 = vand.u32 %v1428, 4294901760
    %1430 = vmatpush2.msra.mxu0 %v1429
    %1431 = vmatprep.subr.mxu0 0.0
    %v1432 = vand.u32 %v94, 4294901760
    %v1433 = vsub.f32 %v94, %v1432
    %v1434 = vand.u32 %v1433, 4294901760
    %v1435 = vsub.f32 %v1433, %v1434
    %v1436 = vand.u32 %v1435, 4294901760
    %1437 = vmatpush2.msra.mxu0 %v1436
    %1438 = vmatprep.subr.mxu0 0.0
    %v1439 = vand.u32 %v93, 4294901760
    %v1440 = vsub.f32 %v93, %v1439
    %v1441 = vand.u32 %v1440, 4294901760
    %v1442 = vsub.f32 %v1440, %v1441
    %v1443 = vand.u32 %v1442, 4294901760
    %1444 = vmatpush2.msra.mxu0 %v1443
    %1445 = vmatprep.subr.mxu0 0.0
    %v1446 = vand.u32 %v92, 4294901760
    %v1447 = vsub.f32 %v92, %v1446
    %v1448 = vand.u32 %v1447, 4294901760
    %v1449 = vsub.f32 %v1447, %v1448
    %v1450 = vand.u32 %v1449, 4294901760
    %1451 = vmatpush2.msra.mxu0 %v1450
    %v1452 = vand.u32 %v243, 4294901760
    %1453 = vmatprep.mubr.f32.mxu0 %v1452
    %v1454 = vand.u32 %v39, 4294901760
    %1455 = vmatmul.mubr.f32.gmra.mxu0 %v1454
    %v1456 = vpop.f32.mrf.mxu0
    %v1457 = vadd.f32 %v1225, %v1456
    %v1458 = vpop.f32.mrf.mxu0
    %1459 = vdwg.mxu0
    %1460 = vmatprep.subr.mxu0 0.0
    %v1461 = vand.u32 %v91, 4294901760
    %v1462 = vsub.f32 %v91, %v1461
    %1463 = vmatpush1.msra.mxu0 %v1462
    %1464 = vmatprep.subr.mxu0 0.0
    %v1465 = vand.u32 %v90, 4294901760
    %v1466 = vsub.f32 %v90, %v1465
    %1467 = vmatpush1.msra.mxu0 %v1466
    %1468 = vmatprep.subr.mxu0 0.0
    %v1469 = vand.u32 %v89, 4294901760
    %v1470 = vsub.f32 %v89, %v1469
    %1471 = vmatpush1.msra.mxu0 %v1470
    %1472 = vmatprep.subr.mxu0 0.0
    %v1473 = vand.u32 %v88, 4294901760
    %v1474 = vsub.f32 %v88, %v1473
    %1475 = vmatpush1.msra.mxu0 %v1474
    %1476 = vmatprep.subr.mxu0 0.0
    %v1477 = vand.u32 %v87, 4294901760
    %v1478 = vsub.f32 %v87, %v1477
    %1479 = vmatpush1.msra.mxu0 %v1478
    %1480 = vmatprep.subr.mxu0 0.0
    %v1481 = vand.u32 %v86, 4294901760
    %v1482 = vsub.f32 %v86, %v1481
    %1483 = vmatpush1.msra.mxu0 %v1482
    %1484 = vmatprep.subr.mxu0 0.0
    %v1485 = vand.u32 %v85, 4294901760
    %v1486 = vsub.f32 %v85, %v1485
    %1487 = vmatpush1.msra.mxu0 %v1486
    %1488 = vmatprep.subr.mxu0 0.0
    %v1489 = vand.u32 %v84, 4294901760
    %v1490 = vsub.f32 %v84, %v1489
    %1491 = vmatpush1.msra.mxu0 %v1490
    %1492 = vmatprep.subr.mxu0 0.0
    %v1493 = vand.u32 %v83, 4294901760
    %v1494 = vsub.f32 %v83, %v1493
    %1495 = vmatpush1.msra.mxu0 %v1494
    %1496 = vmatprep.subr.mxu0 0.0
    %v1497 = vand.u32 %v82, 4294901760
    %v1498 = vsub.f32 %v82, %v1497
    %1499 = vmatpush1.msra.mxu0 %v1498
    %1500 = vmatprep.subr.mxu0 0.0
    %v1501 = vand.u32 %v81, 4294901760
    %v1502 = vsub.f32 %v81, %v1501
    %1503 = vmatpush1.msra.mxu0 %v1502
    %1504 = vmatprep.subr.mxu0 0.0
    %v1505 = vand.u32 %v80, 4294901760
    %v1506 = vsub.f32 %v80, %v1505
    %1507 = vmatpush1.msra.mxu0 %v1506
    %1508 = vmatprep.subr.mxu0 0.0
    %v1509 = vand.u32 %v79, 4294901760
    %v1510 = vsub.f32 %v79, %v1509
    %1511 = vmatpush1.msra.mxu0 %v1510
    %1512 = vmatprep.subr.mxu0 0.0
    %v1513 = vand.u32 %v78, 4294901760
    %v1514 = vsub.f32 %v78, %v1513
    %1515 = vmatpush1.msra.mxu0 %v1514
    %1516 = vmatprep.subr.mxu0 0.0
    %v1517 = vand.u32 %v77, 4294901760
    %v1518 = vsub.f32 %v77, %v1517
    %1519 = vmatpush1.msra.mxu0 %v1518
    %1520 = vmatprep.subr.mxu0 0.0
    %v1521 = vand.u32 %v76, 4294901760
    %v1522 = vsub.f32 %v76, %v1521
    %1523 = vmatpush1.msra.mxu0 %v1522
    %1524 = vmatprep.subr.mxu0 0.0
    %v1525 = vand.u32 %v107, 4294901760
    %v1526 = vsub.f32 %v107, %v1525
    %1527 = vmatpush2.msra.mxu0 %v1526
    %1528 = vmatprep.subr.mxu0 0.0
    %v1529 = vand.u32 %v106, 4294901760
    %v1530 = vsub.f32 %v106, %v1529
    %1531 = vmatpush2.msra.mxu0 %v1530
    %1532 = vmatprep.subr.mxu0 0.0
    %v1533 = vand.u32 %v105, 4294901760
    %v1534 = vsub.f32 %v105, %v1533
    %1535 = vmatpush2.msra.mxu0 %v1534
    %1536 = vmatprep.subr.mxu0 0.0
    %v1537 = vand.u32 %v104, 4294901760
    %v1538 = vsub.f32 %v104, %v1537
    %1539 = vmatpush2.msra.mxu0 %v1538
    %1540 = vmatprep.subr.mxu0 0.0
    %v1541 = vand.u32 %v103, 4294901760
    %v1542 = vsub.f32 %v103, %v1541
    %1543 = vmatpush2.msra.mxu0 %v1542
    %1544 = vmatprep.subr.mxu0 0.0
    %v1545 = vand.u32 %v102, 4294901760
    %v1546 = vsub.f32 %v102, %v1545
    %1547 = vmatpush2.msra.mxu0 %v1546
    %1548 = vmatprep.subr.mxu0 0.0
    %v1549 = vand.u32 %v101, 4294901760
    %v1550 = vsub.f32 %v101, %v1549
    %1551 = vmatpush2.msra.mxu0 %v1550
    %1552 = vmatprep.subr.mxu0 0.0
    %v1553 = vand.u32 %v100, 4294901760
    %v1554 = vsub.f32 %v100, %v1553
    %1555 = vmatpush2.msra.mxu0 %v1554
    %1556 = vmatprep.subr.mxu0 0.0
    %v1557 = vand.u32 %v99, 4294901760
    %v1558 = vsub.f32 %v99, %v1557
    %1559 = vmatpush2.msra.mxu0 %v1558
    %1560 = vmatprep.subr.mxu0 0.0
    %v1561 = vand.u32 %v98, 4294901760
    %v1562 = vsub.f32 %v98, %v1561
    %1563 = vmatpush2.msra.mxu0 %v1562
    %1564 = vmatprep.subr.mxu0 0.0
    %v1565 = vand.u32 %v97, 4294901760
    %v1566 = vsub.f32 %v97, %v1565
    %1567 = vmatpush2.msra.mxu0 %v1566
    %1568 = vmatprep.subr.mxu0 0.0
    %v1569 = vand.u32 %v96, 4294901760
    %v1570 = vsub.f32 %v96, %v1569
    %1571 = vmatpush2.msra.mxu0 %v1570
    %1572 = vmatprep.subr.mxu0 0.0
    %v1573 = vand.u32 %v95, 4294901760
    %v1574 = vsub.f32 %v95, %v1573
    %1575 = vmatpush2.msra.mxu0 %v1574
    %1576 = vmatprep.subr.mxu0 0.0
    %v1577 = vand.u32 %v94, 4294901760
    %v1578 = vsub.f32 %v94, %v1577
    %1579 = vmatpush2.msra.mxu0 %v1578
    %1580 = vmatprep.subr.mxu0 0.0
    %v1581 = vand.u32 %v93, 4294901760
    %v1582 = vsub.f32 %v93, %v1581
    %1583 = vmatpush2.msra.mxu0 %v1582
    %1584 = vmatprep.subr.mxu0 0.0
    %v1585 = vand.u32 %v92, 4294901760
    %v1586 = vsub.f32 %v92, %v1585
    %1587 = vmatpush2.msra.mxu0 %v1586
    %v1588 = vand.u32 %v243, 4294901760
    %v1589 = vsub.f32 %v243, %v1588
    %1590 = vmatprep.mubr.f32.mxu0 %v1589
    %v1591 = vand.u32 %v39, 4294901760
    %v1592 = vsub.f32 %v39, %v1591
    %1593 = vmatmul.mubr.f32.gmra.mxu0 %v1592
    %v1594 = vpop.f32.mrf.mxu0
    %v1595 = vadd.f32 %v1457, %v1594
    %v1596 = vpop.f32.mrf.mxu0
    %1597 = vdwg.mxu0
    %1598 = vmatprep.subr.mxu0 0.0
    %v1599 = vand.u32 %v91, 4294901760
    %1600 = vmatpush1.msra.mxu0 %v1599
    %1601 = vmatprep.subr.mxu0 0.0
    %v1602 = vand.u32 %v90, 4294901760
    %1603 = vmatpush1.msra.mxu0 %v1602
    %1604 = vmatprep.subr.mxu0 0.0
    %v1605 = vand.u32 %v89, 4294901760
    %1606 = vmatpush1.msra.mxu0 %v1605
    %1607 = vmatprep.subr.mxu0 0.0
    %v1608 = vand.u32 %v88, 4294901760
    %1609 = vmatpush1.msra.mxu0 %v1608
    %1610 = vmatprep.subr.mxu0 0.0
    %v1611 = vand.u32 %v87, 4294901760
    %1612 = vmatpush1.msra.mxu0 %v1611
    %1613 = vmatprep.subr.mxu0 0.0
    %v1614 = vand.u32 %v86, 4294901760
    %1615 = vmatpush1.msra.mxu0 %v1614
    %1616 = vmatprep.subr.mxu0 0.0
    %v1617 = vand.u32 %v85, 4294901760
    %1618 = vmatpush1.msra.mxu0 %v1617
    %1619 = vmatprep.subr.mxu0 0.0
    %v1620 = vand.u32 %v84, 4294901760
    %1621 = vmatpush1.msra.mxu0 %v1620
    %1622 = vmatprep.subr.mxu0 0.0
    %v1623 = vand.u32 %v83, 4294901760
    %1624 = vmatpush1.msra.mxu0 %v1623
    %1625 = vmatprep.subr.mxu0 0.0
    %v1626 = vand.u32 %v82, 4294901760
    %1627 = vmatpush1.msra.mxu0 %v1626
    %1628 = vmatprep.subr.mxu0 0.0
    %v1629 = vand.u32 %v81, 4294901760
    %1630 = vmatpush1.msra.mxu0 %v1629
    %1631 = vmatprep.subr.mxu0 0.0
    %v1632 = vand.u32 %v80, 4294901760
    %1633 = vmatpush1.msra.mxu0 %v1632
    %1634 = vmatprep.subr.mxu0 0.0
    %v1635 = vand.u32 %v79, 4294901760
    %1636 = vmatpush1.msra.mxu0 %v1635
    %1637 = vmatprep.subr.mxu0 0.0
    %v1638 = vand.u32 %v78, 4294901760
    %1639 = vmatpush1.msra.mxu0 %v1638
    %1640 = vmatprep.subr.mxu0 0.0
    %v1641 = vand.u32 %v77, 4294901760
    %1642 = vmatpush1.msra.mxu0 %v1641
    %1643 = vmatprep.subr.mxu0 0.0
    %v1644 = vand.u32 %v76, 4294901760
    %1645 = vmatpush1.msra.mxu0 %v1644
    %1646 = vmatprep.subr.mxu0 0.0
    %v1647 = vand.u32 %v107, 4294901760
    %1648 = vmatpush2.msra.mxu0 %v1647
    %1649 = vmatprep.subr.mxu0 0.0
    %v1650 = vand.u32 %v106, 4294901760
    %1651 = vmatpush2.msra.mxu0 %v1650
    %1652 = vmatprep.subr.mxu0 0.0
    %v1653 = vand.u32 %v105, 4294901760
    %1654 = vmatpush2.msra.mxu0 %v1653
    %1655 = vmatprep.subr.mxu0 0.0
    %v1656 = vand.u32 %v104, 4294901760
    %1657 = vmatpush2.msra.mxu0 %v1656
    %1658 = vmatprep.subr.mxu0 0.0
    %v1659 = vand.u32 %v103, 4294901760
    %1660 = vmatpush2.msra.mxu0 %v1659
    %1661 = vmatprep.subr.mxu0 0.0
    %v1662 = vand.u32 %v102, 4294901760
    %1663 = vmatpush2.msra.mxu0 %v1662
    %1664 = vmatprep.subr.mxu0 0.0
    %v1665 = vand.u32 %v101, 4294901760
    %1666 = vmatpush2.msra.mxu0 %v1665
    %1667 = vmatprep.subr.mxu0 0.0
    %v1668 = vand.u32 %v100, 4294901760
    %1669 = vmatpush2.msra.mxu0 %v1668
    %1670 = vmatprep.subr.mxu0 0.0
    %v1671 = vand.u32 %v99, 4294901760
    %1672 = vmatpush2.msra.mxu0 %v1671
    %1673 = vmatprep.subr.mxu0 0.0
    %v1674 = vand.u32 %v98, 4294901760
    %1675 = vmatpush2.msra.mxu0 %v1674
    %1676 = vmatprep.subr.mxu0 0.0
    %v1677 = vand.u32 %v97, 4294901760
    %1678 = vmatpush2.msra.mxu0 %v1677
    %1679 = vmatprep.subr.mxu0 0.0
    %v1680 = vand.u32 %v96, 4294901760
    %1681 = vmatpush2.msra.mxu0 %v1680
    %1682 = vmatprep.subr.mxu0 0.0
    %v1683 = vand.u32 %v95, 4294901760
    %1684 = vmatpush2.msra.mxu0 %v1683
    %1685 = vmatprep.subr.mxu0 0.0
    %v1686 = vand.u32 %v94, 4294901760
    %1687 = vmatpush2.msra.mxu0 %v1686
    %1688 = vmatprep.subr.mxu0 0.0
    %v1689 = vand.u32 %v93, 4294901760
    %1690 = vmatpush2.msra.mxu0 %v1689
    %1691 = vmatprep.subr.mxu0 0.0
    %v1692 = vand.u32 %v92, 4294901760
    %1693 = vmatpush2.msra.mxu0 %v1692
    %v1694 = vand.u32 %v243, 4294901760
    %v1695 = vsub.f32 %v243, %v1694
    %v1696 = vand.u32 %v1695, 4294901760
    %1697 = vmatprep.mubr.f32.mxu0 %v1696
    %v1698 = vand.u32 %v39, 4294901760
    %v1699 = vsub.f32 %v39, %v1698
    %v1700 = vand.u32 %v1699, 4294901760
    %1701 = vmatmul.mubr.f32.gmra.mxu0 %v1700
    %v1702 = vpop.f32.mrf.mxu0
    %v1703 = vadd.f32 %v1595, %v1702
    %v1704 = vpop.f32.mrf.mxu0
    %1705 = vdwg.mxu0
    %1706 = vmatprep.subr.mxu0 0.0
    %v1707 = vand.u32 %v91, 4294901760
    %v1708 = vsub.f32 %v91, %v1707
    %v1709 = vand.u32 %v1708, 4294901760
    %1710 = vmatpush1.msra.mxu0 %v1709
    %1711 = vmatprep.subr.mxu0 0.0
    %v1712 = vand.u32 %v90, 4294901760
    %v1713 = vsub.f32 %v90, %v1712
    %v1714 = vand.u32 %v1713, 4294901760
    %1715 = vmatpush1.msra.mxu0 %v1714
    %1716 = vmatprep.subr.mxu0 0.0
    %v1717 = vand.u32 %v89, 4294901760
    %v1718 = vsub.f32 %v89, %v1717
    %v1719 = vand.u32 %v1718, 4294901760
    %1720 = vmatpush1.msra.mxu0 %v1719
    %1721 = vmatprep.subr.mxu0 0.0
    %v1722 = vand.u32 %v88, 4294901760
    %v1723 = vsub.f32 %v88, %v1722
    %v1724 = vand.u32 %v1723, 4294901760
    %1725 = vmatpush1.msra.mxu0 %v1724
    %1726 = vmatprep.subr.mxu0 0.0
    %v1727 = vand.u32 %v87, 4294901760
    %v1728 = vsub.f32 %v87, %v1727
    %v1729 = vand.u32 %v1728, 4294901760
    %1730 = vmatpush1.msra.mxu0 %v1729
    %1731 = vmatprep.subr.mxu0 0.0
    %v1732 = vand.u32 %v86, 4294901760
    %v1733 = vsub.f32 %v86, %v1732
    %v1734 = vand.u32 %v1733, 4294901760
    %1735 = vmatpush1.msra.mxu0 %v1734
    %1736 = vmatprep.subr.mxu0 0.0
    %v1737 = vand.u32 %v85, 4294901760
    %v1738 = vsub.f32 %v85, %v1737
    %v1739 = vand.u32 %v1738, 4294901760
    %1740 = vmatpush1.msra.mxu0 %v1739
    %1741 = vmatprep.subr.mxu0 0.0
    %v1742 = vand.u32 %v84, 4294901760
    %v1743 = vsub.f32 %v84, %v1742
    %v1744 = vand.u32 %v1743, 4294901760
    %1745 = vmatpush1.msra.mxu0 %v1744
    %1746 = vmatprep.subr.mxu0 0.0
    %v1747 = vand.u32 %v83, 4294901760
    %v1748 = vsub.f32 %v83, %v1747
    %v1749 = vand.u32 %v1748, 4294901760
    %1750 = vmatpush1.msra.mxu0 %v1749
    %1751 = vmatprep.subr.mxu0 0.0
    %v1752 = vand.u32 %v82, 4294901760
    %v1753 = vsub.f32 %v82, %v1752
    %v1754 = vand.u32 %v1753, 4294901760
    %1755 = vmatpush1.msra.mxu0 %v1754
    %1756 = vmatprep.subr.mxu0 0.0
    %v1757 = vand.u32 %v81, 4294901760
    %v1758 = vsub.f32 %v81, %v1757
    %v1759 = vand.u32 %v1758, 4294901760
    %1760 = vmatpush1.msra.mxu0 %v1759
    %1761 = vmatprep.subr.mxu0 0.0
    %v1762 = vand.u32 %v80, 4294901760
    %v1763 = vsub.f32 %v80, %v1762
    %v1764 = vand.u32 %v1763, 4294901760
    %1765 = vmatpush1.msra.mxu0 %v1764
    %1766 = vmatprep.subr.mxu0 0.0
    %v1767 = vand.u32 %v79, 4294901760
    %v1768 = vsub.f32 %v79, %v1767
    %v1769 = vand.u32 %v1768, 4294901760
    %1770 = vmatpush1.msra.mxu0 %v1769
    %1771 = vmatprep.subr.mxu0 0.0
    %v1772 = vand.u32 %v78, 4294901760
    %v1773 = vsub.f32 %v78, %v1772
    %v1774 = vand.u32 %v1773, 4294901760
    %1775 = vmatpush1.msra.mxu0 %v1774
    %1776 = vmatprep.subr.mxu0 0.0
    %v1777 = vand.u32 %v77, 4294901760
    %v1778 = vsub.f32 %v77, %v1777
    %v1779 = vand.u32 %v1778, 4294901760
    %1780 = vmatpush1.msra.mxu0 %v1779
    %1781 = vmatprep.subr.mxu0 0.0
    %v1782 = vand.u32 %v76, 4294901760
    %v1783 = vsub.f32 %v76, %v1782
    %v1784 = vand.u32 %v1783, 4294901760
    %1785 = vmatpush1.msra.mxu0 %v1784
    %1786 = vmatprep.subr.mxu0 0.0
    %v1787 = vand.u32 %v107, 4294901760
    %v1788 = vsub.f32 %v107, %v1787
    %v1789 = vand.u32 %v1788, 4294901760
    %1790 = vmatpush2.msra.mxu0 %v1789
    %1791 = vmatprep.subr.mxu0 0.0
    %v1792 = vand.u32 %v106, 4294901760
    %v1793 = vsub.f32 %v106, %v1792
    %v1794 = vand.u32 %v1793, 4294901760
    %1795 = vmatpush2.msra.mxu0 %v1794
    %1796 = vmatprep.subr.mxu0 0.0
    %v1797 = vand.u32 %v105, 4294901760
    %v1798 = vsub.f32 %v105, %v1797
    %v1799 = vand.u32 %v1798, 4294901760
    %1800 = vmatpush2.msra.mxu0 %v1799
    %1801 = vmatprep.subr.mxu0 0.0
    %v1802 = vand.u32 %v104, 4294901760
    %v1803 = vsub.f32 %v104, %v1802
    %v1804 = vand.u32 %v1803, 4294901760
    %1805 = vmatpush2.msra.mxu0 %v1804
    %1806 = vmatprep.subr.mxu0 0.0
    %v1807 = vand.u32 %v103, 4294901760
    %v1808 = vsub.f32 %v103, %v1807
    %v1809 = vand.u32 %v1808, 4294901760
    %1810 = vmatpush2.msra.mxu0 %v1809
    %1811 = vmatprep.subr.mxu0 0.0
    %v1812 = vand.u32 %v102, 4294901760
    %v1813 = vsub.f32 %v102, %v1812
    %v1814 = vand.u32 %v1813, 4294901760
    %1815 = vmatpush2.msra.mxu0 %v1814
    %1816 = vmatprep.subr.mxu0 0.0
    %v1817 = vand.u32 %v101, 4294901760
    %v1818 = vsub.f32 %v101, %v1817
    %v1819 = vand.u32 %v1818, 4294901760
    %1820 = vmatpush2.msra.mxu0 %v1819
    %1821 = vmatprep.subr.mxu0 0.0
    %v1822 = vand.u32 %v100, 4294901760
    %v1823 = vsub.f32 %v100, %v1822
    %v1824 = vand.u32 %v1823, 4294901760
    %1825 = vmatpush2.msra.mxu0 %v1824
    %1826 = vmatprep.subr.mxu0 0.0
    %v1827 = vand.u32 %v99, 4294901760
    %v1828 = vsub.f32 %v99, %v1827
    %v1829 = vand.u32 %v1828, 4294901760
    %1830 = vmatpush2.msra.mxu0 %v1829
    %1831 = vmatprep.subr.mxu0 0.0
    %v1832 = vand.u32 %v98, 4294901760
    %v1833 = vsub.f32 %v98, %v1832
    %v1834 = vand.u32 %v1833, 4294901760
    %1835 = vmatpush2.msra.mxu0 %v1834
    %1836 = vmatprep.subr.mxu0 0.0
    %v1837 = vand.u32 %v97, 4294901760
    %v1838 = vsub.f32 %v97, %v1837
    %v1839 = vand.u32 %v1838, 4294901760
    %1840 = vmatpush2.msra.mxu0 %v1839
    %1841 = vmatprep.subr.mxu0 0.0
    %v1842 = vand.u32 %v96, 4294901760
    %v1843 = vsub.f32 %v96, %v1842
    %v1844 = vand.u32 %v1843, 4294901760
    %1845 = vmatpush2.msra.mxu0 %v1844
    %1846 = vmatprep.subr.mxu0 0.0
    %v1847 = vand.u32 %v95, 4294901760
    %v1848 = vsub.f32 %v95, %v1847
    %v1849 = vand.u32 %v1848, 4294901760
    %1850 = vmatpush2.msra.mxu0 %v1849
    %1851 = vmatprep.subr.mxu0 0.0
    %v1852 = vand.u32 %v94, 4294901760
    %v1853 = vsub.f32 %v94, %v1852
    %v1854 = vand.u32 %v1853, 4294901760
    %1855 = vmatpush2.msra.mxu0 %v1854
    %1856 = vmatprep.subr.mxu0 0.0
    %v1857 = vand.u32 %v93, 4294901760
    %v1858 = vsub.f32 %v93, %v1857
    %v1859 = vand.u32 %v1858, 4294901760
    %1860 = vmatpush2.msra.mxu0 %v1859
    %1861 = vmatprep.subr.mxu0 0.0
    %v1862 = vand.u32 %v92, 4294901760
    %v1863 = vsub.f32 %v92, %v1862
    %v1864 = vand.u32 %v1863, 4294901760
    %1865 = vmatpush2.msra.mxu0 %v1864
    %v1866 = vand.u32 %v243, 4294901760
    %1867 = vmatprep.mubr.f32.mxu0 %v1866
    %v1868 = vand.u32 %v39, 4294901760
    %1869 = vmatmul.mubr.f32.gmra.mxu0 %v1868
    %v1870 = vpop.f32.mrf.mxu0
    %v1871 = vadd.f32 %v1703, %v1870
    %v1872 = vpop.f32.mrf.mxu0
    %1873 = vdwg.mxu0
    %1874 = vmatprep.subr.mxu0 0.0
    %v1875 = vand.u32 %v91, 4294901760
    %1876 = vmatpush1.msra.mxu0 %v1875
    %1877 = vmatprep.subr.mxu0 0.0
    %v1878 = vand.u32 %v90, 4294901760
    %1879 = vmatpush1.msra.mxu0 %v1878
    %1880 = vmatprep.subr.mxu0 0.0
    %v1881 = vand.u32 %v89, 4294901760
    %1882 = vmatpush1.msra.mxu0 %v1881
    %1883 = vmatprep.subr.mxu0 0.0
    %v1884 = vand.u32 %v88, 4294901760
    %1885 = vmatpush1.msra.mxu0 %v1884
    %1886 = vmatprep.subr.mxu0 0.0
    %v1887 = vand.u32 %v87, 4294901760
    %1888 = vmatpush1.msra.mxu0 %v1887
    %1889 = vmatprep.subr.mxu0 0.0
    %v1890 = vand.u32 %v86, 4294901760
    %1891 = vmatpush1.msra.mxu0 %v1890
    %1892 = vmatprep.subr.mxu0 0.0
    %v1893 = vand.u32 %v85, 4294901760
    %1894 = vmatpush1.msra.mxu0 %v1893
    %1895 = vmatprep.subr.mxu0 0.0
    %v1896 = vand.u32 %v84, 4294901760
    %1897 = vmatpush1.msra.mxu0 %v1896
    %1898 = vmatprep.subr.mxu0 0.0
    %v1899 = vand.u32 %v83, 4294901760
    %1900 = vmatpush1.msra.mxu0 %v1899
    %1901 = vmatprep.subr.mxu0 0.0
    %v1902 = vand.u32 %v82, 4294901760
    %1903 = vmatpush1.msra.mxu0 %v1902
    %1904 = vmatprep.subr.mxu0 0.0
    %v1905 = vand.u32 %v81, 4294901760
    %1906 = vmatpush1.msra.mxu0 %v1905
    %1907 = vmatprep.subr.mxu0 0.0
    %v1908 = vand.u32 %v80, 4294901760
    %1909 = vmatpush1.msra.mxu0 %v1908
    %1910 = vmatprep.subr.mxu0 0.0
    %v1911 = vand.u32 %v79, 4294901760
    %1912 = vmatpush1.msra.mxu0 %v1911
    %1913 = vmatprep.subr.mxu0 0.0
    %v1914 = vand.u32 %v78, 4294901760
    %1915 = vmatpush1.msra.mxu0 %v1914
    %1916 = vmatprep.subr.mxu0 0.0
    %v1917 = vand.u32 %v77, 4294901760
    %1918 = vmatpush1.msra.mxu0 %v1917
    %1919 = vmatprep.subr.mxu0 0.0
    %v1920 = vand.u32 %v76, 4294901760
    %1921 = vmatpush1.msra.mxu0 %v1920
    %1922 = vmatprep.subr.mxu0 0.0
    %v1923 = vand.u32 %v107, 4294901760
    %1924 = vmatpush2.msra.mxu0 %v1923
    %1925 = vmatprep.subr.mxu0 0.0
    %v1926 = vand.u32 %v106, 4294901760
    %1927 = vmatpush2.msra.mxu0 %v1926
    %1928 = vmatprep.subr.mxu0 0.0
    %v1929 = vand.u32 %v105, 4294901760
    %1930 = vmatpush2.msra.mxu0 %v1929
    %1931 = vmatprep.subr.mxu0 0.0
    %v1932 = vand.u32 %v104, 4294901760
    %1933 = vmatpush2.msra.mxu0 %v1932
    %1934 = vmatprep.subr.mxu0 0.0
    %v1935 = vand.u32 %v103, 4294901760
    %1936 = vmatpush2.msra.mxu0 %v1935
    %1937 = vmatprep.subr.mxu0 0.0
    %v1938 = vand.u32 %v102, 4294901760
    %1939 = vmatpush2.msra.mxu0 %v1938
    %1940 = vmatprep.subr.mxu0 0.0
    %v1941 = vand.u32 %v101, 4294901760
    %1942 = vmatpush2.msra.mxu0 %v1941
    %1943 = vmatprep.subr.mxu0 0.0
    %v1944 = vand.u32 %v100, 4294901760
    %1945 = vmatpush2.msra.mxu0 %v1944
    %1946 = vmatprep.subr.mxu0 0.0
    %v1947 = vand.u32 %v99, 4294901760
    %1948 = vmatpush2.msra.mxu0 %v1947
    %1949 = vmatprep.subr.mxu0 0.0
    %v1950 = vand.u32 %v98, 4294901760
    %1951 = vmatpush2.msra.mxu0 %v1950
    %1952 = vmatprep.subr.mxu0 0.0
    %v1953 = vand.u32 %v97, 4294901760
    %1954 = vmatpush2.msra.mxu0 %v1953
    %1955 = vmatprep.subr.mxu0 0.0
    %v1956 = vand.u32 %v96, 4294901760
    %1957 = vmatpush2.msra.mxu0 %v1956
    %1958 = vmatprep.subr.mxu0 0.0
    %v1959 = vand.u32 %v95, 4294901760
    %1960 = vmatpush2.msra.mxu0 %v1959
    %1961 = vmatprep.subr.mxu0 0.0
    %v1962 = vand.u32 %v94, 4294901760
    %1963 = vmatpush2.msra.mxu0 %v1962
    %1964 = vmatprep.subr.mxu0 0.0
    %v1965 = vand.u32 %v93, 4294901760
    %1966 = vmatpush2.msra.mxu0 %v1965
    %1967 = vmatprep.subr.mxu0 0.0
    %v1968 = vand.u32 %v92, 4294901760
    %1969 = vmatpush2.msra.mxu0 %v1968
    %v1970 = vand.u32 %v243, 4294901760
    %1971 = vmatprep.mubr.f32.mxu0 %v1970
    %v1972 = vand.u32 %v39, 4294901760
    %1973 = vmatmul.mubr.f32.gmra.mxu0 %v1972
    %v1974 = vpop.f32.mrf.mxu0
    %v1975 = vadd.f32 %v1871, %v1974
    %v1976 = vpop.f32.mrf.mxu0
    %1977 = vdwg.mxu0
    %1978 = vmatprep.subr.mxu0 0.0
    %v1979 = vand.u32 %v123, 4294901760
    %1980 = vmatpush1.msra.mxu0 %v1979
    %1981 = vmatprep.subr.mxu0 0.0
    %v1982 = vand.u32 %v122, 4294901760
    %1983 = vmatpush1.msra.mxu0 %v1982
    %1984 = vmatprep.subr.mxu0 0.0
    %v1985 = vand.u32 %v121, 4294901760
    %1986 = vmatpush1.msra.mxu0 %v1985
    %1987 = vmatprep.subr.mxu0 0.0
    %v1988 = vand.u32 %v120, 4294901760
    %1989 = vmatpush1.msra.mxu0 %v1988
    %1990 = vmatprep.subr.mxu0 0.0
    %v1991 = vand.u32 %v119, 4294901760
    %1992 = vmatpush1.msra.mxu0 %v1991
    %1993 = vmatprep.subr.mxu0 0.0
    %v1994 = vand.u32 %v118, 4294901760
    %1995 = vmatpush1.msra.mxu0 %v1994
    %1996 = vmatprep.subr.mxu0 0.0
    %v1997 = vand.u32 %v117, 4294901760
    %1998 = vmatpush1.msra.mxu0 %v1997
    %1999 = vmatprep.subr.mxu0 0.0
    %v2000 = vand.u32 %v116, 4294901760
    %2001 = vmatpush1.msra.mxu0 %v2000
    %2002 = vmatprep.subr.mxu0 0.0
    %v2003 = vand.u32 %v115, 4294901760
    %2004 = vmatpush1.msra.mxu0 %v2003
    %2005 = vmatprep.subr.mxu0 0.0
    %v2006 = vand.u32 %v114, 4294901760
    %2007 = vmatpush1.msra.mxu0 %v2006
    %2008 = vmatprep.subr.mxu0 0.0
    %v2009 = vand.u32 %v113, 4294901760
    %2010 = vmatpush1.msra.mxu0 %v2009
    %2011 = vmatprep.subr.mxu0 0.0
    %v2012 = vand.u32 %v112, 4294901760
    %2013 = vmatpush1.msra.mxu0 %v2012
    %2014 = vmatprep.subr.mxu0 0.0
    %v2015 = vand.u32 %v111, 4294901760
    %2016 = vmatpush1.msra.mxu0 %v2015
    %2017 = vmatprep.subr.mxu0 0.0
    %v2018 = vand.u32 %v110, 4294901760
    %2019 = vmatpush1.msra.mxu0 %v2018
    %2020 = vmatprep.subr.mxu0 0.0
    %v2021 = vand.u32 %v109, 4294901760
    %2022 = vmatpush1.msra.mxu0 %v2021
    %2023 = vmatprep.subr.mxu0 0.0
    %v2024 = vand.u32 %v108, 4294901760
    %2025 = vmatpush1.msra.mxu0 %v2024
    %2026 = vmatprep.subr.mxu0 0.0
    %v2027 = vand.u32 %v139, 4294901760
    %2028 = vmatpush2.msra.mxu0 %v2027
    %2029 = vmatprep.subr.mxu0 0.0
    %v2030 = vand.u32 %v138, 4294901760
    %2031 = vmatpush2.msra.mxu0 %v2030
    %2032 = vmatprep.subr.mxu0 0.0
    %v2033 = vand.u32 %v137, 4294901760
    %2034 = vmatpush2.msra.mxu0 %v2033
    %2035 = vmatprep.subr.mxu0 0.0
    %v2036 = vand.u32 %v136, 4294901760
    %2037 = vmatpush2.msra.mxu0 %v2036
    %2038 = vmatprep.subr.mxu0 0.0
    %v2039 = vand.u32 %v135, 4294901760
    %2040 = vmatpush2.msra.mxu0 %v2039
    %2041 = vmatprep.subr.mxu0 0.0
    %v2042 = vand.u32 %v134, 4294901760
    %2043 = vmatpush2.msra.mxu0 %v2042
    %2044 = vmatprep.subr.mxu0 0.0
    %v2045 = vand.u32 %v133, 4294901760
    %2046 = vmatpush2.msra.mxu0 %v2045
    %2047 = vmatprep.subr.mxu0 0.0
    %v2048 = vand.u32 %v132, 4294901760
    %2049 = vmatpush2.msra.mxu0 %v2048
    %2050 = vmatprep.subr.mxu0 0.0
    %v2051 = vand.u32 %v131, 4294901760
    %2052 = vmatpush2.msra.mxu0 %v2051
    %2053 = vmatprep.subr.mxu0 0.0
    %v2054 = vand.u32 %v130, 4294901760
    %2055 = vmatpush2.msra.mxu0 %v2054
    %2056 = vmatprep.subr.mxu0 0.0
    %v2057 = vand.u32 %v129, 4294901760
    %2058 = vmatpush2.msra.mxu0 %v2057
    %2059 = vmatprep.subr.mxu0 0.0
    %v2060 = vand.u32 %v128, 4294901760
    %2061 = vmatpush2.msra.mxu0 %v2060
    %2062 = vmatprep.subr.mxu0 0.0
    %v2063 = vand.u32 %v127, 4294901760
    %2064 = vmatpush2.msra.mxu0 %v2063
    %2065 = vmatprep.subr.mxu0 0.0
    %v2066 = vand.u32 %v126, 4294901760
    %2067 = vmatpush2.msra.mxu0 %v2066
    %2068 = vmatprep.subr.mxu0 0.0
    %v2069 = vand.u32 %v125, 4294901760
    %2070 = vmatpush2.msra.mxu0 %v2069
    %2071 = vmatprep.subr.mxu0 0.0
    %v2072 = vand.u32 %v124, 4294901760
    %2073 = vmatpush2.msra.mxu0 %v2072
    %v2074 = vand.u32 %v244, 4294901760
    %v2075 = vsub.f32 %v244, %v2074
    %v2076 = vand.u32 %v2075, 4294901760
    %v2077 = vsub.f32 %v2075, %v2076
    %v2078 = vand.u32 %v2077, 4294901760
    %2079 = vmatprep.mubr.f32.mxu0 %v2078
    %v2080 = vand.u32 %v40, 4294901760
    %v2081 = vsub.f32 %v40, %v2080
    %v2082 = vand.u32 %v2081, 4294901760
    %v2083 = vsub.f32 %v2081, %v2082
    %v2084 = vand.u32 %v2083, 4294901760
    %2085 = vmatmul.mubr.f32.gmra.mxu0 %v2084
    %v2086 = vpop.f32.mrf.mxu0
    %v2087 = vadd.f32 %v1975, %v2086
    %v2088 = vpop.f32.mrf.mxu0
    %2089 = vdwg.mxu0
    %2090 = vmatprep.subr.mxu0 0.0
    %v2091 = vand.u32 %v123, 4294901760
    %v2092 = vsub.f32 %v123, %v2091
    %v2093 = vand.u32 %v2092, 4294901760
    %v2094 = vsub.f32 %v2092, %v2093
    %v2095 = vand.u32 %v2094, 4294901760
    %2096 = vmatpush1.msra.mxu0 %v2095
    %2097 = vmatprep.subr.mxu0 0.0
    %v2098 = vand.u32 %v122, 4294901760
    %v2099 = vsub.f32 %v122, %v2098
    %v2100 = vand.u32 %v2099, 4294901760
    %v2101 = vsub.f32 %v2099, %v2100
    %v2102 = vand.u32 %v2101, 4294901760
    %2103 = vmatpush1.msra.mxu0 %v2102
    %2104 = vmatprep.subr.mxu0 0.0
    %v2105 = vand.u32 %v121, 4294901760
    %v2106 = vsub.f32 %v121, %v2105
    %v2107 = vand.u32 %v2106, 4294901760
    %v2108 = vsub.f32 %v2106, %v2107
    %v2109 = vand.u32 %v2108, 4294901760
    %2110 = vmatpush1.msra.mxu0 %v2109
    %2111 = vmatprep.subr.mxu0 0.0
    %v2112 = vand.u32 %v120, 4294901760
    %v2113 = vsub.f32 %v120, %v2112
    %v2114 = vand.u32 %v2113, 4294901760
    %v2115 = vsub.f32 %v2113, %v2114
    %v2116 = vand.u32 %v2115, 4294901760
    %2117 = vmatpush1.msra.mxu0 %v2116
    %2118 = vmatprep.subr.mxu0 0.0
    %v2119 = vand.u32 %v119, 4294901760
    %v2120 = vsub.f32 %v119, %v2119
    %v2121 = vand.u32 %v2120, 4294901760
    %v2122 = vsub.f32 %v2120, %v2121
    %v2123 = vand.u32 %v2122, 4294901760
    %2124 = vmatpush1.msra.mxu0 %v2123
    %2125 = vmatprep.subr.mxu0 0.0
    %v2126 = vand.u32 %v118, 4294901760
    %v2127 = vsub.f32 %v118, %v2126
    %v2128 = vand.u32 %v2127, 4294901760
    %v2129 = vsub.f32 %v2127, %v2128
    %v2130 = vand.u32 %v2129, 4294901760
    %2131 = vmatpush1.msra.mxu0 %v2130
    %2132 = vmatprep.subr.mxu0 0.0
    %v2133 = vand.u32 %v117, 4294901760
    %v2134 = vsub.f32 %v117, %v2133
    %v2135 = vand.u32 %v2134, 4294901760
    %v2136 = vsub.f32 %v2134, %v2135
    %v2137 = vand.u32 %v2136, 4294901760
    %2138 = vmatpush1.msra.mxu0 %v2137
    %2139 = vmatprep.subr.mxu0 0.0
    %v2140 = vand.u32 %v116, 4294901760
    %v2141 = vsub.f32 %v116, %v2140
    %v2142 = vand.u32 %v2141, 4294901760
    %v2143 = vsub.f32 %v2141, %v2142
    %v2144 = vand.u32 %v2143, 4294901760
    %2145 = vmatpush1.msra.mxu0 %v2144
    %2146 = vmatprep.subr.mxu0 0.0
    %v2147 = vand.u32 %v115, 4294901760
    %v2148 = vsub.f32 %v115, %v2147
    %v2149 = vand.u32 %v2148, 4294901760
    %v2150 = vsub.f32 %v2148, %v2149
    %v2151 = vand.u32 %v2150, 4294901760
    %2152 = vmatpush1.msra.mxu0 %v2151
    %2153 = vmatprep.subr.mxu0 0.0
    %v2154 = vand.u32 %v114, 4294901760
    %v2155 = vsub.f32 %v114, %v2154
    %v2156 = vand.u32 %v2155, 4294901760
    %v2157 = vsub.f32 %v2155, %v2156
    %v2158 = vand.u32 %v2157, 4294901760
    %2159 = vmatpush1.msra.mxu0 %v2158
    %2160 = vmatprep.subr.mxu0 0.0
    %v2161 = vand.u32 %v113, 4294901760
    %v2162 = vsub.f32 %v113, %v2161
    %v2163 = vand.u32 %v2162, 4294901760
    %v2164 = vsub.f32 %v2162, %v2163
    %v2165 = vand.u32 %v2164, 4294901760
    %2166 = vmatpush1.msra.mxu0 %v2165
    %2167 = vmatprep.subr.mxu0 0.0
    %v2168 = vand.u32 %v112, 4294901760
    %v2169 = vsub.f32 %v112, %v2168
    %v2170 = vand.u32 %v2169, 4294901760
    %v2171 = vsub.f32 %v2169, %v2170
    %v2172 = vand.u32 %v2171, 4294901760
    %2173 = vmatpush1.msra.mxu0 %v2172
    %2174 = vmatprep.subr.mxu0 0.0
    %v2175 = vand.u32 %v111, 4294901760
    %v2176 = vsub.f32 %v111, %v2175
    %v2177 = vand.u32 %v2176, 4294901760
    %v2178 = vsub.f32 %v2176, %v2177
    %v2179 = vand.u32 %v2178, 4294901760
    %2180 = vmatpush1.msra.mxu0 %v2179
    %2181 = vmatprep.subr.mxu0 0.0
    %v2182 = vand.u32 %v110, 4294901760
    %v2183 = vsub.f32 %v110, %v2182
    %v2184 = vand.u32 %v2183, 4294901760
    %v2185 = vsub.f32 %v2183, %v2184
    %v2186 = vand.u32 %v2185, 4294901760
    %2187 = vmatpush1.msra.mxu0 %v2186
    %2188 = vmatprep.subr.mxu0 0.0
    %v2189 = vand.u32 %v109, 4294901760
    %v2190 = vsub.f32 %v109, %v2189
    %v2191 = vand.u32 %v2190, 4294901760
    %v2192 = vsub.f32 %v2190, %v2191
    %v2193 = vand.u32 %v2192, 4294901760
    %2194 = vmatpush1.msra.mxu0 %v2193
    %2195 = vmatprep.subr.mxu0 0.0
    %v2196 = vand.u32 %v108, 4294901760
    %v2197 = vsub.f32 %v108, %v2196
    %v2198 = vand.u32 %v2197, 4294901760
    %v2199 = vsub.f32 %v2197, %v2198
    %v2200 = vand.u32 %v2199, 4294901760
    %2201 = vmatpush1.msra.mxu0 %v2200
    %2202 = vmatprep.subr.mxu0 0.0
    %v2203 = vand.u32 %v139, 4294901760
    %v2204 = vsub.f32 %v139, %v2203
    %v2205 = vand.u32 %v2204, 4294901760
    %v2206 = vsub.f32 %v2204, %v2205
    %v2207 = vand.u32 %v2206, 4294901760
    %2208 = vmatpush2.msra.mxu0 %v2207
    %2209 = vmatprep.subr.mxu0 0.0
    %v2210 = vand.u32 %v138, 4294901760
    %v2211 = vsub.f32 %v138, %v2210
    %v2212 = vand.u32 %v2211, 4294901760
    %v2213 = vsub.f32 %v2211, %v2212
    %v2214 = vand.u32 %v2213, 4294901760
    %2215 = vmatpush2.msra.mxu0 %v2214
    %2216 = vmatprep.subr.mxu0 0.0
    %v2217 = vand.u32 %v137, 4294901760
    %v2218 = vsub.f32 %v137, %v2217
    %v2219 = vand.u32 %v2218, 4294901760
    %v2220 = vsub.f32 %v2218, %v2219
    %v2221 = vand.u32 %v2220, 4294901760
    %2222 = vmatpush2.msra.mxu0 %v2221
    %2223 = vmatprep.subr.mxu0 0.0
    %v2224 = vand.u32 %v136, 4294901760
    %v2225 = vsub.f32 %v136, %v2224
    %v2226 = vand.u32 %v2225, 4294901760
    %v2227 = vsub.f32 %v2225, %v2226
    %v2228 = vand.u32 %v2227, 4294901760
    %2229 = vmatpush2.msra.mxu0 %v2228
    %2230 = vmatprep.subr.mxu0 0.0
    %v2231 = vand.u32 %v135, 4294901760
    %v2232 = vsub.f32 %v135, %v2231
    %v2233 = vand.u32 %v2232, 4294901760
    %v2234 = vsub.f32 %v2232, %v2233
    %v2235 = vand.u32 %v2234, 4294901760
    %2236 = vmatpush2.msra.mxu0 %v2235
    %2237 = vmatprep.subr.mxu0 0.0
    %v2238 = vand.u32 %v134, 4294901760
    %v2239 = vsub.f32 %v134, %v2238
    %v2240 = vand.u32 %v2239, 4294901760
    %v2241 = vsub.f32 %v2239, %v2240
    %v2242 = vand.u32 %v2241, 4294901760
    %2243 = vmatpush2.msra.mxu0 %v2242
    %2244 = vmatprep.subr.mxu0 0.0
    %v2245 = vand.u32 %v133, 4294901760
    %v2246 = vsub.f32 %v133, %v2245
    %v2247 = vand.u32 %v2246, 4294901760
    %v2248 = vsub.f32 %v2246, %v2247
    %v2249 = vand.u32 %v2248, 4294901760
    %2250 = vmatpush2.msra.mxu0 %v2249
    %2251 = vmatprep.subr.mxu0 0.0
    %v2252 = vand.u32 %v132, 4294901760
    %v2253 = vsub.f32 %v132, %v2252
    %v2254 = vand.u32 %v2253, 4294901760
    %v2255 = vsub.f32 %v2253, %v2254
    %v2256 = vand.u32 %v2255, 4294901760
    %2257 = vmatpush2.msra.mxu0 %v2256
    %2258 = vmatprep.subr.mxu0 0.0
    %v2259 = vand.u32 %v131, 4294901760
    %v2260 = vsub.f32 %v131, %v2259
    %v2261 = vand.u32 %v2260, 4294901760
    %v2262 = vsub.f32 %v2260, %v2261
    %v2263 = vand.u32 %v2262, 4294901760
    %2264 = vmatpush2.msra.mxu0 %v2263
    %2265 = vmatprep.subr.mxu0 0.0
    %v2266 = vand.u32 %v130, 4294901760
    %v2267 = vsub.f32 %v130, %v2266
    %v2268 = vand.u32 %v2267, 4294901760
    %v2269 = vsub.f32 %v2267, %v2268
    %v2270 = vand.u32 %v2269, 4294901760
    %2271 = vmatpush2.msra.mxu0 %v2270
    %2272 = vmatprep.subr.mxu0 0.0
    %v2273 = vand.u32 %v129, 4294901760
    %v2274 = vsub.f32 %v129, %v2273
    %v2275 = vand.u32 %v2274, 4294901760
    %v2276 = vsub.f32 %v2274, %v2275
    %v2277 = vand.u32 %v2276, 4294901760
    %2278 = vmatpush2.msra.mxu0 %v2277
    %2279 = vmatprep.subr.mxu0 0.0
    %v2280 = vand.u32 %v128, 4294901760
    %v2281 = vsub.f32 %v128, %v2280
    %v2282 = vand.u32 %v2281, 4294901760
    %v2283 = vsub.f32 %v2281, %v2282
    %v2284 = vand.u32 %v2283, 4294901760
    %2285 = vmatpush2.msra.mxu0 %v2284
    %2286 = vmatprep.subr.mxu0 0.0
    %v2287 = vand.u32 %v127, 4294901760
    %v2288 = vsub.f32 %v127, %v2287
    %v2289 = vand.u32 %v2288, 4294901760
    %v2290 = vsub.f32 %v2288, %v2289
    %v2291 = vand.u32 %v2290, 4294901760
    %2292 = vmatpush2.msra.mxu0 %v2291
    %2293 = vmatprep.subr.mxu0 0.0
    %v2294 = vand.u32 %v126, 4294901760
    %v2295 = vsub.f32 %v126, %v2294
    %v2296 = vand.u32 %v2295, 4294901760
    %v2297 = vsub.f32 %v2295, %v2296
    %v2298 = vand.u32 %v2297, 4294901760
    %2299 = vmatpush2.msra.mxu0 %v2298
    %2300 = vmatprep.subr.mxu0 0.0
    %v2301 = vand.u32 %v125, 4294901760
    %v2302 = vsub.f32 %v125, %v2301
    %v2303 = vand.u32 %v2302, 4294901760
    %v2304 = vsub.f32 %v2302, %v2303
    %v2305 = vand.u32 %v2304, 4294901760
    %2306 = vmatpush2.msra.mxu0 %v2305
    %2307 = vmatprep.subr.mxu0 0.0
    %v2308 = vand.u32 %v124, 4294901760
    %v2309 = vsub.f32 %v124, %v2308
    %v2310 = vand.u32 %v2309, 4294901760
    %v2311 = vsub.f32 %v2309, %v2310
    %v2312 = vand.u32 %v2311, 4294901760
    %2313 = vmatpush2.msra.mxu0 %v2312
    %v2314 = vand.u32 %v244, 4294901760
    %2315 = vmatprep.mubr.f32.mxu0 %v2314
    %v2316 = vand.u32 %v40, 4294901760
    %2317 = vmatmul.mubr.f32.gmra.mxu0 %v2316
    %v2318 = vpop.f32.mrf.mxu0
    %v2319 = vadd.f32 %v2087, %v2318
    %v2320 = vpop.f32.mrf.mxu0
    %2321 = vdwg.mxu0
    %2322 = vmatprep.subr.mxu0 0.0
    %v2323 = vand.u32 %v123, 4294901760
    %v2324 = vsub.f32 %v123, %v2323
    %2325 = vmatpush1.msra.mxu0 %v2324
    %2326 = vmatprep.subr.mxu0 0.0
    %v2327 = vand.u32 %v122, 4294901760
    %v2328 = vsub.f32 %v122, %v2327
    %2329 = vmatpush1.msra.mxu0 %v2328
    %2330 = vmatprep.subr.mxu0 0.0
    %v2331 = vand.u32 %v121, 4294901760
    %v2332 = vsub.f32 %v121, %v2331
    %2333 = vmatpush1.msra.mxu0 %v2332
    %2334 = vmatprep.subr.mxu0 0.0
    %v2335 = vand.u32 %v120, 4294901760
    %v2336 = vsub.f32 %v120, %v2335
    %2337 = vmatpush1.msra.mxu0 %v2336
    %2338 = vmatprep.subr.mxu0 0.0
    %v2339 = vand.u32 %v119, 4294901760
    %v2340 = vsub.f32 %v119, %v2339
    %2341 = vmatpush1.msra.mxu0 %v2340
    %2342 = vmatprep.subr.mxu0 0.0
    %v2343 = vand.u32 %v118, 4294901760
    %v2344 = vsub.f32 %v118, %v2343
    %2345 = vmatpush1.msra.mxu0 %v2344
    %2346 = vmatprep.subr.mxu0 0.0
    %v2347 = vand.u32 %v117, 4294901760
    %v2348 = vsub.f32 %v117, %v2347
    %2349 = vmatpush1.msra.mxu0 %v2348
    %2350 = vmatprep.subr.mxu0 0.0
    %v2351 = vand.u32 %v116, 4294901760
    %v2352 = vsub.f32 %v116, %v2351
    %2353 = vmatpush1.msra.mxu0 %v2352
    %2354 = vmatprep.subr.mxu0 0.0
    %v2355 = vand.u32 %v115, 4294901760
    %v2356 = vsub.f32 %v115, %v2355
    %2357 = vmatpush1.msra.mxu0 %v2356
    %2358 = vmatprep.subr.mxu0 0.0
    %v2359 = vand.u32 %v114, 4294901760
    %v2360 = vsub.f32 %v114, %v2359
    %2361 = vmatpush1.msra.mxu0 %v2360
    %2362 = vmatprep.subr.mxu0 0.0
    %v2363 = vand.u32 %v113, 4294901760
    %v2364 = vsub.f32 %v113, %v2363
    %2365 = vmatpush1.msra.mxu0 %v2364
    %2366 = vmatprep.subr.mxu0 0.0
    %v2367 = vand.u32 %v112, 4294901760
    %v2368 = vsub.f32 %v112, %v2367
    %2369 = vmatpush1.msra.mxu0 %v2368
    %2370 = vmatprep.subr.mxu0 0.0
    %v2371 = vand.u32 %v111, 4294901760
    %v2372 = vsub.f32 %v111, %v2371
    %2373 = vmatpush1.msra.mxu0 %v2372
    %2374 = vmatprep.subr.mxu0 0.0
    %v2375 = vand.u32 %v110, 4294901760
    %v2376 = vsub.f32 %v110, %v2375
    %2377 = vmatpush1.msra.mxu0 %v2376
    %2378 = vmatprep.subr.mxu0 0.0
    %v2379 = vand.u32 %v109, 4294901760
    %v2380 = vsub.f32 %v109, %v2379
    %2381 = vmatpush1.msra.mxu0 %v2380
    %2382 = vmatprep.subr.mxu0 0.0
    %v2383 = vand.u32 %v108, 4294901760
    %v2384 = vsub.f32 %v108, %v2383
    %2385 = vmatpush1.msra.mxu0 %v2384
    %2386 = vmatprep.subr.mxu0 0.0
    %v2387 = vand.u32 %v139, 4294901760
    %v2388 = vsub.f32 %v139, %v2387
    %2389 = vmatpush2.msra.mxu0 %v2388
    %2390 = vmatprep.subr.mxu0 0.0
    %v2391 = vand.u32 %v138, 4294901760
    %v2392 = vsub.f32 %v138, %v2391
    %2393 = vmatpush2.msra.mxu0 %v2392
    %2394 = vmatprep.subr.mxu0 0.0
    %v2395 = vand.u32 %v137, 4294901760
    %v2396 = vsub.f32 %v137, %v2395
    %2397 = vmatpush2.msra.mxu0 %v2396
    %2398 = vmatprep.subr.mxu0 0.0
    %v2399 = vand.u32 %v136, 4294901760
    %v2400 = vsub.f32 %v136, %v2399
    %2401 = vmatpush2.msra.mxu0 %v2400
    %2402 = vmatprep.subr.mxu0 0.0
    %v2403 = vand.u32 %v135, 4294901760
    %v2404 = vsub.f32 %v135, %v2403
    %2405 = vmatpush2.msra.mxu0 %v2404
    %2406 = vmatprep.subr.mxu0 0.0
    %v2407 = vand.u32 %v134, 4294901760
    %v2408 = vsub.f32 %v134, %v2407
    %2409 = vmatpush2.msra.mxu0 %v2408
    %2410 = vmatprep.subr.mxu0 0.0
    %v2411 = vand.u32 %v133, 4294901760
    %v2412 = vsub.f32 %v133, %v2411
    %2413 = vmatpush2.msra.mxu0 %v2412
    %2414 = vmatprep.subr.mxu0 0.0
    %v2415 = vand.u32 %v132, 4294901760
    %v2416 = vsub.f32 %v132, %v2415
    %2417 = vmatpush2.msra.mxu0 %v2416
    %2418 = vmatprep.subr.mxu0 0.0
    %v2419 = vand.u32 %v131, 4294901760
    %v2420 = vsub.f32 %v131, %v2419
    %2421 = vmatpush2.msra.mxu0 %v2420
    %2422 = vmatprep.subr.mxu0 0.0
    %v2423 = vand.u32 %v130, 4294901760
    %v2424 = vsub.f32 %v130, %v2423
    %2425 = vmatpush2.msra.mxu0 %v2424
    %2426 = vmatprep.subr.mxu0 0.0
    %v2427 = vand.u32 %v129, 4294901760
    %v2428 = vsub.f32 %v129, %v2427
    %2429 = vmatpush2.msra.mxu0 %v2428
    %2430 = vmatprep.subr.mxu0 0.0
    %v2431 = vand.u32 %v128, 4294901760
    %v2432 = vsub.f32 %v128, %v2431
    %2433 = vmatpush2.msra.mxu0 %v2432
    %2434 = vmatprep.subr.mxu0 0.0
    %v2435 = vand.u32 %v127, 4294901760
    %v2436 = vsub.f32 %v127, %v2435
    %2437 = vmatpush2.msra.mxu0 %v2436
    %2438 = vmatprep.subr.mxu0 0.0
    %v2439 = vand.u32 %v126, 4294901760
    %v2440 = vsub.f32 %v126, %v2439
    %2441 = vmatpush2.msra.mxu0 %v2440
    %2442 = vmatprep.subr.mxu0 0.0
    %v2443 = vand.u32 %v125, 4294901760
    %v2444 = vsub.f32 %v125, %v2443
    %2445 = vmatpush2.msra.mxu0 %v2444
    %2446 = vmatprep.subr.mxu0 0.0
    %v2447 = vand.u32 %v124, 4294901760
    %v2448 = vsub.f32 %v124, %v2447
    %2449 = vmatpush2.msra.mxu0 %v2448
    %v2450 = vand.u32 %v244, 4294901760
    %v2451 = vsub.f32 %v244, %v2450
    %2452 = vmatprep.mubr.f32.mxu0 %v2451
    %v2453 = vand.u32 %v40, 4294901760
    %v2454 = vsub.f32 %v40, %v2453
    %2455 = vmatmul.mubr.f32.gmra.mxu0 %v2454
    %v2456 = vpop.f32.mrf.mxu0
    %v2457 = vadd.f32 %v2319, %v2456
    %v2458 = vpop.f32.mrf.mxu0
    %2459 = vdwg.mxu0
    %2460 = vmatprep.subr.mxu0 0.0
    %v2461 = vand.u32 %v123, 4294901760
    %2462 = vmatpush1.msra.mxu0 %v2461
    %2463 = vmatprep.subr.mxu0 0.0
    %v2464 = vand.u32 %v122, 4294901760
    %2465 = vmatpush1.msra.mxu0 %v2464
    %2466 = vmatprep.subr.mxu0 0.0
    %v2467 = vand.u32 %v121, 4294901760
    %2468 = vmatpush1.msra.mxu0 %v2467
    %2469 = vmatprep.subr.mxu0 0.0
    %v2470 = vand.u32 %v120, 4294901760
    %2471 = vmatpush1.msra.mxu0 %v2470
    %2472 = vmatprep.subr.mxu0 0.0
    %v2473 = vand.u32 %v119, 4294901760
    %2474 = vmatpush1.msra.mxu0 %v2473
    %2475 = vmatprep.subr.mxu0 0.0
    %v2476 = vand.u32 %v118, 4294901760
    %2477 = vmatpush1.msra.mxu0 %v2476
    %2478 = vmatprep.subr.mxu0 0.0
    %v2479 = vand.u32 %v117, 4294901760
    %2480 = vmatpush1.msra.mxu0 %v2479
    %2481 = vmatprep.subr.mxu0 0.0
    %v2482 = vand.u32 %v116, 4294901760
    %2483 = vmatpush1.msra.mxu0 %v2482
    %2484 = vmatprep.subr.mxu0 0.0
    %v2485 = vand.u32 %v115, 4294901760
    %2486 = vmatpush1.msra.mxu0 %v2485
    %2487 = vmatprep.subr.mxu0 0.0
    %v2488 = vand.u32 %v114, 4294901760
    %2489 = vmatpush1.msra.mxu0 %v2488
    %2490 = vmatprep.subr.mxu0 0.0
    %v2491 = vand.u32 %v113, 4294901760
    %2492 = vmatpush1.msra.mxu0 %v2491
    %2493 = vmatprep.subr.mxu0 0.0
    %v2494 = vand.u32 %v112, 4294901760
    %2495 = vmatpush1.msra.mxu0 %v2494
    %2496 = vmatprep.subr.mxu0 0.0
    %v2497 = vand.u32 %v111, 4294901760
    %2498 = vmatpush1.msra.mxu0 %v2497
    %2499 = vmatprep.subr.mxu0 0.0
    %v2500 = vand.u32 %v110, 4294901760
    %2501 = vmatpush1.msra.mxu0 %v2500
    %2502 = vmatprep.subr.mxu0 0.0
    %v2503 = vand.u32 %v109, 4294901760
    %2504 = vmatpush1.msra.mxu0 %v2503
    %2505 = vmatprep.subr.mxu0 0.0
    %v2506 = vand.u32 %v108, 4294901760
    %2507 = vmatpush1.msra.mxu0 %v2506
    %2508 = vmatprep.subr.mxu0 0.0
    %v2509 = vand.u32 %v139, 4294901760
    %2510 = vmatpush2.msra.mxu0 %v2509
    %2511 = vmatprep.subr.mxu0 0.0
    %v2512 = vand.u32 %v138, 4294901760
    %2513 = vmatpush2.msra.mxu0 %v2512
    %2514 = vmatprep.subr.mxu0 0.0
    %v2515 = vand.u32 %v137, 4294901760
    %2516 = vmatpush2.msra.mxu0 %v2515
    %2517 = vmatprep.subr.mxu0 0.0
    %v2518 = vand.u32 %v136, 4294901760
    %2519 = vmatpush2.msra.mxu0 %v2518
    %2520 = vmatprep.subr.mxu0 0.0
    %v2521 = vand.u32 %v135, 4294901760
    %2522 = vmatpush2.msra.mxu0 %v2521
    %2523 = vmatprep.subr.mxu0 0.0
    %v2524 = vand.u32 %v134, 4294901760
    %2525 = vmatpush2.msra.mxu0 %v2524
    %2526 = vmatprep.subr.mxu0 0.0
    %v2527 = vand.u32 %v133, 4294901760
    %2528 = vmatpush2.msra.mxu0 %v2527
    %2529 = vmatprep.subr.mxu0 0.0
    %v2530 = vand.u32 %v132, 4294901760
    %2531 = vmatpush2.msra.mxu0 %v2530
    %2532 = vmatprep.subr.mxu0 0.0
    %v2533 = vand.u32 %v131, 4294901760
    %2534 = vmatpush2.msra.mxu0 %v2533
    %2535 = vmatprep.subr.mxu0 0.0
    %v2536 = vand.u32 %v130, 4294901760
    %2537 = vmatpush2.msra.mxu0 %v2536
    %2538 = vmatprep.subr.mxu0 0.0
    %v2539 = vand.u32 %v129, 4294901760
    %2540 = vmatpush2.msra.mxu0 %v2539
    %2541 = vmatprep.subr.mxu0 0.0
    %v2542 = vand.u32 %v128, 4294901760
    %2543 = vmatpush2.msra.mxu0 %v2542
    %2544 = vmatprep.subr.mxu0 0.0
    %v2545 = vand.u32 %v127, 4294901760
    %2546 = vmatpush2.msra.mxu0 %v2545
    %2547 = vmatprep.subr.mxu0 0.0
    %v2548 = vand.u32 %v126, 4294901760
    %2549 = vmatpush2.msra.mxu0 %v2548
    %2550 = vmatprep.subr.mxu0 0.0
    %v2551 = vand.u32 %v125, 4294901760
    %2552 = vmatpush2.msra.mxu0 %v2551
    %2553 = vmatprep.subr.mxu0 0.0
    %v2554 = vand.u32 %v124, 4294901760
    %2555 = vmatpush2.msra.mxu0 %v2554
    %v2556 = vand.u32 %v244, 4294901760
    %v2557 = vsub.f32 %v244, %v2556
    %v2558 = vand.u32 %v2557, 4294901760
    %2559 = vmatprep.mubr.f32.mxu0 %v2558
    %v2560 = vand.u32 %v40, 4294901760
    %v2561 = vsub.f32 %v40, %v2560
    %v2562 = vand.u32 %v2561, 4294901760
    %2563 = vmatmul.mubr.f32.gmra.mxu0 %v2562
    %v2564 = vpop.f32.mrf.mxu0
    %v2565 = vadd.f32 %v2457, %v2564
    %v2566 = vpop.f32.mrf.mxu0
    %2567 = vdwg.mxu0
    %2568 = vmatprep.subr.mxu0 0.0
    %v2569 = vand.u32 %v123, 4294901760
    %v2570 = vsub.f32 %v123, %v2569
    %v2571 = vand.u32 %v2570, 4294901760
    %2572 = vmatpush1.msra.mxu0 %v2571
    %2573 = vmatprep.subr.mxu0 0.0
    %v2574 = vand.u32 %v122, 4294901760
    %v2575 = vsub.f32 %v122, %v2574
    %v2576 = vand.u32 %v2575, 4294901760
    %2577 = vmatpush1.msra.mxu0 %v2576
    %2578 = vmatprep.subr.mxu0 0.0
    %v2579 = vand.u32 %v121, 4294901760
    %v2580 = vsub.f32 %v121, %v2579
    %v2581 = vand.u32 %v2580, 4294901760
    %2582 = vmatpush1.msra.mxu0 %v2581
    %2583 = vmatprep.subr.mxu0 0.0
    %v2584 = vand.u32 %v120, 4294901760
    %v2585 = vsub.f32 %v120, %v2584
    %v2586 = vand.u32 %v2585, 4294901760
    %2587 = vmatpush1.msra.mxu0 %v2586
    %2588 = vmatprep.subr.mxu0 0.0
    %v2589 = vand.u32 %v119, 4294901760
    %v2590 = vsub.f32 %v119, %v2589
    %v2591 = vand.u32 %v2590, 4294901760
    %2592 = vmatpush1.msra.mxu0 %v2591
    %2593 = vmatprep.subr.mxu0 0.0
    %v2594 = vand.u32 %v118, 4294901760
    %v2595 = vsub.f32 %v118, %v2594
    %v2596 = vand.u32 %v2595, 4294901760
    %2597 = vmatpush1.msra.mxu0 %v2596
    %2598 = vmatprep.subr.mxu0 0.0
    %v2599 = vand.u32 %v117, 4294901760
    %v2600 = vsub.f32 %v117, %v2599
    %v2601 = vand.u32 %v2600, 4294901760
    %2602 = vmatpush1.msra.mxu0 %v2601
    %2603 = vmatprep.subr.mxu0 0.0
    %v2604 = vand.u32 %v116, 4294901760
    %v2605 = vsub.f32 %v116, %v2604
    %v2606 = vand.u32 %v2605, 4294901760
    %2607 = vmatpush1.msra.mxu0 %v2606
    %2608 = vmatprep.subr.mxu0 0.0
    %v2609 = vand.u32 %v115, 4294901760
    %v2610 = vsub.f32 %v115, %v2609
    %v2611 = vand.u32 %v2610, 4294901760
    %2612 = vmatpush1.msra.mxu0 %v2611
    %2613 = vmatprep.subr.mxu0 0.0
    %v2614 = vand.u32 %v114, 4294901760
    %v2615 = vsub.f32 %v114, %v2614
    %v2616 = vand.u32 %v2615, 4294901760
    %2617 = vmatpush1.msra.mxu0 %v2616
    %2618 = vmatprep.subr.mxu0 0.0
    %v2619 = vand.u32 %v113, 4294901760
    %v2620 = vsub.f32 %v113, %v2619
    %v2621 = vand.u32 %v2620, 4294901760
    %2622 = vmatpush1.msra.mxu0 %v2621
    %2623 = vmatprep.subr.mxu0 0.0
    %v2624 = vand.u32 %v112, 4294901760
    %v2625 = vsub.f32 %v112, %v2624
    %v2626 = vand.u32 %v2625, 4294901760
    %2627 = vmatpush1.msra.mxu0 %v2626
    %2628 = vmatprep.subr.mxu0 0.0
    %v2629 = vand.u32 %v111, 4294901760
    %v2630 = vsub.f32 %v111, %v2629
    %v2631 = vand.u32 %v2630, 4294901760
    %2632 = vmatpush1.msra.mxu0 %v2631
    %2633 = vmatprep.subr.mxu0 0.0
    %v2634 = vand.u32 %v110, 4294901760
    %v2635 = vsub.f32 %v110, %v2634
    %v2636 = vand.u32 %v2635, 4294901760
    %2637 = vmatpush1.msra.mxu0 %v2636
    %2638 = vmatprep.subr.mxu0 0.0
    %v2639 = vand.u32 %v109, 4294901760
    %v2640 = vsub.f32 %v109, %v2639
    %v2641 = vand.u32 %v2640, 4294901760
    %2642 = vmatpush1.msra.mxu0 %v2641
    %2643 = vmatprep.subr.mxu0 0.0
    %v2644 = vand.u32 %v108, 4294901760
    %v2645 = vsub.f32 %v108, %v2644
    %v2646 = vand.u32 %v2645, 4294901760
    %2647 = vmatpush1.msra.mxu0 %v2646
    %2648 = vmatprep.subr.mxu0 0.0
    %v2649 = vand.u32 %v139, 4294901760
    %v2650 = vsub.f32 %v139, %v2649
    %v2651 = vand.u32 %v2650, 4294901760
    %2652 = vmatpush2.msra.mxu0 %v2651
    %2653 = vmatprep.subr.mxu0 0.0
    %v2654 = vand.u32 %v138, 4294901760
    %v2655 = vsub.f32 %v138, %v2654
    %v2656 = vand.u32 %v2655, 4294901760
    %2657 = vmatpush2.msra.mxu0 %v2656
    %2658 = vmatprep.subr.mxu0 0.0
    %v2659 = vand.u32 %v137, 4294901760
    %v2660 = vsub.f32 %v137, %v2659
    %v2661 = vand.u32 %v2660, 4294901760
    %2662 = vmatpush2.msra.mxu0 %v2661
    %2663 = vmatprep.subr.mxu0 0.0
    %v2664 = vand.u32 %v136, 4294901760
    %v2665 = vsub.f32 %v136, %v2664
    %v2666 = vand.u32 %v2665, 4294901760
    %2667 = vmatpush2.msra.mxu0 %v2666
    %2668 = vmatprep.subr.mxu0 0.0
    %v2669 = vand.u32 %v135, 4294901760
    %v2670 = vsub.f32 %v135, %v2669
    %v2671 = vand.u32 %v2670, 4294901760
    %2672 = vmatpush2.msra.mxu0 %v2671
    %2673 = vmatprep.subr.mxu0 0.0
    %v2674 = vand.u32 %v134, 4294901760
    %v2675 = vsub.f32 %v134, %v2674
    %v2676 = vand.u32 %v2675, 4294901760
    %2677 = vmatpush2.msra.mxu0 %v2676
    %2678 = vmatprep.subr.mxu0 0.0
    %v2679 = vand.u32 %v133, 4294901760
    %v2680 = vsub.f32 %v133, %v2679
    %v2681 = vand.u32 %v2680, 4294901760
    %2682 = vmatpush2.msra.mxu0 %v2681
    %2683 = vmatprep.subr.mxu0 0.0
    %v2684 = vand.u32 %v132, 4294901760
    %v2685 = vsub.f32 %v132, %v2684
    %v2686 = vand.u32 %v2685, 4294901760
    %2687 = vmatpush2.msra.mxu0 %v2686
    %2688 = vmatprep.subr.mxu0 0.0
    %v2689 = vand.u32 %v131, 4294901760
    %v2690 = vsub.f32 %v131, %v2689
    %v2691 = vand.u32 %v2690, 4294901760
    %2692 = vmatpush2.msra.mxu0 %v2691
    %2693 = vmatprep.subr.mxu0 0.0
    %v2694 = vand.u32 %v130, 4294901760
    %v2695 = vsub.f32 %v130, %v2694
    %v2696 = vand.u32 %v2695, 4294901760
    %2697 = vmatpush2.msra.mxu0 %v2696
    %2698 = vmatprep.subr.mxu0 0.0
    %v2699 = vand.u32 %v129, 4294901760
    %v2700 = vsub.f32 %v129, %v2699
    %v2701 = vand.u32 %v2700, 4294901760
    %2702 = vmatpush2.msra.mxu0 %v2701
    %2703 = vmatprep.subr.mxu0 0.0
    %v2704 = vand.u32 %v128, 4294901760
    %v2705 = vsub.f32 %v128, %v2704
    %v2706 = vand.u32 %v2705, 4294901760
    %2707 = vmatpush2.msra.mxu0 %v2706
    %2708 = vmatprep.subr.mxu0 0.0
    %v2709 = vand.u32 %v127, 4294901760
    %v2710 = vsub.f32 %v127, %v2709
    %v2711 = vand.u32 %v2710, 4294901760
    %2712 = vmatpush2.msra.mxu0 %v2711
    %2713 = vmatprep.subr.mxu0 0.0
    %v2714 = vand.u32 %v126, 4294901760
    %v2715 = vsub.f32 %v126, %v2714
    %v2716 = vand.u32 %v2715, 4294901760
    %2717 = vmatpush2.msra.mxu0 %v2716
    %2718 = vmatprep.subr.mxu0 0.0
    %v2719 = vand.u32 %v125, 4294901760
    %v2720 = vsub.f32 %v125, %v2719
    %v2721 = vand.u32 %v2720, 4294901760
    %2722 = vmatpush2.msra.mxu0 %v2721
    %2723 = vmatprep.subr.mxu0 0.0
    %v2724 = vand.u32 %v124, 4294901760
    %v2725 = vsub.f32 %v124, %v2724
    %v2726 = vand.u32 %v2725, 4294901760
    %2727 = vmatpush2.msra.mxu0 %v2726
    %v2728 = vand.u32 %v244, 4294901760
    %2729 = vmatprep.mubr.f32.mxu0 %v2728
    %v2730 = vand.u32 %v40, 4294901760
    %2731 = vmatmul.mubr.f32.gmra.mxu0 %v2730
    %v2732 = vpop.f32.mrf.mxu0
    %v2733 = vadd.f32 %v2565, %v2732
    %v2734 = vpop.f32.mrf.mxu0
    %2735 = vdwg.mxu0
    %2736 = vmatprep.subr.mxu0 0.0
    %v2737 = vand.u32 %v123, 4294901760
    %2738 = vmatpush1.msra.mxu0 %v2737
    %2739 = vmatprep.subr.mxu0 0.0
    %v2740 = vand.u32 %v122, 4294901760
    %2741 = vmatpush1.msra.mxu0 %v2740
    %2742 = vmatprep.subr.mxu0 0.0
    %v2743 = vand.u32 %v121, 4294901760
    %2744 = vmatpush1.msra.mxu0 %v2743
    %2745 = vmatprep.subr.mxu0 0.0
    %v2746 = vand.u32 %v120, 4294901760
    %2747 = vmatpush1.msra.mxu0 %v2746
    %2748 = vmatprep.subr.mxu0 0.0
    %v2749 = vand.u32 %v119, 4294901760
    %2750 = vmatpush1.msra.mxu0 %v2749
    %2751 = vmatprep.subr.mxu0 0.0
    %v2752 = vand.u32 %v118, 4294901760
    %2753 = vmatpush1.msra.mxu0 %v2752
    %2754 = vmatprep.subr.mxu0 0.0
    %v2755 = vand.u32 %v117, 4294901760
    %2756 = vmatpush1.msra.mxu0 %v2755
    %2757 = vmatprep.subr.mxu0 0.0
    %v2758 = vand.u32 %v116, 4294901760
    %2759 = vmatpush1.msra.mxu0 %v2758
    %2760 = vmatprep.subr.mxu0 0.0
    %v2761 = vand.u32 %v115, 4294901760
    %2762 = vmatpush1.msra.mxu0 %v2761
    %2763 = vmatprep.subr.mxu0 0.0
    %v2764 = vand.u32 %v114, 4294901760
    %2765 = vmatpush1.msra.mxu0 %v2764
    %2766 = vmatprep.subr.mxu0 0.0
    %v2767 = vand.u32 %v113, 4294901760
    %2768 = vmatpush1.msra.mxu0 %v2767
    %2769 = vmatprep.subr.mxu0 0.0
    %v2770 = vand.u32 %v112, 4294901760
    %2771 = vmatpush1.msra.mxu0 %v2770
    %2772 = vmatprep.subr.mxu0 0.0
    %v2773 = vand.u32 %v111, 4294901760
    %2774 = vmatpush1.msra.mxu0 %v2773
    %2775 = vmatprep.subr.mxu0 0.0
    %v2776 = vand.u32 %v110, 4294901760
    %2777 = vmatpush1.msra.mxu0 %v2776
    %2778 = vmatprep.subr.mxu0 0.0
    %v2779 = vand.u32 %v109, 4294901760
    %2780 = vmatpush1.msra.mxu0 %v2779
    %2781 = vmatprep.subr.mxu0 0.0
    %v2782 = vand.u32 %v108, 4294901760
    %2783 = vmatpush1.msra.mxu0 %v2782
    %2784 = vmatprep.subr.mxu0 0.0
    %v2785 = vand.u32 %v139, 4294901760
    %2786 = vmatpush2.msra.mxu0 %v2785
    %2787 = vmatprep.subr.mxu0 0.0
    %v2788 = vand.u32 %v138, 4294901760
    %2789 = vmatpush2.msra.mxu0 %v2788
    %2790 = vmatprep.subr.mxu0 0.0
    %v2791 = vand.u32 %v137, 4294901760
    %2792 = vmatpush2.msra.mxu0 %v2791
    %2793 = vmatprep.subr.mxu0 0.0
    %v2794 = vand.u32 %v136, 4294901760
    %2795 = vmatpush2.msra.mxu0 %v2794
    %2796 = vmatprep.subr.mxu0 0.0
    %v2797 = vand.u32 %v135, 4294901760
    %2798 = vmatpush2.msra.mxu0 %v2797
    %2799 = vmatprep.subr.mxu0 0.0
    %v2800 = vand.u32 %v134, 4294901760
    %2801 = vmatpush2.msra.mxu0 %v2800
    %2802 = vmatprep.subr.mxu0 0.0
    %v2803 = vand.u32 %v133, 4294901760
    %2804 = vmatpush2.msra.mxu0 %v2803
    %2805 = vmatprep.subr.mxu0 0.0
    %v2806 = vand.u32 %v132, 4294901760
    %2807 = vmatpush2.msra.mxu0 %v2806
    %2808 = vmatprep.subr.mxu0 0.0
    %v2809 = vand.u32 %v131, 4294901760
    %2810 = vmatpush2.msra.mxu0 %v2809
    %2811 = vmatprep.subr.mxu0 0.0
    %v2812 = vand.u32 %v130, 4294901760
    %2813 = vmatpush2.msra.mxu0 %v2812
    %2814 = vmatprep.subr.mxu0 0.0
    %v2815 = vand.u32 %v129, 4294901760
    %2816 = vmatpush2.msra.mxu0 %v2815
    %2817 = vmatprep.subr.mxu0 0.0
    %v2818 = vand.u32 %v128, 4294901760
    %2819 = vmatpush2.msra.mxu0 %v2818
    %2820 = vmatprep.subr.mxu0 0.0
    %v2821 = vand.u32 %v127, 4294901760
    %2822 = vmatpush2.msra.mxu0 %v2821
    %2823 = vmatprep.subr.mxu0 0.0
    %v2824 = vand.u32 %v126, 4294901760
    %2825 = vmatpush2.msra.mxu0 %v2824
    %2826 = vmatprep.subr.mxu0 0.0
    %v2827 = vand.u32 %v125, 4294901760
    %2828 = vmatpush2.msra.mxu0 %v2827
    %2829 = vmatprep.subr.mxu0 0.0
    %v2830 = vand.u32 %v124, 4294901760
    %2831 = vmatpush2.msra.mxu0 %v2830
    %v2832 = vand.u32 %v244, 4294901760
    %2833 = vmatprep.mubr.f32.mxu0 %v2832
    %v2834 = vand.u32 %v40, 4294901760
    %2835 = vmatmul.mubr.f32.gmra.mxu0 %v2834
    %v2836 = vpop.f32.mrf.mxu0
    %v2837 = vadd.f32 %v2733, %v2836
    %v2838 = vpop.f32.mrf.mxu0
    %2839 = vdwg.mxu0
    %2840 = vmatprep.subr.mxu0 0.0
    %v2841 = vand.u32 %v155, 4294901760
    %2842 = vmatpush1.msra.mxu0 %v2841
    %2843 = vmatprep.subr.mxu0 0.0
    %v2844 = vand.u32 %v154, 4294901760
    %2845 = vmatpush1.msra.mxu0 %v2844
    %2846 = vmatprep.subr.mxu0 0.0
    %v2847 = vand.u32 %v153, 4294901760
    %2848 = vmatpush1.msra.mxu0 %v2847
    %2849 = vmatprep.subr.mxu0 0.0
    %v2850 = vand.u32 %v152, 4294901760
    %2851 = vmatpush1.msra.mxu0 %v2850
    %2852 = vmatprep.subr.mxu0 0.0
    %v2853 = vand.u32 %v151, 4294901760
    %2854 = vmatpush1.msra.mxu0 %v2853
    %2855 = vmatprep.subr.mxu0 0.0
    %v2856 = vand.u32 %v150, 4294901760
    %2857 = vmatpush1.msra.mxu0 %v2856
    %2858 = vmatprep.subr.mxu0 0.0
    %v2859 = vand.u32 %v149, 4294901760
    %2860 = vmatpush1.msra.mxu0 %v2859
    %2861 = vmatprep.subr.mxu0 0.0
    %v2862 = vand.u32 %v148, 4294901760
    %2863 = vmatpush1.msra.mxu0 %v2862
    %2864 = vmatprep.subr.mxu0 0.0
    %v2865 = vand.u32 %v147, 4294901760
    %2866 = vmatpush1.msra.mxu0 %v2865
    %2867 = vmatprep.subr.mxu0 0.0
    %v2868 = vand.u32 %v146, 4294901760
    %2869 = vmatpush1.msra.mxu0 %v2868
    %2870 = vmatprep.subr.mxu0 0.0
    %v2871 = vand.u32 %v145, 4294901760
    %2872 = vmatpush1.msra.mxu0 %v2871
    %2873 = vmatprep.subr.mxu0 0.0
    %v2874 = vand.u32 %v144, 4294901760
    %2875 = vmatpush1.msra.mxu0 %v2874
    %2876 = vmatprep.subr.mxu0 0.0
    %v2877 = vand.u32 %v143, 4294901760
    %2878 = vmatpush1.msra.mxu0 %v2877
    %2879 = vmatprep.subr.mxu0 0.0
    %v2880 = vand.u32 %v142, 4294901760
    %2881 = vmatpush1.msra.mxu0 %v2880
    %2882 = vmatprep.subr.mxu0 0.0
    %v2883 = vand.u32 %v141, 4294901760
    %2884 = vmatpush1.msra.mxu0 %v2883
    %2885 = vmatprep.subr.mxu0 0.0
    %v2886 = vand.u32 %v140, 4294901760
    %2887 = vmatpush1.msra.mxu0 %v2886
    %2888 = vmatprep.subr.mxu0 0.0
    %v2889 = vand.u32 %v171, 4294901760
    %2890 = vmatpush2.msra.mxu0 %v2889
    %2891 = vmatprep.subr.mxu0 0.0
    %v2892 = vand.u32 %v170, 4294901760
    %2893 = vmatpush2.msra.mxu0 %v2892
    %2894 = vmatprep.subr.mxu0 0.0
    %v2895 = vand.u32 %v169, 4294901760
    %2896 = vmatpush2.msra.mxu0 %v2895
    %2897 = vmatprep.subr.mxu0 0.0
    %v2898 = vand.u32 %v168, 4294901760
    %2899 = vmatpush2.msra.mxu0 %v2898
    %2900 = vmatprep.subr.mxu0 0.0
    %v2901 = vand.u32 %v167, 4294901760
    %2902 = vmatpush2.msra.mxu0 %v2901
    %2903 = vmatprep.subr.mxu0 0.0
    %v2904 = vand.u32 %v166, 4294901760
    %2905 = vmatpush2.msra.mxu0 %v2904
    %2906 = vmatprep.subr.mxu0 0.0
    %v2907 = vand.u32 %v165, 4294901760
    %2908 = vmatpush2.msra.mxu0 %v2907
    %2909 = vmatprep.subr.mxu0 0.0
    %v2910 = vand.u32 %v164, 4294901760
    %2911 = vmatpush2.msra.mxu0 %v2910
    %2912 = vmatprep.subr.mxu0 0.0
    %v2913 = vand.u32 %v163, 4294901760
    %2914 = vmatpush2.msra.mxu0 %v2913
    %2915 = vmatprep.subr.mxu0 0.0
    %v2916 = vand.u32 %v162, 4294901760
    %2917 = vmatpush2.msra.mxu0 %v2916
    %2918 = vmatprep.subr.mxu0 0.0
    %v2919 = vand.u32 %v161, 4294901760
    %2920 = vmatpush2.msra.mxu0 %v2919
    %2921 = vmatprep.subr.mxu0 0.0
    %v2922 = vand.u32 %v160, 4294901760
    %2923 = vmatpush2.msra.mxu0 %v2922
    %2924 = vmatprep.subr.mxu0 0.0
    %v2925 = vand.u32 %v159, 4294901760
    %2926 = vmatpush2.msra.mxu0 %v2925
    %2927 = vmatprep.subr.mxu0 0.0
    %v2928 = vand.u32 %v158, 4294901760
    %2929 = vmatpush2.msra.mxu0 %v2928
    %2930 = vmatprep.subr.mxu0 0.0
    %v2931 = vand.u32 %v157, 4294901760
    %2932 = vmatpush2.msra.mxu0 %v2931
    %2933 = vmatprep.subr.mxu0 0.0
    %v2934 = vand.u32 %v156, 4294901760
    %2935 = vmatpush2.msra.mxu0 %v2934
    %v2936 = vand.u32 %v245, 4294901760
    %v2937 = vsub.f32 %v245, %v2936
    %v2938 = vand.u32 %v2937, 4294901760
    %v2939 = vsub.f32 %v2937, %v2938
    %v2940 = vand.u32 %v2939, 4294901760
    %2941 = vmatprep.mubr.f32.mxu0 %v2940
    %v2942 = vand.u32 %v41, 4294901760
    %v2943 = vsub.f32 %v41, %v2942
    %v2944 = vand.u32 %v2943, 4294901760
    %v2945 = vsub.f32 %v2943, %v2944
    %v2946 = vand.u32 %v2945, 4294901760
    %2947 = vmatmul.mubr.f32.gmra.mxu0 %v2946
    %v2948 = vpop.f32.mrf.mxu0
    %v2949 = vadd.f32 %v2837, %v2948
    %v2950 = vpop.f32.mrf.mxu0
    %2951 = vdwg.mxu0
    %2952 = vmatprep.subr.mxu0 0.0
    %v2953 = vand.u32 %v155, 4294901760
    %v2954 = vsub.f32 %v155, %v2953
    %v2955 = vand.u32 %v2954, 4294901760
    %v2956 = vsub.f32 %v2954, %v2955
    %v2957 = vand.u32 %v2956, 4294901760
    %2958 = vmatpush1.msra.mxu0 %v2957
    %2959 = vmatprep.subr.mxu0 0.0
    %v2960 = vand.u32 %v154, 4294901760
    %v2961 = vsub.f32 %v154, %v2960
    %v2962 = vand.u32 %v2961, 4294901760
    %v2963 = vsub.f32 %v2961, %v2962
    %v2964 = vand.u32 %v2963, 4294901760
    %2965 = vmatpush1.msra.mxu0 %v2964
    %2966 = vmatprep.subr.mxu0 0.0
    %v2967 = vand.u32 %v153, 4294901760
    %v2968 = vsub.f32 %v153, %v2967
    %v2969 = vand.u32 %v2968, 4294901760
    %v2970 = vsub.f32 %v2968, %v2969
    %v2971 = vand.u32 %v2970, 4294901760
    %2972 = vmatpush1.msra.mxu0 %v2971
    %2973 = vmatprep.subr.mxu0 0.0
    %v2974 = vand.u32 %v152, 4294901760
    %v2975 = vsub.f32 %v152, %v2974
    %v2976 = vand.u32 %v2975, 4294901760
    %v2977 = vsub.f32 %v2975, %v2976
    %v2978 = vand.u32 %v2977, 4294901760
    %2979 = vmatpush1.msra.mxu0 %v2978
    %2980 = vmatprep.subr.mxu0 0.0
    %v2981 = vand.u32 %v151, 4294901760
    %v2982 = vsub.f32 %v151, %v2981
    %v2983 = vand.u32 %v2982, 4294901760
    %v2984 = vsub.f32 %v2982, %v2983
    %v2985 = vand.u32 %v2984, 4294901760
    %2986 = vmatpush1.msra.mxu0 %v2985
    %2987 = vmatprep.subr.mxu0 0.0
    %v2988 = vand.u32 %v150, 4294901760
    %v2989 = vsub.f32 %v150, %v2988
    %v2990 = vand.u32 %v2989, 4294901760
    %v2991 = vsub.f32 %v2989, %v2990
    %v2992 = vand.u32 %v2991, 4294901760
    %2993 = vmatpush1.msra.mxu0 %v2992
    %2994 = vmatprep.subr.mxu0 0.0
    %v2995 = vand.u32 %v149, 4294901760
    %v2996 = vsub.f32 %v149, %v2995
    %v2997 = vand.u32 %v2996, 4294901760
    %v2998 = vsub.f32 %v2996, %v2997
    %v2999 = vand.u32 %v2998, 4294901760
    %3000 = vmatpush1.msra.mxu0 %v2999
    %3001 = vmatprep.subr.mxu0 0.0
    %v3002 = vand.u32 %v148, 4294901760
    %v3003 = vsub.f32 %v148, %v3002
    %v3004 = vand.u32 %v3003, 4294901760
    %v3005 = vsub.f32 %v3003, %v3004
    %v3006 = vand.u32 %v3005, 4294901760
    %3007 = vmatpush1.msra.mxu0 %v3006
    %3008 = vmatprep.subr.mxu0 0.0
    %v3009 = vand.u32 %v147, 4294901760
    %v3010 = vsub.f32 %v147, %v3009
    %v3011 = vand.u32 %v3010, 4294901760
    %v3012 = vsub.f32 %v3010, %v3011
    %v3013 = vand.u32 %v3012, 4294901760
    %3014 = vmatpush1.msra.mxu0 %v3013
    %3015 = vmatprep.subr.mxu0 0.0
    %v3016 = vand.u32 %v146, 4294901760
    %v3017 = vsub.f32 %v146, %v3016
    %v3018 = vand.u32 %v3017, 4294901760
    %v3019 = vsub.f32 %v3017, %v3018
    %v3020 = vand.u32 %v3019, 4294901760
    %3021 = vmatpush1.msra.mxu0 %v3020
    %3022 = vmatprep.subr.mxu0 0.0
    %v3023 = vand.u32 %v145, 4294901760
    %v3024 = vsub.f32 %v145, %v3023
    %v3025 = vand.u32 %v3024, 4294901760
    %v3026 = vsub.f32 %v3024, %v3025
    %v3027 = vand.u32 %v3026, 4294901760
    %3028 = vmatpush1.msra.mxu0 %v3027
    %3029 = vmatprep.subr.mxu0 0.0
    %v3030 = vand.u32 %v144, 4294901760
    %v3031 = vsub.f32 %v144, %v3030
    %v3032 = vand.u32 %v3031, 4294901760
    %v3033 = vsub.f32 %v3031, %v3032
    %v3034 = vand.u32 %v3033, 4294901760
    %3035 = vmatpush1.msra.mxu0 %v3034
    %3036 = vmatprep.subr.mxu0 0.0
    %v3037 = vand.u32 %v143, 4294901760
    %v3038 = vsub.f32 %v143, %v3037
    %v3039 = vand.u32 %v3038, 4294901760
    %v3040 = vsub.f32 %v3038, %v3039
    %v3041 = vand.u32 %v3040, 4294901760
    %3042 = vmatpush1.msra.mxu0 %v3041
    %3043 = vmatprep.subr.mxu0 0.0
    %v3044 = vand.u32 %v142, 4294901760
    %v3045 = vsub.f32 %v142, %v3044
    %v3046 = vand.u32 %v3045, 4294901760
    %v3047 = vsub.f32 %v3045, %v3046
    %v3048 = vand.u32 %v3047, 4294901760
    %3049 = vmatpush1.msra.mxu0 %v3048
    %3050 = vmatprep.subr.mxu0 0.0
    %v3051 = vand.u32 %v141, 4294901760
    %v3052 = vsub.f32 %v141, %v3051
    %v3053 = vand.u32 %v3052, 4294901760
    %v3054 = vsub.f32 %v3052, %v3053
    %v3055 = vand.u32 %v3054, 4294901760
    %3056 = vmatpush1.msra.mxu0 %v3055
    %3057 = vmatprep.subr.mxu0 0.0
    %v3058 = vand.u32 %v140, 4294901760
    %v3059 = vsub.f32 %v140, %v3058
    %v3060 = vand.u32 %v3059, 4294901760
    %v3061 = vsub.f32 %v3059, %v3060
    %v3062 = vand.u32 %v3061, 4294901760
    %3063 = vmatpush1.msra.mxu0 %v3062
    %3064 = vmatprep.subr.mxu0 0.0
    %v3065 = vand.u32 %v171, 4294901760
    %v3066 = vsub.f32 %v171, %v3065
    %v3067 = vand.u32 %v3066, 4294901760
    %v3068 = vsub.f32 %v3066, %v3067
    %v3069 = vand.u32 %v3068, 4294901760
    %3070 = vmatpush2.msra.mxu0 %v3069
    %3071 = vmatprep.subr.mxu0 0.0
    %v3072 = vand.u32 %v170, 4294901760
    %v3073 = vsub.f32 %v170, %v3072
    %v3074 = vand.u32 %v3073, 4294901760
    %v3075 = vsub.f32 %v3073, %v3074
    %v3076 = vand.u32 %v3075, 4294901760
    %3077 = vmatpush2.msra.mxu0 %v3076
    %3078 = vmatprep.subr.mxu0 0.0
    %v3079 = vand.u32 %v169, 4294901760
    %v3080 = vsub.f32 %v169, %v3079
    %v3081 = vand.u32 %v3080, 4294901760
    %v3082 = vsub.f32 %v3080, %v3081
    %v3083 = vand.u32 %v3082, 4294901760
    %3084 = vmatpush2.msra.mxu0 %v3083
    %3085 = vmatprep.subr.mxu0 0.0
    %v3086 = vand.u32 %v168, 4294901760
    %v3087 = vsub.f32 %v168, %v3086
    %v3088 = vand.u32 %v3087, 4294901760
    %v3089 = vsub.f32 %v3087, %v3088
    %v3090 = vand.u32 %v3089, 4294901760
    %3091 = vmatpush2.msra.mxu0 %v3090
    %3092 = vmatprep.subr.mxu0 0.0
    %v3093 = vand.u32 %v167, 4294901760
    %v3094 = vsub.f32 %v167, %v3093
    %v3095 = vand.u32 %v3094, 4294901760
    %v3096 = vsub.f32 %v3094, %v3095
    %v3097 = vand.u32 %v3096, 4294901760
    %3098 = vmatpush2.msra.mxu0 %v3097
    %3099 = vmatprep.subr.mxu0 0.0
    %v3100 = vand.u32 %v166, 4294901760
    %v3101 = vsub.f32 %v166, %v3100
    %v3102 = vand.u32 %v3101, 4294901760
    %v3103 = vsub.f32 %v3101, %v3102
    %v3104 = vand.u32 %v3103, 4294901760
    %3105 = vmatpush2.msra.mxu0 %v3104
    %3106 = vmatprep.subr.mxu0 0.0
    %v3107 = vand.u32 %v165, 4294901760
    %v3108 = vsub.f32 %v165, %v3107
    %v3109 = vand.u32 %v3108, 4294901760
    %v3110 = vsub.f32 %v3108, %v3109
    %v3111 = vand.u32 %v3110, 4294901760
    %3112 = vmatpush2.msra.mxu0 %v3111
    %3113 = vmatprep.subr.mxu0 0.0
    %v3114 = vand.u32 %v164, 4294901760
    %v3115 = vsub.f32 %v164, %v3114
    %v3116 = vand.u32 %v3115, 4294901760
    %v3117 = vsub.f32 %v3115, %v3116
    %v3118 = vand.u32 %v3117, 4294901760
    %3119 = vmatpush2.msra.mxu0 %v3118
    %3120 = vmatprep.subr.mxu0 0.0
    %v3121 = vand.u32 %v163, 4294901760
    %v3122 = vsub.f32 %v163, %v3121
    %v3123 = vand.u32 %v3122, 4294901760
    %v3124 = vsub.f32 %v3122, %v3123
    %v3125 = vand.u32 %v3124, 4294901760
    %3126 = vmatpush2.msra.mxu0 %v3125
    %3127 = vmatprep.subr.mxu0 0.0
    %v3128 = vand.u32 %v162, 4294901760
    %v3129 = vsub.f32 %v162, %v3128
    %v3130 = vand.u32 %v3129, 4294901760
    %v3131 = vsub.f32 %v3129, %v3130
    %v3132 = vand.u32 %v3131, 4294901760
    %3133 = vmatpush2.msra.mxu0 %v3132
    %3134 = vmatprep.subr.mxu0 0.0
    %v3135 = vand.u32 %v161, 4294901760
    %v3136 = vsub.f32 %v161, %v3135
    %v3137 = vand.u32 %v3136, 4294901760
    %v3138 = vsub.f32 %v3136, %v3137
    %v3139 = vand.u32 %v3138, 4294901760
    %3140 = vmatpush2.msra.mxu0 %v3139
    %3141 = vmatprep.subr.mxu0 0.0
    %v3142 = vand.u32 %v160, 4294901760
    %v3143 = vsub.f32 %v160, %v3142
    %v3144 = vand.u32 %v3143, 4294901760
    %v3145 = vsub.f32 %v3143, %v3144
    %v3146 = vand.u32 %v3145, 4294901760
    %3147 = vmatpush2.msra.mxu0 %v3146
    %3148 = vmatprep.subr.mxu0 0.0
    %v3149 = vand.u32 %v159, 4294901760
    %v3150 = vsub.f32 %v159, %v3149
    %v3151 = vand.u32 %v3150, 4294901760
    %v3152 = vsub.f32 %v3150, %v3151
    %v3153 = vand.u32 %v3152, 4294901760
    %3154 = vmatpush2.msra.mxu0 %v3153
    %3155 = vmatprep.subr.mxu0 0.0
    %v3156 = vand.u32 %v158, 4294901760
    %v3157 = vsub.f32 %v158, %v3156
    %v3158 = vand.u32 %v3157, 4294901760
    %v3159 = vsub.f32 %v3157, %v3158
    %v3160 = vand.u32 %v3159, 4294901760
    %3161 = vmatpush2.msra.mxu0 %v3160
    %3162 = vmatprep.subr.mxu0 0.0
    %v3163 = vand.u32 %v157, 4294901760
    %v3164 = vsub.f32 %v157, %v3163
    %v3165 = vand.u32 %v3164, 4294901760
    %v3166 = vsub.f32 %v3164, %v3165
    %v3167 = vand.u32 %v3166, 4294901760
    %3168 = vmatpush2.msra.mxu0 %v3167
    %3169 = vmatprep.subr.mxu0 0.0
    %v3170 = vand.u32 %v156, 4294901760
    %v3171 = vsub.f32 %v156, %v3170
    %v3172 = vand.u32 %v3171, 4294901760
    %v3173 = vsub.f32 %v3171, %v3172
    %v3174 = vand.u32 %v3173, 4294901760
    %3175 = vmatpush2.msra.mxu0 %v3174
    %v3176 = vand.u32 %v245, 4294901760
    %3177 = vmatprep.mubr.f32.mxu0 %v3176
    %v3178 = vand.u32 %v41, 4294901760
    %3179 = vmatmul.mubr.f32.gmra.mxu0 %v3178
    %v3180 = vpop.f32.mrf.mxu0
    %v3181 = vadd.f32 %v2949, %v3180
    %v3182 = vpop.f32.mrf.mxu0
    %3183 = vdwg.mxu0
    %3184 = vmatprep.subr.mxu0 0.0
    %v3185 = vand.u32 %v155, 4294901760
    %v3186 = vsub.f32 %v155, %v3185
    %3187 = vmatpush1.msra.mxu0 %v3186
    %3188 = vmatprep.subr.mxu0 0.0
    %v3189 = vand.u32 %v154, 4294901760
    %v3190 = vsub.f32 %v154, %v3189
    %3191 = vmatpush1.msra.mxu0 %v3190
    %3192 = vmatprep.subr.mxu0 0.0
    %v3193 = vand.u32 %v153, 4294901760
    %v3194 = vsub.f32 %v153, %v3193
    %3195 = vmatpush1.msra.mxu0 %v3194
    %3196 = vmatprep.subr.mxu0 0.0
    %v3197 = vand.u32 %v152, 4294901760
    %v3198 = vsub.f32 %v152, %v3197
    %3199 = vmatpush1.msra.mxu0 %v3198
    %3200 = vmatprep.subr.mxu0 0.0
    %v3201 = vand.u32 %v151, 4294901760
    %v3202 = vsub.f32 %v151, %v3201
    %3203 = vmatpush1.msra.mxu0 %v3202
    %3204 = vmatprep.subr.mxu0 0.0
    %v3205 = vand.u32 %v150, 4294901760
    %v3206 = vsub.f32 %v150, %v3205
    %3207 = vmatpush1.msra.mxu0 %v3206
    %3208 = vmatprep.subr.mxu0 0.0
    %v3209 = vand.u32 %v149, 4294901760
    %v3210 = vsub.f32 %v149, %v3209
    %3211 = vmatpush1.msra.mxu0 %v3210
    %3212 = vmatprep.subr.mxu0 0.0
    %v3213 = vand.u32 %v148, 4294901760
    %v3214 = vsub.f32 %v148, %v3213
    %3215 = vmatpush1.msra.mxu0 %v3214
    %3216 = vmatprep.subr.mxu0 0.0
    %v3217 = vand.u32 %v147, 4294901760
    %v3218 = vsub.f32 %v147, %v3217
    %3219 = vmatpush1.msra.mxu0 %v3218
    %3220 = vmatprep.subr.mxu0 0.0
    %v3221 = vand.u32 %v146, 4294901760
    %v3222 = vsub.f32 %v146, %v3221
    %3223 = vmatpush1.msra.mxu0 %v3222
    %3224 = vmatprep.subr.mxu0 0.0
    %v3225 = vand.u32 %v145, 4294901760
    %v3226 = vsub.f32 %v145, %v3225
    %3227 = vmatpush1.msra.mxu0 %v3226
    %3228 = vmatprep.subr.mxu0 0.0
    %v3229 = vand.u32 %v144, 4294901760
    %v3230 = vsub.f32 %v144, %v3229
    %3231 = vmatpush1.msra.mxu0 %v3230
    %3232 = vmatprep.subr.mxu0 0.0
    %v3233 = vand.u32 %v143, 4294901760
    %v3234 = vsub.f32 %v143, %v3233
    %3235 = vmatpush1.msra.mxu0 %v3234
    %3236 = vmatprep.subr.mxu0 0.0
    %v3237 = vand.u32 %v142, 4294901760
    %v3238 = vsub.f32 %v142, %v3237
    %3239 = vmatpush1.msra.mxu0 %v3238
    %3240 = vmatprep.subr.mxu0 0.0
    %v3241 = vand.u32 %v141, 4294901760
    %v3242 = vsub.f32 %v141, %v3241
    %3243 = vmatpush1.msra.mxu0 %v3242
    %3244 = vmatprep.subr.mxu0 0.0
    %v3245 = vand.u32 %v140, 4294901760
    %v3246 = vsub.f32 %v140, %v3245
    %3247 = vmatpush1.msra.mxu0 %v3246
    %3248 = vmatprep.subr.mxu0 0.0
    %v3249 = vand.u32 %v171, 4294901760
    %v3250 = vsub.f32 %v171, %v3249
    %3251 = vmatpush2.msra.mxu0 %v3250
    %3252 = vmatprep.subr.mxu0 0.0
    %v3253 = vand.u32 %v170, 4294901760
    %v3254 = vsub.f32 %v170, %v3253
    %3255 = vmatpush2.msra.mxu0 %v3254
    %3256 = vmatprep.subr.mxu0 0.0
    %v3257 = vand.u32 %v169, 4294901760
    %v3258 = vsub.f32 %v169, %v3257
    %3259 = vmatpush2.msra.mxu0 %v3258
    %3260 = vmatprep.subr.mxu0 0.0
    %v3261 = vand.u32 %v168, 4294901760
    %v3262 = vsub.f32 %v168, %v3261
    %3263 = vmatpush2.msra.mxu0 %v3262
    %3264 = vmatprep.subr.mxu0 0.0
    %v3265 = vand.u32 %v167, 4294901760
    %v3266 = vsub.f32 %v167, %v3265
    %3267 = vmatpush2.msra.mxu0 %v3266
    %3268 = vmatprep.subr.mxu0 0.0
    %v3269 = vand.u32 %v166, 4294901760
    %v3270 = vsub.f32 %v166, %v3269
    %3271 = vmatpush2.msra.mxu0 %v3270
    %3272 = vmatprep.subr.mxu0 0.0
    %v3273 = vand.u32 %v165, 4294901760
    %v3274 = vsub.f32 %v165, %v3273
    %3275 = vmatpush2.msra.mxu0 %v3274
    %3276 = vmatprep.subr.mxu0 0.0
    %v3277 = vand.u32 %v164, 4294901760
    %v3278 = vsub.f32 %v164, %v3277
    %3279 = vmatpush2.msra.mxu0 %v3278
    %3280 = vmatprep.subr.mxu0 0.0
    %v3281 = vand.u32 %v163, 4294901760
    %v3282 = vsub.f32 %v163, %v3281
    %3283 = vmatpush2.msra.mxu0 %v3282
    %3284 = vmatprep.subr.mxu0 0.0
    %v3285 = vand.u32 %v162, 4294901760
    %v3286 = vsub.f32 %v162, %v3285
    %3287 = vmatpush2.msra.mxu0 %v3286
    %3288 = vmatprep.subr.mxu0 0.0
    %v3289 = vand.u32 %v161, 4294901760
    %v3290 = vsub.f32 %v161, %v3289
    %3291 = vmatpush2.msra.mxu0 %v3290
    %3292 = vmatprep.subr.mxu0 0.0
    %v3293 = vand.u32 %v160, 4294901760
    %v3294 = vsub.f32 %v160, %v3293
    %3295 = vmatpush2.msra.mxu0 %v3294
    %3296 = vmatprep.subr.mxu0 0.0
    %v3297 = vand.u32 %v159, 4294901760
    %v3298 = vsub.f32 %v159, %v3297
    %3299 = vmatpush2.msra.mxu0 %v3298
    %3300 = vmatprep.subr.mxu0 0.0
    %v3301 = vand.u32 %v158, 4294901760
    %v3302 = vsub.f32 %v158, %v3301
    %3303 = vmatpush2.msra.mxu0 %v3302
    %3304 = vmatprep.subr.mxu0 0.0
    %v3305 = vand.u32 %v157, 4294901760
    %v3306 = vsub.f32 %v157, %v3305
    %3307 = vmatpush2.msra.mxu0 %v3306
    %3308 = vmatprep.subr.mxu0 0.0
    %v3309 = vand.u32 %v156, 4294901760
    %v3310 = vsub.f32 %v156, %v3309
    %3311 = vmatpush2.msra.mxu0 %v3310
    %v3312 = vand.u32 %v245, 4294901760
    %v3313 = vsub.f32 %v245, %v3312
    %3314 = vmatprep.mubr.f32.mxu0 %v3313
    %v3315 = vand.u32 %v41, 4294901760
    %v3316 = vsub.f32 %v41, %v3315
    %3317 = vmatmul.mubr.f32.gmra.mxu0 %v3316
    %v3318 = vpop.f32.mrf.mxu0
    %v3319 = vadd.f32 %v3181, %v3318
    %v3320 = vpop.f32.mrf.mxu0
    %3321 = vdwg.mxu0
    %3322 = vmatprep.subr.mxu0 0.0
    %v3323 = vand.u32 %v155, 4294901760
    %3324 = vmatpush1.msra.mxu0 %v3323
    %3325 = vmatprep.subr.mxu0 0.0
    %v3326 = vand.u32 %v154, 4294901760
    %3327 = vmatpush1.msra.mxu0 %v3326
    %3328 = vmatprep.subr.mxu0 0.0
    %v3329 = vand.u32 %v153, 4294901760
    %3330 = vmatpush1.msra.mxu0 %v3329
    %3331 = vmatprep.subr.mxu0 0.0
    %v3332 = vand.u32 %v152, 4294901760
    %3333 = vmatpush1.msra.mxu0 %v3332
    %3334 = vmatprep.subr.mxu0 0.0
    %v3335 = vand.u32 %v151, 4294901760
    %3336 = vmatpush1.msra.mxu0 %v3335
    %3337 = vmatprep.subr.mxu0 0.0
    %v3338 = vand.u32 %v150, 4294901760
    %3339 = vmatpush1.msra.mxu0 %v3338
    %3340 = vmatprep.subr.mxu0 0.0
    %v3341 = vand.u32 %v149, 4294901760
    %3342 = vmatpush1.msra.mxu0 %v3341
    %3343 = vmatprep.subr.mxu0 0.0
    %v3344 = vand.u32 %v148, 4294901760
    %3345 = vmatpush1.msra.mxu0 %v3344
    %3346 = vmatprep.subr.mxu0 0.0
    %v3347 = vand.u32 %v147, 4294901760
    %3348 = vmatpush1.msra.mxu0 %v3347
    %3349 = vmatprep.subr.mxu0 0.0
    %v3350 = vand.u32 %v146, 4294901760
    %3351 = vmatpush1.msra.mxu0 %v3350
    %3352 = vmatprep.subr.mxu0 0.0
    %v3353 = vand.u32 %v145, 4294901760
    %3354 = vmatpush1.msra.mxu0 %v3353
    %3355 = vmatprep.subr.mxu0 0.0
    %v3356 = vand.u32 %v144, 4294901760
    %3357 = vmatpush1.msra.mxu0 %v3356
    %3358 = vmatprep.subr.mxu0 0.0
    %v3359 = vand.u32 %v143, 4294901760
    %3360 = vmatpush1.msra.mxu0 %v3359
    %3361 = vmatprep.subr.mxu0 0.0
    %v3362 = vand.u32 %v142, 4294901760
    %3363 = vmatpush1.msra.mxu0 %v3362
    %3364 = vmatprep.subr.mxu0 0.0
    %v3365 = vand.u32 %v141, 4294901760
    %3366 = vmatpush1.msra.mxu0 %v3365
    %3367 = vmatprep.subr.mxu0 0.0
    %v3368 = vand.u32 %v140, 4294901760
    %3369 = vmatpush1.msra.mxu0 %v3368
    %3370 = vmatprep.subr.mxu0 0.0
    %v3371 = vand.u32 %v171, 4294901760
    %3372 = vmatpush2.msra.mxu0 %v3371
    %3373 = vmatprep.subr.mxu0 0.0
    %v3374 = vand.u32 %v170, 4294901760
    %3375 = vmatpush2.msra.mxu0 %v3374
    %3376 = vmatprep.subr.mxu0 0.0
    %v3377 = vand.u32 %v169, 4294901760
    %3378 = vmatpush2.msra.mxu0 %v3377
    %3379 = vmatprep.subr.mxu0 0.0
    %v3380 = vand.u32 %v168, 4294901760
    %3381 = vmatpush2.msra.mxu0 %v3380
    %3382 = vmatprep.subr.mxu0 0.0
    %v3383 = vand.u32 %v167, 4294901760
    %3384 = vmatpush2.msra.mxu0 %v3383
    %3385 = vmatprep.subr.mxu0 0.0
    %v3386 = vand.u32 %v166, 4294901760
    %3387 = vmatpush2.msra.mxu0 %v3386
    %3388 = vmatprep.subr.mxu0 0.0
    %v3389 = vand.u32 %v165, 4294901760
    %3390 = vmatpush2.msra.mxu0 %v3389
    %3391 = vmatprep.subr.mxu0 0.0
    %v3392 = vand.u32 %v164, 4294901760
    %3393 = vmatpush2.msra.mxu0 %v3392
    %3394 = vmatprep.subr.mxu0 0.0
    %v3395 = vand.u32 %v163, 4294901760
    %3396 = vmatpush2.msra.mxu0 %v3395
    %3397 = vmatprep.subr.mxu0 0.0
    %v3398 = vand.u32 %v162, 4294901760
    %3399 = vmatpush2.msra.mxu0 %v3398
    %3400 = vmatprep.subr.mxu0 0.0
    %v3401 = vand.u32 %v161, 4294901760
    %3402 = vmatpush2.msra.mxu0 %v3401
    %3403 = vmatprep.subr.mxu0 0.0
    %v3404 = vand.u32 %v160, 4294901760
    %3405 = vmatpush2.msra.mxu0 %v3404
    %3406 = vmatprep.subr.mxu0 0.0
    %v3407 = vand.u32 %v159, 4294901760
    %3408 = vmatpush2.msra.mxu0 %v3407
    %3409 = vmatprep.subr.mxu0 0.0
    %v3410 = vand.u32 %v158, 4294901760
    %3411 = vmatpush2.msra.mxu0 %v3410
    %3412 = vmatprep.subr.mxu0 0.0
    %v3413 = vand.u32 %v157, 4294901760
    %3414 = vmatpush2.msra.mxu0 %v3413
    %3415 = vmatprep.subr.mxu0 0.0
    %v3416 = vand.u32 %v156, 4294901760
    %3417 = vmatpush2.msra.mxu0 %v3416
    %v3418 = vand.u32 %v245, 4294901760
    %v3419 = vsub.f32 %v245, %v3418
    %v3420 = vand.u32 %v3419, 4294901760
    %3421 = vmatprep.mubr.f32.mxu0 %v3420
    %v3422 = vand.u32 %v41, 4294901760
    %v3423 = vsub.f32 %v41, %v3422
    %v3424 = vand.u32 %v3423, 4294901760
    %3425 = vmatmul.mubr.f32.gmra.mxu0 %v3424
    %v3426 = vpop.f32.mrf.mxu0
    %v3427 = vadd.f32 %v3319, %v3426
    %v3428 = vpop.f32.mrf.mxu0
    %3429 = vdwg.mxu0
    %3430 = vmatprep.subr.mxu0 0.0
    %v3431 = vand.u32 %v155, 4294901760
    %v3432 = vsub.f32 %v155, %v3431
    %v3433 = vand.u32 %v3432, 4294901760
    %3434 = vmatpush1.msra.mxu0 %v3433
    %3435 = vmatprep.subr.mxu0 0.0
    %v3436 = vand.u32 %v154, 4294901760
    %v3437 = vsub.f32 %v154, %v3436
    %v3438 = vand.u32 %v3437, 4294901760
    %3439 = vmatpush1.msra.mxu0 %v3438
    %3440 = vmatprep.subr.mxu0 0.0
    %v3441 = vand.u32 %v153, 4294901760
    %v3442 = vsub.f32 %v153, %v3441
    %v3443 = vand.u32 %v3442, 4294901760
    %3444 = vmatpush1.msra.mxu0 %v3443
    %3445 = vmatprep.subr.mxu0 0.0
    %v3446 = vand.u32 %v152, 4294901760
    %v3447 = vsub.f32 %v152, %v3446
    %v3448 = vand.u32 %v3447, 4294901760
    %3449 = vmatpush1.msra.mxu0 %v3448
    %3450 = vmatprep.subr.mxu0 0.0
    %v3451 = vand.u32 %v151, 4294901760
    %v3452 = vsub.f32 %v151, %v3451
    %v3453 = vand.u32 %v3452, 4294901760
    %3454 = vmatpush1.msra.mxu0 %v3453
    %3455 = vmatprep.subr.mxu0 0.0
    %v3456 = vand.u32 %v150, 4294901760
    %v3457 = vsub.f32 %v150, %v3456
    %v3458 = vand.u32 %v3457, 4294901760
    %3459 = vmatpush1.msra.mxu0 %v3458
    %3460 = vmatprep.subr.mxu0 0.0
    %v3461 = vand.u32 %v149, 4294901760
    %v3462 = vsub.f32 %v149, %v3461
    %v3463 = vand.u32 %v3462, 4294901760
    %3464 = vmatpush1.msra.mxu0 %v3463
    %3465 = vmatprep.subr.mxu0 0.0
    %v3466 = vand.u32 %v148, 4294901760
    %v3467 = vsub.f32 %v148, %v3466
    %v3468 = vand.u32 %v3467, 4294901760
    %3469 = vmatpush1.msra.mxu0 %v3468
    %3470 = vmatprep.subr.mxu0 0.0
    %v3471 = vand.u32 %v147, 4294901760
    %v3472 = vsub.f32 %v147, %v3471
    %v3473 = vand.u32 %v3472, 4294901760
    %3474 = vmatpush1.msra.mxu0 %v3473
    %3475 = vmatprep.subr.mxu0 0.0
    %v3476 = vand.u32 %v146, 4294901760
    %v3477 = vsub.f32 %v146, %v3476
    %v3478 = vand.u32 %v3477, 4294901760
    %3479 = vmatpush1.msra.mxu0 %v3478
    %3480 = vmatprep.subr.mxu0 0.0
    %v3481 = vand.u32 %v145, 4294901760
    %v3482 = vsub.f32 %v145, %v3481
    %v3483 = vand.u32 %v3482, 4294901760
    %3484 = vmatpush1.msra.mxu0 %v3483
    %3485 = vmatprep.subr.mxu0 0.0
    %v3486 = vand.u32 %v144, 4294901760
    %v3487 = vsub.f32 %v144, %v3486
    %v3488 = vand.u32 %v3487, 4294901760
    %3489 = vmatpush1.msra.mxu0 %v3488
    %3490 = vmatprep.subr.mxu0 0.0
    %v3491 = vand.u32 %v143, 4294901760
    %v3492 = vsub.f32 %v143, %v3491
    %v3493 = vand.u32 %v3492, 4294901760
    %3494 = vmatpush1.msra.mxu0 %v3493
    %3495 = vmatprep.subr.mxu0 0.0
    %v3496 = vand.u32 %v142, 4294901760
    %v3497 = vsub.f32 %v142, %v3496
    %v3498 = vand.u32 %v3497, 4294901760
    %3499 = vmatpush1.msra.mxu0 %v3498
    %3500 = vmatprep.subr.mxu0 0.0
    %v3501 = vand.u32 %v141, 4294901760
    %v3502 = vsub.f32 %v141, %v3501
    %v3503 = vand.u32 %v3502, 4294901760
    %3504 = vmatpush1.msra.mxu0 %v3503
    %3505 = vmatprep.subr.mxu0 0.0
    %v3506 = vand.u32 %v140, 4294901760
    %v3507 = vsub.f32 %v140, %v3506
    %v3508 = vand.u32 %v3507, 4294901760
    %3509 = vmatpush1.msra.mxu0 %v3508
    %3510 = vmatprep.subr.mxu0 0.0
    %v3511 = vand.u32 %v171, 4294901760
    %v3512 = vsub.f32 %v171, %v3511
    %v3513 = vand.u32 %v3512, 4294901760
    %3514 = vmatpush2.msra.mxu0 %v3513
    %3515 = vmatprep.subr.mxu0 0.0
    %v3516 = vand.u32 %v170, 4294901760
    %v3517 = vsub.f32 %v170, %v3516
    %v3518 = vand.u32 %v3517, 4294901760
    %3519 = vmatpush2.msra.mxu0 %v3518
    %3520 = vmatprep.subr.mxu0 0.0
    %v3521 = vand.u32 %v169, 4294901760
    %v3522 = vsub.f32 %v169, %v3521
    %v3523 = vand.u32 %v3522, 4294901760
    %3524 = vmatpush2.msra.mxu0 %v3523
    %3525 = vmatprep.subr.mxu0 0.0
    %v3526 = vand.u32 %v168, 4294901760
    %v3527 = vsub.f32 %v168, %v3526
    %v3528 = vand.u32 %v3527, 4294901760
    %3529 = vmatpush2.msra.mxu0 %v3528
    %3530 = vmatprep.subr.mxu0 0.0
    %v3531 = vand.u32 %v167, 4294901760
    %v3532 = vsub.f32 %v167, %v3531
    %v3533 = vand.u32 %v3532, 4294901760
    %3534 = vmatpush2.msra.mxu0 %v3533
    %3535 = vmatprep.subr.mxu0 0.0
    %v3536 = vand.u32 %v166, 4294901760
    %v3537 = vsub.f32 %v166, %v3536
    %v3538 = vand.u32 %v3537, 4294901760
    %3539 = vmatpush2.msra.mxu0 %v3538
    %3540 = vmatprep.subr.mxu0 0.0
    %v3541 = vand.u32 %v165, 4294901760
    %v3542 = vsub.f32 %v165, %v3541
    %v3543 = vand.u32 %v3542, 4294901760
    %3544 = vmatpush2.msra.mxu0 %v3543
    %3545 = vmatprep.subr.mxu0 0.0
    %v3546 = vand.u32 %v164, 4294901760
    %v3547 = vsub.f32 %v164, %v3546
    %v3548 = vand.u32 %v3547, 4294901760
    %3549 = vmatpush2.msra.mxu0 %v3548
    %3550 = vmatprep.subr.mxu0 0.0
    %v3551 = vand.u32 %v163, 4294901760
    %v3552 = vsub.f32 %v163, %v3551
    %v3553 = vand.u32 %v3552, 4294901760
    %3554 = vmatpush2.msra.mxu0 %v3553
    %3555 = vmatprep.subr.mxu0 0.0
    %v3556 = vand.u32 %v162, 4294901760
    %v3557 = vsub.f32 %v162, %v3556
    %v3558 = vand.u32 %v3557, 4294901760
    %3559 = vmatpush2.msra.mxu0 %v3558
    %3560 = vmatprep.subr.mxu0 0.0
    %v3561 = vand.u32 %v161, 4294901760
    %v3562 = vsub.f32 %v161, %v3561
    %v3563 = vand.u32 %v3562, 4294901760
    %3564 = vmatpush2.msra.mxu0 %v3563
    %3565 = vmatprep.subr.mxu0 0.0
    %v3566 = vand.u32 %v160, 4294901760
    %v3567 = vsub.f32 %v160, %v3566
    %v3568 = vand.u32 %v3567, 4294901760
    %3569 = vmatpush2.msra.mxu0 %v3568
    %3570 = vmatprep.subr.mxu0 0.0
    %v3571 = vand.u32 %v159, 4294901760
    %v3572 = vsub.f32 %v159, %v3571
    %v3573 = vand.u32 %v3572, 4294901760
    %3574 = vmatpush2.msra.mxu0 %v3573
    %3575 = vmatprep.subr.mxu0 0.0
    %v3576 = vand.u32 %v158, 4294901760
    %v3577 = vsub.f32 %v158, %v3576
    %v3578 = vand.u32 %v3577, 4294901760
    %3579 = vmatpush2.msra.mxu0 %v3578
    %3580 = vmatprep.subr.mxu0 0.0
    %v3581 = vand.u32 %v157, 4294901760
    %v3582 = vsub.f32 %v157, %v3581
    %v3583 = vand.u32 %v3582, 4294901760
    %3584 = vmatpush2.msra.mxu0 %v3583
    %3585 = vmatprep.subr.mxu0 0.0
    %v3586 = vand.u32 %v156, 4294901760
    %v3587 = vsub.f32 %v156, %v3586
    %v3588 = vand.u32 %v3587, 4294901760
    %3589 = vmatpush2.msra.mxu0 %v3588
    %v3590 = vand.u32 %v245, 4294901760
    %3591 = vmatprep.mubr.f32.mxu0 %v3590
    %v3592 = vand.u32 %v41, 4294901760
    %3593 = vmatmul.mubr.f32.gmra.mxu0 %v3592
    %v3594 = vpop.f32.mrf.mxu0
    %v3595 = vadd.f32 %v3427, %v3594
    %v3596 = vpop.f32.mrf.mxu0
    %3597 = vdwg.mxu0
    %3598 = vmatprep.subr.mxu0 0.0
    %v3599 = vand.u32 %v155, 4294901760
    %3600 = vmatpush1.msra.mxu0 %v3599
    %3601 = vmatprep.subr.mxu0 0.0
    %v3602 = vand.u32 %v154, 4294901760
    %3603 = vmatpush1.msra.mxu0 %v3602
    %3604 = vmatprep.subr.mxu0 0.0
    %v3605 = vand.u32 %v153, 4294901760
    %3606 = vmatpush1.msra.mxu0 %v3605
    %3607 = vmatprep.subr.mxu0 0.0
    %v3608 = vand.u32 %v152, 4294901760
    %3609 = vmatpush1.msra.mxu0 %v3608
    %3610 = vmatprep.subr.mxu0 0.0
    %v3611 = vand.u32 %v151, 4294901760
    %3612 = vmatpush1.msra.mxu0 %v3611
    %3613 = vmatprep.subr.mxu0 0.0
    %v3614 = vand.u32 %v150, 4294901760
    %3615 = vmatpush1.msra.mxu0 %v3614
    %3616 = vmatprep.subr.mxu0 0.0
    %v3617 = vand.u32 %v149, 4294901760
    %3618 = vmatpush1.msra.mxu0 %v3617
    %3619 = vmatprep.subr.mxu0 0.0
    %v3620 = vand.u32 %v148, 4294901760
    %3621 = vmatpush1.msra.mxu0 %v3620
    %3622 = vmatprep.subr.mxu0 0.0
    %v3623 = vand.u32 %v147, 4294901760
    %3624 = vmatpush1.msra.mxu0 %v3623
    %3625 = vmatprep.subr.mxu0 0.0
    %v3626 = vand.u32 %v146, 4294901760
    %3627 = vmatpush1.msra.mxu0 %v3626
    %3628 = vmatprep.subr.mxu0 0.0
    %v3629 = vand.u32 %v145, 4294901760
    %3630 = vmatpush1.msra.mxu0 %v3629
    %3631 = vmatprep.subr.mxu0 0.0
    %v3632 = vand.u32 %v144, 4294901760
    %3633 = vmatpush1.msra.mxu0 %v3632
    %3634 = vmatprep.subr.mxu0 0.0
    %v3635 = vand.u32 %v143, 4294901760
    %3636 = vmatpush1.msra.mxu0 %v3635
    %3637 = vmatprep.subr.mxu0 0.0
    %v3638 = vand.u32 %v142, 4294901760
    %3639 = vmatpush1.msra.mxu0 %v3638
    %3640 = vmatprep.subr.mxu0 0.0
    %v3641 = vand.u32 %v141, 4294901760
    %3642 = vmatpush1.msra.mxu0 %v3641
    %3643 = vmatprep.subr.mxu0 0.0
    %v3644 = vand.u32 %v140, 4294901760
    %3645 = vmatpush1.msra.mxu0 %v3644
    %3646 = vmatprep.subr.mxu0 0.0
    %v3647 = vand.u32 %v171, 4294901760
    %3648 = vmatpush2.msra.mxu0 %v3647
    %3649 = vmatprep.subr.mxu0 0.0
    %v3650 = vand.u32 %v170, 4294901760
    %3651 = vmatpush2.msra.mxu0 %v3650
    %3652 = vmatprep.subr.mxu0 0.0
    %v3653 = vand.u32 %v169, 4294901760
    %3654 = vmatpush2.msra.mxu0 %v3653
    %3655 = vmatprep.subr.mxu0 0.0
    %v3656 = vand.u32 %v168, 4294901760
    %3657 = vmatpush2.msra.mxu0 %v3656
    %3658 = vmatprep.subr.mxu0 0.0
    %v3659 = vand.u32 %v167, 4294901760
    %3660 = vmatpush2.msra.mxu0 %v3659
    %3661 = vmatprep.subr.mxu0 0.0
    %v3662 = vand.u32 %v166, 4294901760
    %3663 = vmatpush2.msra.mxu0 %v3662
    %3664 = vmatprep.subr.mxu0 0.0
    %v3665 = vand.u32 %v165, 4294901760
    %3666 = vmatpush2.msra.mxu0 %v3665
    %3667 = vmatprep.subr.mxu0 0.0
    %v3668 = vand.u32 %v164, 4294901760
    %3669 = vmatpush2.msra.mxu0 %v3668
    %3670 = vmatprep.subr.mxu0 0.0
    %v3671 = vand.u32 %v163, 4294901760
    %3672 = vmatpush2.msra.mxu0 %v3671
    %3673 = vmatprep.subr.mxu0 0.0
    %v3674 = vand.u32 %v162, 4294901760
    %3675 = vmatpush2.msra.mxu0 %v3674
    %3676 = vmatprep.subr.mxu0 0.0
    %v3677 = vand.u32 %v161, 4294901760
    %3678 = vmatpush2.msra.mxu0 %v3677
    %3679 = vmatprep.subr.mxu0 0.0
    %v3680 = vand.u32 %v160, 4294901760
    %3681 = vmatpush2.msra.mxu0 %v3680
    %3682 = vmatprep.subr.mxu0 0.0
    %v3683 = vand.u32 %v159, 4294901760
    %3684 = vmatpush2.msra.mxu0 %v3683
    %3685 = vmatprep.subr.mxu0 0.0
    %v3686 = vand.u32 %v158, 4294901760
    %3687 = vmatpush2.msra.mxu0 %v3686
    %3688 = vmatprep.subr.mxu0 0.0
    %v3689 = vand.u32 %v157, 4294901760
    %3690 = vmatpush2.msra.mxu0 %v3689
    %3691 = vmatprep.subr.mxu0 0.0
    %v3692 = vand.u32 %v156, 4294901760
    %3693 = vmatpush2.msra.mxu0 %v3692
    %v3694 = vand.u32 %v245, 4294901760
    %3695 = vmatprep.mubr.f32.mxu0 %v3694
    %v3696 = vand.u32 %v41, 4294901760
    %3697 = vmatmul.mubr.f32.gmra.mxu0 %v3696
    %v3698 = vpop.f32.mrf.mxu0
    %v3699 = vadd.f32 %v3595, %v3698
    %v3700 = vpop.f32.mrf.mxu0
    %3701 = vdwg.mxu0
    %3702 = vmatprep.subr.mxu0 0.0
    %v3703 = vand.u32 %v187, 4294901760
    %3704 = vmatpush1.msra.mxu0 %v3703
    %3705 = vmatprep.subr.mxu0 0.0
    %v3706 = vand.u32 %v186, 4294901760
    %3707 = vmatpush1.msra.mxu0 %v3706
    %3708 = vmatprep.subr.mxu0 0.0
    %v3709 = vand.u32 %v185, 4294901760
    %3710 = vmatpush1.msra.mxu0 %v3709
    %3711 = vmatprep.subr.mxu0 0.0
    %v3712 = vand.u32 %v184, 4294901760
    %3713 = vmatpush1.msra.mxu0 %v3712
    %3714 = vmatprep.subr.mxu0 0.0
    %v3715 = vand.u32 %v183, 4294901760
    %3716 = vmatpush1.msra.mxu0 %v3715
    %3717 = vmatprep.subr.mxu0 0.0
    %v3718 = vand.u32 %v182, 4294901760
    %3719 = vmatpush1.msra.mxu0 %v3718
    %3720 = vmatprep.subr.mxu0 0.0
    %v3721 = vand.u32 %v181, 4294901760
    %3722 = vmatpush1.msra.mxu0 %v3721
    %3723 = vmatprep.subr.mxu0 0.0
    %v3724 = vand.u32 %v180, 4294901760
    %3725 = vmatpush1.msra.mxu0 %v3724
    %3726 = vmatprep.subr.mxu0 0.0
    %v3727 = vand.u32 %v179, 4294901760
    %3728 = vmatpush1.msra.mxu0 %v3727
    %3729 = vmatprep.subr.mxu0 0.0
    %v3730 = vand.u32 %v178, 4294901760
    %3731 = vmatpush1.msra.mxu0 %v3730
    %3732 = vmatprep.subr.mxu0 0.0
    %v3733 = vand.u32 %v177, 4294901760
    %3734 = vmatpush1.msra.mxu0 %v3733
    %3735 = vmatprep.subr.mxu0 0.0
    %v3736 = vand.u32 %v176, 4294901760
    %3737 = vmatpush1.msra.mxu0 %v3736
    %3738 = vmatprep.subr.mxu0 0.0
    %v3739 = vand.u32 %v175, 4294901760
    %3740 = vmatpush1.msra.mxu0 %v3739
    %3741 = vmatprep.subr.mxu0 0.0
    %v3742 = vand.u32 %v174, 4294901760
    %3743 = vmatpush1.msra.mxu0 %v3742
    %3744 = vmatprep.subr.mxu0 0.0
    %v3745 = vand.u32 %v173, 4294901760
    %3746 = vmatpush1.msra.mxu0 %v3745
    %3747 = vmatprep.subr.mxu0 0.0
    %v3748 = vand.u32 %v172, 4294901760
    %3749 = vmatpush1.msra.mxu0 %v3748
    %3750 = vmatprep.subr.mxu0 0.0
    %v3751 = vand.u32 %v203, 4294901760
    %3752 = vmatpush2.msra.mxu0 %v3751
    %3753 = vmatprep.subr.mxu0 0.0
    %v3754 = vand.u32 %v202, 4294901760
    %3755 = vmatpush2.msra.mxu0 %v3754
    %3756 = vmatprep.subr.mxu0 0.0
    %v3757 = vand.u32 %v201, 4294901760
    %3758 = vmatpush2.msra.mxu0 %v3757
    %3759 = vmatprep.subr.mxu0 0.0
    %v3760 = vand.u32 %v200, 4294901760
    %3761 = vmatpush2.msra.mxu0 %v3760
    %3762 = vmatprep.subr.mxu0 0.0
    %v3763 = vand.u32 %v199, 4294901760
    %3764 = vmatpush2.msra.mxu0 %v3763
    %3765 = vmatprep.subr.mxu0 0.0
    %v3766 = vand.u32 %v198, 4294901760
    %3767 = vmatpush2.msra.mxu0 %v3766
    %3768 = vmatprep.subr.mxu0 0.0
    %v3769 = vand.u32 %v197, 4294901760
    %3770 = vmatpush2.msra.mxu0 %v3769
    %3771 = vmatprep.subr.mxu0 0.0
    %v3772 = vand.u32 %v196, 4294901760
    %3773 = vmatpush2.msra.mxu0 %v3772
    %3774 = vmatprep.subr.mxu0 0.0
    %v3775 = vand.u32 %v195, 4294901760
    %3776 = vmatpush2.msra.mxu0 %v3775
    %3777 = vmatprep.subr.mxu0 0.0
    %v3778 = vand.u32 %v194, 4294901760
    %3779 = vmatpush2.msra.mxu0 %v3778
    %3780 = vmatprep.subr.mxu0 0.0
    %v3781 = vand.u32 %v193, 4294901760
    %3782 = vmatpush2.msra.mxu0 %v3781
    %3783 = vmatprep.subr.mxu0 0.0
    %v3784 = vand.u32 %v192, 4294901760
    %3785 = vmatpush2.msra.mxu0 %v3784
    %3786 = vmatprep.subr.mxu0 0.0
    %v3787 = vand.u32 %v191, 4294901760
    %3788 = vmatpush2.msra.mxu0 %v3787
    %3789 = vmatprep.subr.mxu0 0.0
    %v3790 = vand.u32 %v190, 4294901760
    %3791 = vmatpush2.msra.mxu0 %v3790
    %3792 = vmatprep.subr.mxu0 0.0
    %v3793 = vand.u32 %v189, 4294901760
    %3794 = vmatpush2.msra.mxu0 %v3793
    %3795 = vmatprep.subr.mxu0 0.0
    %v3796 = vand.u32 %v188, 4294901760
    %3797 = vmatpush2.msra.mxu0 %v3796
    %v3798 = vand.u32 %v246, 4294901760
    %v3799 = vsub.f32 %v246, %v3798
    %v3800 = vand.u32 %v3799, 4294901760
    %v3801 = vsub.f32 %v3799, %v3800
    %v3802 = vand.u32 %v3801, 4294901760
    %3803 = vmatprep.mubr.f32.mxu0 %v3802
    %v3804 = vand.u32 %v42, 4294901760
    %v3805 = vsub.f32 %v42, %v3804
    %v3806 = vand.u32 %v3805, 4294901760
    %v3807 = vsub.f32 %v3805, %v3806
    %v3808 = vand.u32 %v3807, 4294901760
    %3809 = vmatmul.mubr.f32.gmra.mxu0 %v3808
    %v3810 = vpop.f32.mrf.mxu0
    %v3811 = vadd.f32 %v3699, %v3810
    %v3812 = vpop.f32.mrf.mxu0
    %3813 = vdwg.mxu0
    %3814 = vmatprep.subr.mxu0 0.0
    %v3815 = vand.u32 %v187, 4294901760
    %v3816 = vsub.f32 %v187, %v3815
    %v3817 = vand.u32 %v3816, 4294901760
    %v3818 = vsub.f32 %v3816, %v3817
    %v3819 = vand.u32 %v3818, 4294901760
    %3820 = vmatpush1.msra.mxu0 %v3819
    %3821 = vmatprep.subr.mxu0 0.0
    %v3822 = vand.u32 %v186, 4294901760
    %v3823 = vsub.f32 %v186, %v3822
    %v3824 = vand.u32 %v3823, 4294901760
    %v3825 = vsub.f32 %v3823, %v3824
    %v3826 = vand.u32 %v3825, 4294901760
    %3827 = vmatpush1.msra.mxu0 %v3826
    %3828 = vmatprep.subr.mxu0 0.0
    %v3829 = vand.u32 %v185, 4294901760
    %v3830 = vsub.f32 %v185, %v3829
    %v3831 = vand.u32 %v3830, 4294901760
    %v3832 = vsub.f32 %v3830, %v3831
    %v3833 = vand.u32 %v3832, 4294901760
    %3834 = vmatpush1.msra.mxu0 %v3833
    %3835 = vmatprep.subr.mxu0 0.0
    %v3836 = vand.u32 %v184, 4294901760
    %v3837 = vsub.f32 %v184, %v3836
    %v3838 = vand.u32 %v3837, 4294901760
    %v3839 = vsub.f32 %v3837, %v3838
    %v3840 = vand.u32 %v3839, 4294901760
    %3841 = vmatpush1.msra.mxu0 %v3840
    %3842 = vmatprep.subr.mxu0 0.0
    %v3843 = vand.u32 %v183, 4294901760
    %v3844 = vsub.f32 %v183, %v3843
    %v3845 = vand.u32 %v3844, 4294901760
    %v3846 = vsub.f32 %v3844, %v3845
    %v3847 = vand.u32 %v3846, 4294901760
    %3848 = vmatpush1.msra.mxu0 %v3847
    %3849 = vmatprep.subr.mxu0 0.0
    %v3850 = vand.u32 %v182, 4294901760
    %v3851 = vsub.f32 %v182, %v3850
    %v3852 = vand.u32 %v3851, 4294901760
    %v3853 = vsub.f32 %v3851, %v3852
    %v3854 = vand.u32 %v3853, 4294901760
    %3855 = vmatpush1.msra.mxu0 %v3854
    %3856 = vmatprep.subr.mxu0 0.0
    %v3857 = vand.u32 %v181, 4294901760
    %v3858 = vsub.f32 %v181, %v3857
    %v3859 = vand.u32 %v3858, 4294901760
    %v3860 = vsub.f32 %v3858, %v3859
    %v3861 = vand.u32 %v3860, 4294901760
    %3862 = vmatpush1.msra.mxu0 %v3861
    %3863 = vmatprep.subr.mxu0 0.0
    %v3864 = vand.u32 %v180, 4294901760
    %v3865 = vsub.f32 %v180, %v3864
    %v3866 = vand.u32 %v3865, 4294901760
    %v3867 = vsub.f32 %v3865, %v3866
    %v3868 = vand.u32 %v3867, 4294901760
    %3869 = vmatpush1.msra.mxu0 %v3868
    %3870 = vmatprep.subr.mxu0 0.0
    %v3871 = vand.u32 %v179, 4294901760
    %v3872 = vsub.f32 %v179, %v3871
    %v3873 = vand.u32 %v3872, 4294901760
    %v3874 = vsub.f32 %v3872, %v3873
    %v3875 = vand.u32 %v3874, 4294901760
    %3876 = vmatpush1.msra.mxu0 %v3875
    %3877 = vmatprep.subr.mxu0 0.0
    %v3878 = vand.u32 %v178, 4294901760
    %v3879 = vsub.f32 %v178, %v3878
    %v3880 = vand.u32 %v3879, 4294901760
    %v3881 = vsub.f32 %v3879, %v3880
    %v3882 = vand.u32 %v3881, 4294901760
    %3883 = vmatpush1.msra.mxu0 %v3882
    %3884 = vmatprep.subr.mxu0 0.0
    %v3885 = vand.u32 %v177, 4294901760
    %v3886 = vsub.f32 %v177, %v3885
    %v3887 = vand.u32 %v3886, 4294901760
    %v3888 = vsub.f32 %v3886, %v3887
    %v3889 = vand.u32 %v3888, 4294901760
    %3890 = vmatpush1.msra.mxu0 %v3889
    %3891 = vmatprep.subr.mxu0 0.0
    %v3892 = vand.u32 %v176, 4294901760
    %v3893 = vsub.f32 %v176, %v3892
    %v3894 = vand.u32 %v3893, 4294901760
    %v3895 = vsub.f32 %v3893, %v3894
    %v3896 = vand.u32 %v3895, 4294901760
    %3897 = vmatpush1.msra.mxu0 %v3896
    %3898 = vmatprep.subr.mxu0 0.0
    %v3899 = vand.u32 %v175, 4294901760
    %v3900 = vsub.f32 %v175, %v3899
    %v3901 = vand.u32 %v3900, 4294901760
    %v3902 = vsub.f32 %v3900, %v3901
    %v3903 = vand.u32 %v3902, 4294901760
    %3904 = vmatpush1.msra.mxu0 %v3903
    %3905 = vmatprep.subr.mxu0 0.0
    %v3906 = vand.u32 %v174, 4294901760
    %v3907 = vsub.f32 %v174, %v3906
    %v3908 = vand.u32 %v3907, 4294901760
    %v3909 = vsub.f32 %v3907, %v3908
    %v3910 = vand.u32 %v3909, 4294901760
    %3911 = vmatpush1.msra.mxu0 %v3910
    %3912 = vmatprep.subr.mxu0 0.0
    %v3913 = vand.u32 %v173, 4294901760
    %v3914 = vsub.f32 %v173, %v3913
    %v3915 = vand.u32 %v3914, 4294901760
    %v3916 = vsub.f32 %v3914, %v3915
    %v3917 = vand.u32 %v3916, 4294901760
    %3918 = vmatpush1.msra.mxu0 %v3917
    %3919 = vmatprep.subr.mxu0 0.0
    %v3920 = vand.u32 %v172, 4294901760
    %v3921 = vsub.f32 %v172, %v3920
    %v3922 = vand.u32 %v3921, 4294901760
    %v3923 = vsub.f32 %v3921, %v3922
    %v3924 = vand.u32 %v3923, 4294901760
    %3925 = vmatpush1.msra.mxu0 %v3924
    %3926 = vmatprep.subr.mxu0 0.0
    %v3927 = vand.u32 %v203, 4294901760
    %v3928 = vsub.f32 %v203, %v3927
    %v3929 = vand.u32 %v3928, 4294901760
    %v3930 = vsub.f32 %v3928, %v3929
    %v3931 = vand.u32 %v3930, 4294901760
    %3932 = vmatpush2.msra.mxu0 %v3931
    %3933 = vmatprep.subr.mxu0 0.0
    %v3934 = vand.u32 %v202, 4294901760
    %v3935 = vsub.f32 %v202, %v3934
    %v3936 = vand.u32 %v3935, 4294901760
    %v3937 = vsub.f32 %v3935, %v3936
    %v3938 = vand.u32 %v3937, 4294901760
    %3939 = vmatpush2.msra.mxu0 %v3938
    %3940 = vmatprep.subr.mxu0 0.0
    %v3941 = vand.u32 %v201, 4294901760
    %v3942 = vsub.f32 %v201, %v3941
    %v3943 = vand.u32 %v3942, 4294901760
    %v3944 = vsub.f32 %v3942, %v3943
    %v3945 = vand.u32 %v3944, 4294901760
    %3946 = vmatpush2.msra.mxu0 %v3945
    %3947 = vmatprep.subr.mxu0 0.0
    %v3948 = vand.u32 %v200, 4294901760
    %v3949 = vsub.f32 %v200, %v3948
    %v3950 = vand.u32 %v3949, 4294901760
    %v3951 = vsub.f32 %v3949, %v3950
    %v3952 = vand.u32 %v3951, 4294901760
    %3953 = vmatpush2.msra.mxu0 %v3952
    %3954 = vmatprep.subr.mxu0 0.0
    %v3955 = vand.u32 %v199, 4294901760
    %v3956 = vsub.f32 %v199, %v3955
    %v3957 = vand.u32 %v3956, 4294901760
    %v3958 = vsub.f32 %v3956, %v3957
    %v3959 = vand.u32 %v3958, 4294901760
    %3960 = vmatpush2.msra.mxu0 %v3959
    %3961 = vmatprep.subr.mxu0 0.0
    %v3962 = vand.u32 %v198, 4294901760
    %v3963 = vsub.f32 %v198, %v3962
    %v3964 = vand.u32 %v3963, 4294901760
    %v3965 = vsub.f32 %v3963, %v3964
    %v3966 = vand.u32 %v3965, 4294901760
    %3967 = vmatpush2.msra.mxu0 %v3966
    %3968 = vmatprep.subr.mxu0 0.0
    %v3969 = vand.u32 %v197, 4294901760
    %v3970 = vsub.f32 %v197, %v3969
    %v3971 = vand.u32 %v3970, 4294901760
    %v3972 = vsub.f32 %v3970, %v3971
    %v3973 = vand.u32 %v3972, 4294901760
    %3974 = vmatpush2.msra.mxu0 %v3973
    %3975 = vmatprep.subr.mxu0 0.0
    %v3976 = vand.u32 %v196, 4294901760
    %v3977 = vsub.f32 %v196, %v3976
    %v3978 = vand.u32 %v3977, 4294901760
    %v3979 = vsub.f32 %v3977, %v3978
    %v3980 = vand.u32 %v3979, 4294901760
    %3981 = vmatpush2.msra.mxu0 %v3980
    %3982 = vmatprep.subr.mxu0 0.0
    %v3983 = vand.u32 %v195, 4294901760
    %v3984 = vsub.f32 %v195, %v3983
    %v3985 = vand.u32 %v3984, 4294901760
    %v3986 = vsub.f32 %v3984, %v3985
    %v3987 = vand.u32 %v3986, 4294901760
    %3988 = vmatpush2.msra.mxu0 %v3987
    %3989 = vmatprep.subr.mxu0 0.0
    %v3990 = vand.u32 %v194, 4294901760
    %v3991 = vsub.f32 %v194, %v3990
    %v3992 = vand.u32 %v3991, 4294901760
    %v3993 = vsub.f32 %v3991, %v3992
    %v3994 = vand.u32 %v3993, 4294901760
    %3995 = vmatpush2.msra.mxu0 %v3994
    %3996 = vmatprep.subr.mxu0 0.0
    %v3997 = vand.u32 %v193, 4294901760
    %v3998 = vsub.f32 %v193, %v3997
    %v3999 = vand.u32 %v3998, 4294901760
    %v4000 = vsub.f32 %v3998, %v3999
    %v4001 = vand.u32 %v4000, 4294901760
    %4002 = vmatpush2.msra.mxu0 %v4001
    %4003 = vmatprep.subr.mxu0 0.0
    %v4004 = vand.u32 %v192, 4294901760
    %v4005 = vsub.f32 %v192, %v4004
    %v4006 = vand.u32 %v4005, 4294901760
    %v4007 = vsub.f32 %v4005, %v4006
    %v4008 = vand.u32 %v4007, 4294901760
    %4009 = vmatpush2.msra.mxu0 %v4008
    %4010 = vmatprep.subr.mxu0 0.0
    %v4011 = vand.u32 %v191, 4294901760
    %v4012 = vsub.f32 %v191, %v4011
    %v4013 = vand.u32 %v4012, 4294901760
    %v4014 = vsub.f32 %v4012, %v4013
    %v4015 = vand.u32 %v4014, 4294901760
    %4016 = vmatpush2.msra.mxu0 %v4015
    %4017 = vmatprep.subr.mxu0 0.0
    %v4018 = vand.u32 %v190, 4294901760
    %v4019 = vsub.f32 %v190, %v4018
    %v4020 = vand.u32 %v4019, 4294901760
    %v4021 = vsub.f32 %v4019, %v4020
    %v4022 = vand.u32 %v4021, 4294901760
    %4023 = vmatpush2.msra.mxu0 %v4022
    %4024 = vmatprep.subr.mxu0 0.0
    %v4025 = vand.u32 %v189, 4294901760
    %v4026 = vsub.f32 %v189, %v4025
    %v4027 = vand.u32 %v4026, 4294901760
    %v4028 = vsub.f32 %v4026, %v4027
    %v4029 = vand.u32 %v4028, 4294901760
    %4030 = vmatpush2.msra.mxu0 %v4029
    %4031 = vmatprep.subr.mxu0 0.0
    %v4032 = vand.u32 %v188, 4294901760
    %v4033 = vsub.f32 %v188, %v4032
    %v4034 = vand.u32 %v4033, 4294901760
    %v4035 = vsub.f32 %v4033, %v4034
    %v4036 = vand.u32 %v4035, 4294901760
    %4037 = vmatpush2.msra.mxu0 %v4036
    %v4038 = vand.u32 %v246, 4294901760
    %4039 = vmatprep.mubr.f32.mxu0 %v4038
    %v4040 = vand.u32 %v42, 4294901760
    %4041 = vmatmul.mubr.f32.gmra.mxu0 %v4040
    %v4042 = vpop.f32.mrf.mxu0
    %v4043 = vadd.f32 %v3811, %v4042
    %v4044 = vpop.f32.mrf.mxu0
    %4045 = vdwg.mxu0
    %4046 = vmatprep.subr.mxu0 0.0
    %v4047 = vand.u32 %v187, 4294901760
    %v4048 = vsub.f32 %v187, %v4047
    %4049 = vmatpush1.msra.mxu0 %v4048
    %4050 = vmatprep.subr.mxu0 0.0
    %v4051 = vand.u32 %v186, 4294901760
    %v4052 = vsub.f32 %v186, %v4051
    %4053 = vmatpush1.msra.mxu0 %v4052
    %4054 = vmatprep.subr.mxu0 0.0
    %v4055 = vand.u32 %v185, 4294901760
    %v4056 = vsub.f32 %v185, %v4055
    %4057 = vmatpush1.msra.mxu0 %v4056
    %4058 = vmatprep.subr.mxu0 0.0
    %v4059 = vand.u32 %v184, 4294901760
    %v4060 = vsub.f32 %v184, %v4059
    %4061 = vmatpush1.msra.mxu0 %v4060
    %4062 = vmatprep.subr.mxu0 0.0
    %v4063 = vand.u32 %v183, 4294901760
    %v4064 = vsub.f32 %v183, %v4063
    %4065 = vmatpush1.msra.mxu0 %v4064
    %4066 = vmatprep.subr.mxu0 0.0
    %v4067 = vand.u32 %v182, 4294901760
    %v4068 = vsub.f32 %v182, %v4067
    %4069 = vmatpush1.msra.mxu0 %v4068
    %4070 = vmatprep.subr.mxu0 0.0
    %v4071 = vand.u32 %v181, 4294901760
    %v4072 = vsub.f32 %v181, %v4071
    %4073 = vmatpush1.msra.mxu0 %v4072
    %4074 = vmatprep.subr.mxu0 0.0
    %v4075 = vand.u32 %v180, 4294901760
    %v4076 = vsub.f32 %v180, %v4075
    %4077 = vmatpush1.msra.mxu0 %v4076
    %4078 = vmatprep.subr.mxu0 0.0
    %v4079 = vand.u32 %v179, 4294901760
    %v4080 = vsub.f32 %v179, %v4079
    %4081 = vmatpush1.msra.mxu0 %v4080
    %4082 = vmatprep.subr.mxu0 0.0
    %v4083 = vand.u32 %v178, 4294901760
    %v4084 = vsub.f32 %v178, %v4083
    %4085 = vmatpush1.msra.mxu0 %v4084
    %4086 = vmatprep.subr.mxu0 0.0
    %v4087 = vand.u32 %v177, 4294901760
    %v4088 = vsub.f32 %v177, %v4087
    %4089 = vmatpush1.msra.mxu0 %v4088
    %4090 = vmatprep.subr.mxu0 0.0
    %v4091 = vand.u32 %v176, 4294901760
    %v4092 = vsub.f32 %v176, %v4091
    %4093 = vmatpush1.msra.mxu0 %v4092
    %4094 = vmatprep.subr.mxu0 0.0
    %v4095 = vand.u32 %v175, 4294901760
    %v4096 = vsub.f32 %v175, %v4095
    %4097 = vmatpush1.msra.mxu0 %v4096
    %4098 = vmatprep.subr.mxu0 0.0
    %v4099 = vand.u32 %v174, 4294901760
    %v4100 = vsub.f32 %v174, %v4099
    %4101 = vmatpush1.msra.mxu0 %v4100
    %4102 = vmatprep.subr.mxu0 0.0
    %v4103 = vand.u32 %v173, 4294901760
    %v4104 = vsub.f32 %v173, %v4103
    %4105 = vmatpush1.msra.mxu0 %v4104
    %4106 = vmatprep.subr.mxu0 0.0
    %v4107 = vand.u32 %v172, 4294901760
    %v4108 = vsub.f32 %v172, %v4107
    %4109 = vmatpush1.msra.mxu0 %v4108
    %4110 = vmatprep.subr.mxu0 0.0
    %v4111 = vand.u32 %v203, 4294901760
    %v4112 = vsub.f32 %v203, %v4111
    %4113 = vmatpush2.msra.mxu0 %v4112
    %4114 = vmatprep.subr.mxu0 0.0
    %v4115 = vand.u32 %v202, 4294901760
    %v4116 = vsub.f32 %v202, %v4115
    %4117 = vmatpush2.msra.mxu0 %v4116
    %4118 = vmatprep.subr.mxu0 0.0
    %v4119 = vand.u32 %v201, 4294901760
    %v4120 = vsub.f32 %v201, %v4119
    %4121 = vmatpush2.msra.mxu0 %v4120
    %4122 = vmatprep.subr.mxu0 0.0
    %v4123 = vand.u32 %v200, 4294901760
    %v4124 = vsub.f32 %v200, %v4123
    %4125 = vmatpush2.msra.mxu0 %v4124
    %4126 = vmatprep.subr.mxu0 0.0
    %v4127 = vand.u32 %v199, 4294901760
    %v4128 = vsub.f32 %v199, %v4127
    %4129 = vmatpush2.msra.mxu0 %v4128
    %4130 = vmatprep.subr.mxu0 0.0
    %v4131 = vand.u32 %v198, 4294901760
    %v4132 = vsub.f32 %v198, %v4131
    %4133 = vmatpush2.msra.mxu0 %v4132
    %4134 = vmatprep.subr.mxu0 0.0
    %v4135 = vand.u32 %v197, 4294901760
    %v4136 = vsub.f32 %v197, %v4135
    %4137 = vmatpush2.msra.mxu0 %v4136
    %4138 = vmatprep.subr.mxu0 0.0
    %v4139 = vand.u32 %v196, 4294901760
    %v4140 = vsub.f32 %v196, %v4139
    %4141 = vmatpush2.msra.mxu0 %v4140
    %4142 = vmatprep.subr.mxu0 0.0
    %v4143 = vand.u32 %v195, 4294901760
    %v4144 = vsub.f32 %v195, %v4143
    %4145 = vmatpush2.msra.mxu0 %v4144
    %4146 = vmatprep.subr.mxu0 0.0
    %v4147 = vand.u32 %v194, 4294901760
    %v4148 = vsub.f32 %v194, %v4147
    %4149 = vmatpush2.msra.mxu0 %v4148
    %4150 = vmatprep.subr.mxu0 0.0
    %v4151 = vand.u32 %v193, 4294901760
    %v4152 = vsub.f32 %v193, %v4151
    %4153 = vmatpush2.msra.mxu0 %v4152
    %4154 = vmatprep.subr.mxu0 0.0
    %v4155 = vand.u32 %v192, 4294901760
    %v4156 = vsub.f32 %v192, %v4155
    %4157 = vmatpush2.msra.mxu0 %v4156
    %4158 = vmatprep.subr.mxu0 0.0
    %v4159 = vand.u32 %v191, 4294901760
    %v4160 = vsub.f32 %v191, %v4159
    %4161 = vmatpush2.msra.mxu0 %v4160
    %4162 = vmatprep.subr.mxu0 0.0
    %v4163 = vand.u32 %v190, 4294901760
    %v4164 = vsub.f32 %v190, %v4163
    %4165 = vmatpush2.msra.mxu0 %v4164
    %4166 = vmatprep.subr.mxu0 0.0
    %v4167 = vand.u32 %v189, 4294901760
    %v4168 = vsub.f32 %v189, %v4167
    %4169 = vmatpush2.msra.mxu0 %v4168
    %4170 = vmatprep.subr.mxu0 0.0
    %v4171 = vand.u32 %v188, 4294901760
    %v4172 = vsub.f32 %v188, %v4171
    %4173 = vmatpush2.msra.mxu0 %v4172
    %v4174 = vand.u32 %v246, 4294901760
    %v4175 = vsub.f32 %v246, %v4174
    %4176 = vmatprep.mubr.f32.mxu0 %v4175
    %v4177 = vand.u32 %v42, 4294901760
    %v4178 = vsub.f32 %v42, %v4177
    %4179 = vmatmul.mubr.f32.gmra.mxu0 %v4178
    %v4180 = vpop.f32.mrf.mxu0
    %v4181 = vadd.f32 %v4043, %v4180
    %v4182 = vpop.f32.mrf.mxu0
    %4183 = vdwg.mxu0
    %4184 = vmatprep.subr.mxu0 0.0
    %v4185 = vand.u32 %v187, 4294901760
    %4186 = vmatpush1.msra.mxu0 %v4185
    %4187 = vmatprep.subr.mxu0 0.0
    %v4188 = vand.u32 %v186, 4294901760
    %4189 = vmatpush1.msra.mxu0 %v4188
    %4190 = vmatprep.subr.mxu0 0.0
    %v4191 = vand.u32 %v185, 4294901760
    %4192 = vmatpush1.msra.mxu0 %v4191
    %4193 = vmatprep.subr.mxu0 0.0
    %v4194 = vand.u32 %v184, 4294901760
    %4195 = vmatpush1.msra.mxu0 %v4194
    %4196 = vmatprep.subr.mxu0 0.0
    %v4197 = vand.u32 %v183, 4294901760
    %4198 = vmatpush1.msra.mxu0 %v4197
    %4199 = vmatprep.subr.mxu0 0.0
    %v4200 = vand.u32 %v182, 4294901760
    %4201 = vmatpush1.msra.mxu0 %v4200
    %4202 = vmatprep.subr.mxu0 0.0
    %v4203 = vand.u32 %v181, 4294901760
    %4204 = vmatpush1.msra.mxu0 %v4203
    %4205 = vmatprep.subr.mxu0 0.0
    %v4206 = vand.u32 %v180, 4294901760
    %4207 = vmatpush1.msra.mxu0 %v4206
    %4208 = vmatprep.subr.mxu0 0.0
    %v4209 = vand.u32 %v179, 4294901760
    %4210 = vmatpush1.msra.mxu0 %v4209
    %4211 = vmatprep.subr.mxu0 0.0
    %v4212 = vand.u32 %v178, 4294901760
    %4213 = vmatpush1.msra.mxu0 %v4212
    %4214 = vmatprep.subr.mxu0 0.0
    %v4215 = vand.u32 %v177, 4294901760
    %4216 = vmatpush1.msra.mxu0 %v4215
    %4217 = vmatprep.subr.mxu0 0.0
    %v4218 = vand.u32 %v176, 4294901760
    %4219 = vmatpush1.msra.mxu0 %v4218
    %4220 = vmatprep.subr.mxu0 0.0
    %v4221 = vand.u32 %v175, 4294901760
    %4222 = vmatpush1.msra.mxu0 %v4221
    %4223 = vmatprep.subr.mxu0 0.0
    %v4224 = vand.u32 %v174, 4294901760
    %4225 = vmatpush1.msra.mxu0 %v4224
    %4226 = vmatprep.subr.mxu0 0.0
    %v4227 = vand.u32 %v173, 4294901760
    %4228 = vmatpush1.msra.mxu0 %v4227
    %4229 = vmatprep.subr.mxu0 0.0
    %v4230 = vand.u32 %v172, 4294901760
    %4231 = vmatpush1.msra.mxu0 %v4230
    %4232 = vmatprep.subr.mxu0 0.0
    %v4233 = vand.u32 %v203, 4294901760
    %4234 = vmatpush2.msra.mxu0 %v4233
    %4235 = vmatprep.subr.mxu0 0.0
    %v4236 = vand.u32 %v202, 4294901760
    %4237 = vmatpush2.msra.mxu0 %v4236
    %4238 = vmatprep.subr.mxu0 0.0
    %v4239 = vand.u32 %v201, 4294901760
    %4240 = vmatpush2.msra.mxu0 %v4239
    %4241 = vmatprep.subr.mxu0 0.0
    %v4242 = vand.u32 %v200, 4294901760
    %4243 = vmatpush2.msra.mxu0 %v4242
    %4244 = vmatprep.subr.mxu0 0.0
    %v4245 = vand.u32 %v199, 4294901760
    %4246 = vmatpush2.msra.mxu0 %v4245
    %4247 = vmatprep.subr.mxu0 0.0
    %v4248 = vand.u32 %v198, 4294901760
    %4249 = vmatpush2.msra.mxu0 %v4248
    %4250 = vmatprep.subr.mxu0 0.0
    %v4251 = vand.u32 %v197, 4294901760
    %4252 = vmatpush2.msra.mxu0 %v4251
    %4253 = vmatprep.subr.mxu0 0.0
    %v4254 = vand.u32 %v196, 4294901760
    %4255 = vmatpush2.msra.mxu0 %v4254
    %4256 = vmatprep.subr.mxu0 0.0
    %v4257 = vand.u32 %v195, 4294901760
    %4258 = vmatpush2.msra.mxu0 %v4257
    %4259 = vmatprep.subr.mxu0 0.0
    %v4260 = vand.u32 %v194, 4294901760
    %4261 = vmatpush2.msra.mxu0 %v4260
    %4262 = vmatprep.subr.mxu0 0.0
    %v4263 = vand.u32 %v193, 4294901760
    %4264 = vmatpush2.msra.mxu0 %v4263
    %4265 = vmatprep.subr.mxu0 0.0
    %v4266 = vand.u32 %v192, 4294901760
    %4267 = vmatpush2.msra.mxu0 %v4266
    %4268 = vmatprep.subr.mxu0 0.0
    %v4269 = vand.u32 %v191, 4294901760
    %4270 = vmatpush2.msra.mxu0 %v4269
    %4271 = vmatprep.subr.mxu0 0.0
    %v4272 = vand.u32 %v190, 4294901760
    %4273 = vmatpush2.msra.mxu0 %v4272
    %4274 = vmatprep.subr.mxu0 0.0
    %v4275 = vand.u32 %v189, 4294901760
    %4276 = vmatpush2.msra.mxu0 %v4275
    %4277 = vmatprep.subr.mxu0 0.0
    %v4278 = vand.u32 %v188, 4294901760
    %4279 = vmatpush2.msra.mxu0 %v4278
    %v4280 = vand.u32 %v246, 4294901760
    %v4281 = vsub.f32 %v246, %v4280
    %v4282 = vand.u32 %v4281, 4294901760
    %4283 = vmatprep.mubr.f32.mxu0 %v4282
    %v4284 = vand.u32 %v42, 4294901760
    %v4285 = vsub.f32 %v42, %v4284
    %v4286 = vand.u32 %v4285, 4294901760
    %4287 = vmatmul.mubr.f32.gmra.mxu0 %v4286
    %v4288 = vpop.f32.mrf.mxu0
    %v4289 = vadd.f32 %v4181, %v4288
    %v4290 = vpop.f32.mrf.mxu0
    %4291 = vdwg.mxu0
    %4292 = vmatprep.subr.mxu0 0.0
    %v4293 = vand.u32 %v187, 4294901760
    %v4294 = vsub.f32 %v187, %v4293
    %v4295 = vand.u32 %v4294, 4294901760
    %4296 = vmatpush1.msra.mxu0 %v4295
    %4297 = vmatprep.subr.mxu0 0.0
    %v4298 = vand.u32 %v186, 4294901760
    %v4299 = vsub.f32 %v186, %v4298
    %v4300 = vand.u32 %v4299, 4294901760
    %4301 = vmatpush1.msra.mxu0 %v4300
    %4302 = vmatprep.subr.mxu0 0.0
    %v4303 = vand.u32 %v185, 4294901760
    %v4304 = vsub.f32 %v185, %v4303
    %v4305 = vand.u32 %v4304, 4294901760
    %4306 = vmatpush1.msra.mxu0 %v4305
    %4307 = vmatprep.subr.mxu0 0.0
    %v4308 = vand.u32 %v184, 4294901760
    %v4309 = vsub.f32 %v184, %v4308
    %v4310 = vand.u32 %v4309, 4294901760
    %4311 = vmatpush1.msra.mxu0 %v4310
    %4312 = vmatprep.subr.mxu0 0.0
    %v4313 = vand.u32 %v183, 4294901760
    %v4314 = vsub.f32 %v183, %v4313
    %v4315 = vand.u32 %v4314, 4294901760
    %4316 = vmatpush1.msra.mxu0 %v4315
    %4317 = vmatprep.subr.mxu0 0.0
    %v4318 = vand.u32 %v182, 4294901760
    %v4319 = vsub.f32 %v182, %v4318
    %v4320 = vand.u32 %v4319, 4294901760
    %4321 = vmatpush1.msra.mxu0 %v4320
    %4322 = vmatprep.subr.mxu0 0.0
    %v4323 = vand.u32 %v181, 4294901760
    %v4324 = vsub.f32 %v181, %v4323
    %v4325 = vand.u32 %v4324, 4294901760
    %4326 = vmatpush1.msra.mxu0 %v4325
    %4327 = vmatprep.subr.mxu0 0.0
    %v4328 = vand.u32 %v180, 4294901760
    %v4329 = vsub.f32 %v180, %v4328
    %v4330 = vand.u32 %v4329, 4294901760
    %4331 = vmatpush1.msra.mxu0 %v4330
    %4332 = vmatprep.subr.mxu0 0.0
    %v4333 = vand.u32 %v179, 4294901760
    %v4334 = vsub.f32 %v179, %v4333
    %v4335 = vand.u32 %v4334, 4294901760
    %4336 = vmatpush1.msra.mxu0 %v4335
    %4337 = vmatprep.subr.mxu0 0.0
    %v4338 = vand.u32 %v178, 4294901760
    %v4339 = vsub.f32 %v178, %v4338
    %v4340 = vand.u32 %v4339, 4294901760
    %4341 = vmatpush1.msra.mxu0 %v4340
    %4342 = vmatprep.subr.mxu0 0.0
    %v4343 = vand.u32 %v177, 4294901760
    %v4344 = vsub.f32 %v177, %v4343
    %v4345 = vand.u32 %v4344, 4294901760
    %4346 = vmatpush1.msra.mxu0 %v4345
    %4347 = vmatprep.subr.mxu0 0.0
    %v4348 = vand.u32 %v176, 4294901760
    %v4349 = vsub.f32 %v176, %v4348
    %v4350 = vand.u32 %v4349, 4294901760
    %4351 = vmatpush1.msra.mxu0 %v4350
    %4352 = vmatprep.subr.mxu0 0.0
    %v4353 = vand.u32 %v175, 4294901760
    %v4354 = vsub.f32 %v175, %v4353
    %v4355 = vand.u32 %v4354, 4294901760
    %4356 = vmatpush1.msra.mxu0 %v4355
    %4357 = vmatprep.subr.mxu0 0.0
    %v4358 = vand.u32 %v174, 4294901760
    %v4359 = vsub.f32 %v174, %v4358
    %v4360 = vand.u32 %v4359, 4294901760
    %4361 = vmatpush1.msra.mxu0 %v4360
    %4362 = vmatprep.subr.mxu0 0.0
    %v4363 = vand.u32 %v173, 4294901760
    %v4364 = vsub.f32 %v173, %v4363
    %v4365 = vand.u32 %v4364, 4294901760
    %4366 = vmatpush1.msra.mxu0 %v4365
    %4367 = vmatprep.subr.mxu0 0.0
    %v4368 = vand.u32 %v172, 4294901760
    %v4369 = vsub.f32 %v172, %v4368
    %v4370 = vand.u32 %v4369, 4294901760
    %4371 = vmatpush1.msra.mxu0 %v4370
    %4372 = vmatprep.subr.mxu0 0.0
    %v4373 = vand.u32 %v203, 4294901760
    %v4374 = vsub.f32 %v203, %v4373
    %v4375 = vand.u32 %v4374, 4294901760
    %4376 = vmatpush2.msra.mxu0 %v4375
    %4377 = vmatprep.subr.mxu0 0.0
    %v4378 = vand.u32 %v202, 4294901760
    %v4379 = vsub.f32 %v202, %v4378
    %v4380 = vand.u32 %v4379, 4294901760
    %4381 = vmatpush2.msra.mxu0 %v4380
    %4382 = vmatprep.subr.mxu0 0.0
    %v4383 = vand.u32 %v201, 4294901760
    %v4384 = vsub.f32 %v201, %v4383
    %v4385 = vand.u32 %v4384, 4294901760
    %4386 = vmatpush2.msra.mxu0 %v4385
    %4387 = vmatprep.subr.mxu0 0.0
    %v4388 = vand.u32 %v200, 4294901760
    %v4389 = vsub.f32 %v200, %v4388
    %v4390 = vand.u32 %v4389, 4294901760
    %4391 = vmatpush2.msra.mxu0 %v4390
    %4392 = vmatprep.subr.mxu0 0.0
    %v4393 = vand.u32 %v199, 4294901760
    %v4394 = vsub.f32 %v199, %v4393
    %v4395 = vand.u32 %v4394, 4294901760
    %4396 = vmatpush2.msra.mxu0 %v4395
    %4397 = vmatprep.subr.mxu0 0.0
    %v4398 = vand.u32 %v198, 4294901760
    %v4399 = vsub.f32 %v198, %v4398
    %v4400 = vand.u32 %v4399, 4294901760
    %4401 = vmatpush2.msra.mxu0 %v4400
    %4402 = vmatprep.subr.mxu0 0.0
    %v4403 = vand.u32 %v197, 4294901760
    %v4404 = vsub.f32 %v197, %v4403
    %v4405 = vand.u32 %v4404, 4294901760
    %4406 = vmatpush2.msra.mxu0 %v4405
    %4407 = vmatprep.subr.mxu0 0.0
    %v4408 = vand.u32 %v196, 4294901760
    %v4409 = vsub.f32 %v196, %v4408
    %v4410 = vand.u32 %v4409, 4294901760
    %4411 = vmatpush2.msra.mxu0 %v4410
    %4412 = vmatprep.subr.mxu0 0.0
    %v4413 = vand.u32 %v195, 4294901760
    %v4414 = vsub.f32 %v195, %v4413
    %v4415 = vand.u32 %v4414, 4294901760
    %4416 = vmatpush2.msra.mxu0 %v4415
    %4417 = vmatprep.subr.mxu0 0.0
    %v4418 = vand.u32 %v194, 4294901760
    %v4419 = vsub.f32 %v194, %v4418
    %v4420 = vand.u32 %v4419, 4294901760
    %4421 = vmatpush2.msra.mxu0 %v4420
    %4422 = vmatprep.subr.mxu0 0.0
    %v4423 = vand.u32 %v193, 4294901760
    %v4424 = vsub.f32 %v193, %v4423
    %v4425 = vand.u32 %v4424, 4294901760
    %4426 = vmatpush2.msra.mxu0 %v4425
    %4427 = vmatprep.subr.mxu0 0.0
    %v4428 = vand.u32 %v192, 4294901760
    %v4429 = vsub.f32 %v192, %v4428
    %v4430 = vand.u32 %v4429, 4294901760
    %4431 = vmatpush2.msra.mxu0 %v4430
    %4432 = vmatprep.subr.mxu0 0.0
    %v4433 = vand.u32 %v191, 4294901760
    %v4434 = vsub.f32 %v191, %v4433
    %v4435 = vand.u32 %v4434, 4294901760
    %4436 = vmatpush2.msra.mxu0 %v4435
    %4437 = vmatprep.subr.mxu0 0.0
    %v4438 = vand.u32 %v190, 4294901760
    %v4439 = vsub.f32 %v190, %v4438
    %v4440 = vand.u32 %v4439, 4294901760
    %4441 = vmatpush2.msra.mxu0 %v4440
    %4442 = vmatprep.subr.mxu0 0.0
    %v4443 = vand.u32 %v189, 4294901760
    %v4444 = vsub.f32 %v189, %v4443
    %v4445 = vand.u32 %v4444, 4294901760
    %4446 = vmatpush2.msra.mxu0 %v4445
    %4447 = vmatprep.subr.mxu0 0.0
    %v4448 = vand.u32 %v188, 4294901760
    %v4449 = vsub.f32 %v188, %v4448
    %v4450 = vand.u32 %v4449, 4294901760
    %4451 = vmatpush2.msra.mxu0 %v4450
    %v4452 = vand.u32 %v246, 4294901760
    %4453 = vmatprep.mubr.f32.mxu0 %v4452
    %v4454 = vand.u32 %v42, 4294901760
    %4455 = vmatmul.mubr.f32.gmra.mxu0 %v4454
    %v4456 = vpop.f32.mrf.mxu0
    %v4457 = vadd.f32 %v4289, %v4456
    %v4458 = vpop.f32.mrf.mxu0
    %4459 = vdwg.mxu0
    %4460 = vmatprep.subr.mxu0 0.0
    %v4461 = vand.u32 %v187, 4294901760
    %4462 = vmatpush1.msra.mxu0 %v4461
    %4463 = vmatprep.subr.mxu0 0.0
    %v4464 = vand.u32 %v186, 4294901760
    %4465 = vmatpush1.msra.mxu0 %v4464
    %4466 = vmatprep.subr.mxu0 0.0
    %v4467 = vand.u32 %v185, 4294901760
    %4468 = vmatpush1.msra.mxu0 %v4467
    %4469 = vmatprep.subr.mxu0 0.0
    %v4470 = vand.u32 %v184, 4294901760
    %4471 = vmatpush1.msra.mxu0 %v4470
    %4472 = vmatprep.subr.mxu0 0.0
    %v4473 = vand.u32 %v183, 4294901760
    %4474 = vmatpush1.msra.mxu0 %v4473
    %4475 = vmatprep.subr.mxu0 0.0
    %v4476 = vand.u32 %v182, 4294901760
    %4477 = vmatpush1.msra.mxu0 %v4476
    %4478 = vmatprep.subr.mxu0 0.0
    %v4479 = vand.u32 %v181, 4294901760
    %4480 = vmatpush1.msra.mxu0 %v4479
    %4481 = vmatprep.subr.mxu0 0.0
    %v4482 = vand.u32 %v180, 4294901760
    %4483 = vmatpush1.msra.mxu0 %v4482
    %4484 = vmatprep.subr.mxu0 0.0
    %v4485 = vand.u32 %v179, 4294901760
    %4486 = vmatpush1.msra.mxu0 %v4485
    %4487 = vmatprep.subr.mxu0 0.0
    %v4488 = vand.u32 %v178, 4294901760
    %4489 = vmatpush1.msra.mxu0 %v4488
    %4490 = vmatprep.subr.mxu0 0.0
    %v4491 = vand.u32 %v177, 4294901760
    %4492 = vmatpush1.msra.mxu0 %v4491
    %4493 = vmatprep.subr.mxu0 0.0
    %v4494 = vand.u32 %v176, 4294901760
    %4495 = vmatpush1.msra.mxu0 %v4494
    %4496 = vmatprep.subr.mxu0 0.0
    %v4497 = vand.u32 %v175, 4294901760
    %4498 = vmatpush1.msra.mxu0 %v4497
    %4499 = vmatprep.subr.mxu0 0.0
    %v4500 = vand.u32 %v174, 4294901760
    %4501 = vmatpush1.msra.mxu0 %v4500
    %4502 = vmatprep.subr.mxu0 0.0
    %v4503 = vand.u32 %v173, 4294901760
    %4504 = vmatpush1.msra.mxu0 %v4503
    %4505 = vmatprep.subr.mxu0 0.0
    %v4506 = vand.u32 %v172, 4294901760
    %4507 = vmatpush1.msra.mxu0 %v4506
    %4508 = vmatprep.subr.mxu0 0.0
    %v4509 = vand.u32 %v203, 4294901760
    %4510 = vmatpush2.msra.mxu0 %v4509
    %4511 = vmatprep.subr.mxu0 0.0
    %v4512 = vand.u32 %v202, 4294901760
    %4513 = vmatpush2.msra.mxu0 %v4512
    %4514 = vmatprep.subr.mxu0 0.0
    %v4515 = vand.u32 %v201, 4294901760
    %4516 = vmatpush2.msra.mxu0 %v4515
    %4517 = vmatprep.subr.mxu0 0.0
    %v4518 = vand.u32 %v200, 4294901760
    %4519 = vmatpush2.msra.mxu0 %v4518
    %4520 = vmatprep.subr.mxu0 0.0
    %v4521 = vand.u32 %v199, 4294901760
    %4522 = vmatpush2.msra.mxu0 %v4521
    %4523 = vmatprep.subr.mxu0 0.0
    %v4524 = vand.u32 %v198, 4294901760
    %4525 = vmatpush2.msra.mxu0 %v4524
    %4526 = vmatprep.subr.mxu0 0.0
    %v4527 = vand.u32 %v197, 4294901760
    %4528 = vmatpush2.msra.mxu0 %v4527
    %4529 = vmatprep.subr.mxu0 0.0
    %v4530 = vand.u32 %v196, 4294901760
    %4531 = vmatpush2.msra.mxu0 %v4530
    %4532 = vmatprep.subr.mxu0 0.0
    %v4533 = vand.u32 %v195, 4294901760
    %4534 = vmatpush2.msra.mxu0 %v4533
    %4535 = vmatprep.subr.mxu0 0.0
    %v4536 = vand.u32 %v194, 4294901760
    %4537 = vmatpush2.msra.mxu0 %v4536
    %4538 = vmatprep.subr.mxu0 0.0
    %v4539 = vand.u32 %v193, 4294901760
    %4540 = vmatpush2.msra.mxu0 %v4539
    %4541 = vmatprep.subr.mxu0 0.0
    %v4542 = vand.u32 %v192, 4294901760
    %4543 = vmatpush2.msra.mxu0 %v4542
    %4544 = vmatprep.subr.mxu0 0.0
    %v4545 = vand.u32 %v191, 4294901760
    %4546 = vmatpush2.msra.mxu0 %v4545
    %4547 = vmatprep.subr.mxu0 0.0
    %v4548 = vand.u32 %v190, 4294901760
    %4549 = vmatpush2.msra.mxu0 %v4548
    %4550 = vmatprep.subr.mxu0 0.0
    %v4551 = vand.u32 %v189, 4294901760
    %4552 = vmatpush2.msra.mxu0 %v4551
    %4553 = vmatprep.subr.mxu0 0.0
    %v4554 = vand.u32 %v188, 4294901760
    %4555 = vmatpush2.msra.mxu0 %v4554
    %v4556 = vand.u32 %v246, 4294901760
    %4557 = vmatprep.mubr.f32.mxu0 %v4556
    %v4558 = vand.u32 %v42, 4294901760
    %4559 = vmatmul.mubr.f32.gmra.mxu0 %v4558
    %v4560 = vpop.f32.mrf.mxu0
    %v4561 = vadd.f32 %v4457, %v4560
    %v4562 = vpop.f32.mrf.mxu0
    %4563 = vdwg.mxu0
    %4564 = vmatprep.subr.mxu0 0.0
    %v4565 = vand.u32 %v219, 4294901760
    %4566 = vmatpush1.msra.mxu0 %v4565
    %4567 = vmatprep.subr.mxu0 0.0
    %v4568 = vand.u32 %v218, 4294901760
    %4569 = vmatpush1.msra.mxu0 %v4568
    %4570 = vmatprep.subr.mxu0 0.0
    %v4571 = vand.u32 %v217, 4294901760
    %4572 = vmatpush1.msra.mxu0 %v4571
    %4573 = vmatprep.subr.mxu0 0.0
    %v4574 = vand.u32 %v216, 4294901760
    %4575 = vmatpush1.msra.mxu0 %v4574
    %4576 = vmatprep.subr.mxu0 0.0
    %v4577 = vand.u32 %v215, 4294901760
    %4578 = vmatpush1.msra.mxu0 %v4577
    %4579 = vmatprep.subr.mxu0 0.0
    %v4580 = vand.u32 %v214, 4294901760
    %4581 = vmatpush1.msra.mxu0 %v4580
    %4582 = vmatprep.subr.mxu0 0.0
    %v4583 = vand.u32 %v213, 4294901760
    %4584 = vmatpush1.msra.mxu0 %v4583
    %4585 = vmatprep.subr.mxu0 0.0
    %v4586 = vand.u32 %v212, 4294901760
    %4587 = vmatpush1.msra.mxu0 %v4586
    %4588 = vmatprep.subr.mxu0 0.0
    %v4589 = vand.u32 %v211, 4294901760
    %4590 = vmatpush1.msra.mxu0 %v4589
    %4591 = vmatprep.subr.mxu0 0.0
    %v4592 = vand.u32 %v210, 4294901760
    %4593 = vmatpush1.msra.mxu0 %v4592
    %4594 = vmatprep.subr.mxu0 0.0
    %v4595 = vand.u32 %v209, 4294901760
    %4596 = vmatpush1.msra.mxu0 %v4595
    %4597 = vmatprep.subr.mxu0 0.0
    %v4598 = vand.u32 %v208, 4294901760
    %4599 = vmatpush1.msra.mxu0 %v4598
    %4600 = vmatprep.subr.mxu0 0.0
    %v4601 = vand.u32 %v207, 4294901760
    %4602 = vmatpush1.msra.mxu0 %v4601
    %4603 = vmatprep.subr.mxu0 0.0
    %v4604 = vand.u32 %v206, 4294901760
    %4605 = vmatpush1.msra.mxu0 %v4604
    %4606 = vmatprep.subr.mxu0 0.0
    %v4607 = vand.u32 %v205, 4294901760
    %4608 = vmatpush1.msra.mxu0 %v4607
    %4609 = vmatprep.subr.mxu0 0.0
    %v4610 = vand.u32 %v204, 4294901760
    %4611 = vmatpush1.msra.mxu0 %v4610
    %4612 = vmatprep.subr.mxu0 0.0
    %v4613 = vand.u32 %v235, 4294901760
    %4614 = vmatpush2.msra.mxu0 %v4613
    %4615 = vmatprep.subr.mxu0 0.0
    %v4616 = vand.u32 %v234, 4294901760
    %4617 = vmatpush2.msra.mxu0 %v4616
    %4618 = vmatprep.subr.mxu0 0.0
    %v4619 = vand.u32 %v233, 4294901760
    %4620 = vmatpush2.msra.mxu0 %v4619
    %4621 = vmatprep.subr.mxu0 0.0
    %v4622 = vand.u32 %v232, 4294901760
    %4623 = vmatpush2.msra.mxu0 %v4622
    %4624 = vmatprep.subr.mxu0 0.0
    %v4625 = vand.u32 %v231, 4294901760
    %4626 = vmatpush2.msra.mxu0 %v4625
    %4627 = vmatprep.subr.mxu0 0.0
    %v4628 = vand.u32 %v230, 4294901760
    %4629 = vmatpush2.msra.mxu0 %v4628
    %4630 = vmatprep.subr.mxu0 0.0
    %v4631 = vand.u32 %v229, 4294901760
    %4632 = vmatpush2.msra.mxu0 %v4631
    %4633 = vmatprep.subr.mxu0 0.0
    %v4634 = vand.u32 %v228, 4294901760
    %4635 = vmatpush2.msra.mxu0 %v4634
    %4636 = vmatprep.subr.mxu0 0.0
    %v4637 = vand.u32 %v227, 4294901760
    %4638 = vmatpush2.msra.mxu0 %v4637
    %4639 = vmatprep.subr.mxu0 0.0
    %v4640 = vand.u32 %v226, 4294901760
    %4641 = vmatpush2.msra.mxu0 %v4640
    %4642 = vmatprep.subr.mxu0 0.0
    %v4643 = vand.u32 %v225, 4294901760
    %4644 = vmatpush2.msra.mxu0 %v4643
    %4645 = vmatprep.subr.mxu0 0.0
    %v4646 = vand.u32 %v224, 4294901760
    %4647 = vmatpush2.msra.mxu0 %v4646
    %4648 = vmatprep.subr.mxu0 0.0
    %v4649 = vand.u32 %v223, 4294901760
    %4650 = vmatpush2.msra.mxu0 %v4649
    %4651 = vmatprep.subr.mxu0 0.0
    %v4652 = vand.u32 %v222, 4294901760
    %4653 = vmatpush2.msra.mxu0 %v4652
    %4654 = vmatprep.subr.mxu0 0.0
    %v4655 = vand.u32 %v221, 4294901760
    %4656 = vmatpush2.msra.mxu0 %v4655
    %4657 = vmatprep.subr.mxu0 0.0
    %v4658 = vand.u32 %v220, 4294901760
    %4659 = vmatpush2.msra.mxu0 %v4658
    %v4660 = vand.u32 %v247, 4294901760
    %v4661 = vsub.f32 %v247, %v4660
    %v4662 = vand.u32 %v4661, 4294901760
    %v4663 = vsub.f32 %v4661, %v4662
    %v4664 = vand.u32 %v4663, 4294901760
    %4665 = vmatprep.mubr.f32.mxu0 %v4664
    %v4666 = vand.u32 %v43, 4294901760
    %v4667 = vsub.f32 %v43, %v4666
    %v4668 = vand.u32 %v4667, 4294901760
    %v4669 = vsub.f32 %v4667, %v4668
    %v4670 = vand.u32 %v4669, 4294901760
    %4671 = vmatmul.mubr.f32.gmra.mxu0 %v4670
    %v4672 = vpop.f32.mrf.mxu0
    %v4673 = vadd.f32 %v4561, %v4672
    %v4674 = vpop.f32.mrf.mxu0
    %4675 = vdwg.mxu0
    %4676 = vmatprep.subr.mxu0 0.0
    %v4677 = vand.u32 %v219, 4294901760
    %v4678 = vsub.f32 %v219, %v4677
    %v4679 = vand.u32 %v4678, 4294901760
    %v4680 = vsub.f32 %v4678, %v4679
    %v4681 = vand.u32 %v4680, 4294901760
    %4682 = vmatpush1.msra.mxu0 %v4681
    %4683 = vmatprep.subr.mxu0 0.0
    %v4684 = vand.u32 %v218, 4294901760
    %v4685 = vsub.f32 %v218, %v4684
    %v4686 = vand.u32 %v4685, 4294901760
    %v4687 = vsub.f32 %v4685, %v4686
    %v4688 = vand.u32 %v4687, 4294901760
    %4689 = vmatpush1.msra.mxu0 %v4688
    %4690 = vmatprep.subr.mxu0 0.0
    %v4691 = vand.u32 %v217, 4294901760
    %v4692 = vsub.f32 %v217, %v4691
    %v4693 = vand.u32 %v4692, 4294901760
    %v4694 = vsub.f32 %v4692, %v4693
    %v4695 = vand.u32 %v4694, 4294901760
    %4696 = vmatpush1.msra.mxu0 %v4695
    %4697 = vmatprep.subr.mxu0 0.0
    %v4698 = vand.u32 %v216, 4294901760
    %v4699 = vsub.f32 %v216, %v4698
    %v4700 = vand.u32 %v4699, 4294901760
    %v4701 = vsub.f32 %v4699, %v4700
    %v4702 = vand.u32 %v4701, 4294901760
    %4703 = vmatpush1.msra.mxu0 %v4702
    %4704 = vmatprep.subr.mxu0 0.0
    %v4705 = vand.u32 %v215, 4294901760
    %v4706 = vsub.f32 %v215, %v4705
    %v4707 = vand.u32 %v4706, 4294901760
    %v4708 = vsub.f32 %v4706, %v4707
    %v4709 = vand.u32 %v4708, 4294901760
    %4710 = vmatpush1.msra.mxu0 %v4709
    %4711 = vmatprep.subr.mxu0 0.0
    %v4712 = vand.u32 %v214, 4294901760
    %v4713 = vsub.f32 %v214, %v4712
    %v4714 = vand.u32 %v4713, 4294901760
    %v4715 = vsub.f32 %v4713, %v4714
    %v4716 = vand.u32 %v4715, 4294901760
    %4717 = vmatpush1.msra.mxu0 %v4716
    %4718 = vmatprep.subr.mxu0 0.0
    %v4719 = vand.u32 %v213, 4294901760
    %v4720 = vsub.f32 %v213, %v4719
    %v4721 = vand.u32 %v4720, 4294901760
    %v4722 = vsub.f32 %v4720, %v4721
    %v4723 = vand.u32 %v4722, 4294901760
    %4724 = vmatpush1.msra.mxu0 %v4723
    %4725 = vmatprep.subr.mxu0 0.0
    %v4726 = vand.u32 %v212, 4294901760
    %v4727 = vsub.f32 %v212, %v4726
    %v4728 = vand.u32 %v4727, 4294901760
    %v4729 = vsub.f32 %v4727, %v4728
    %v4730 = vand.u32 %v4729, 4294901760
    %4731 = vmatpush1.msra.mxu0 %v4730
    %4732 = vmatprep.subr.mxu0 0.0
    %v4733 = vand.u32 %v211, 4294901760
    %v4734 = vsub.f32 %v211, %v4733
    %v4735 = vand.u32 %v4734, 4294901760
    %v4736 = vsub.f32 %v4734, %v4735
    %v4737 = vand.u32 %v4736, 4294901760
    %4738 = vmatpush1.msra.mxu0 %v4737
    %4739 = vmatprep.subr.mxu0 0.0
    %v4740 = vand.u32 %v210, 4294901760
    %v4741 = vsub.f32 %v210, %v4740
    %v4742 = vand.u32 %v4741, 4294901760
    %v4743 = vsub.f32 %v4741, %v4742
    %v4744 = vand.u32 %v4743, 4294901760
    %4745 = vmatpush1.msra.mxu0 %v4744
    %4746 = vmatprep.subr.mxu0 0.0
    %v4747 = vand.u32 %v209, 4294901760
    %v4748 = vsub.f32 %v209, %v4747
    %v4749 = vand.u32 %v4748, 4294901760
    %v4750 = vsub.f32 %v4748, %v4749
    %v4751 = vand.u32 %v4750, 4294901760
    %4752 = vmatpush1.msra.mxu0 %v4751
    %4753 = vmatprep.subr.mxu0 0.0
    %v4754 = vand.u32 %v208, 4294901760
    %v4755 = vsub.f32 %v208, %v4754
    %v4756 = vand.u32 %v4755, 4294901760
    %v4757 = vsub.f32 %v4755, %v4756
    %v4758 = vand.u32 %v4757, 4294901760
    %4759 = vmatpush1.msra.mxu0 %v4758
    %4760 = vmatprep.subr.mxu0 0.0
    %v4761 = vand.u32 %v207, 4294901760
    %v4762 = vsub.f32 %v207, %v4761
    %v4763 = vand.u32 %v4762, 4294901760
    %v4764 = vsub.f32 %v4762, %v4763
    %v4765 = vand.u32 %v4764, 4294901760
    %4766 = vmatpush1.msra.mxu0 %v4765
    %4767 = vmatprep.subr.mxu0 0.0
    %v4768 = vand.u32 %v206, 4294901760
    %v4769 = vsub.f32 %v206, %v4768
    %v4770 = vand.u32 %v4769, 4294901760
    %v4771 = vsub.f32 %v4769, %v4770
    %v4772 = vand.u32 %v4771, 4294901760
    %4773 = vmatpush1.msra.mxu0 %v4772
    %4774 = vmatprep.subr.mxu0 0.0
    %v4775 = vand.u32 %v205, 4294901760
    %v4776 = vsub.f32 %v205, %v4775
    %v4777 = vand.u32 %v4776, 4294901760
    %v4778 = vsub.f32 %v4776, %v4777
    %v4779 = vand.u32 %v4778, 4294901760
    %4780 = vmatpush1.msra.mxu0 %v4779
    %4781 = vmatprep.subr.mxu0 0.0
    %v4782 = vand.u32 %v204, 4294901760
    %v4783 = vsub.f32 %v204, %v4782
    %v4784 = vand.u32 %v4783, 4294901760
    %v4785 = vsub.f32 %v4783, %v4784
    %v4786 = vand.u32 %v4785, 4294901760
    %4787 = vmatpush1.msra.mxu0 %v4786
    %4788 = vmatprep.subr.mxu0 0.0
    %v4789 = vand.u32 %v235, 4294901760
    %v4790 = vsub.f32 %v235, %v4789
    %v4791 = vand.u32 %v4790, 4294901760
    %v4792 = vsub.f32 %v4790, %v4791
    %v4793 = vand.u32 %v4792, 4294901760
    %4794 = vmatpush2.msra.mxu0 %v4793
    %4795 = vmatprep.subr.mxu0 0.0
    %v4796 = vand.u32 %v234, 4294901760
    %v4797 = vsub.f32 %v234, %v4796
    %v4798 = vand.u32 %v4797, 4294901760
    %v4799 = vsub.f32 %v4797, %v4798
    %v4800 = vand.u32 %v4799, 4294901760
    %4801 = vmatpush2.msra.mxu0 %v4800
    %4802 = vmatprep.subr.mxu0 0.0
    %v4803 = vand.u32 %v233, 4294901760
    %v4804 = vsub.f32 %v233, %v4803
    %v4805 = vand.u32 %v4804, 4294901760
    %v4806 = vsub.f32 %v4804, %v4805
    %v4807 = vand.u32 %v4806, 4294901760
    %4808 = vmatpush2.msra.mxu0 %v4807
    %4809 = vmatprep.subr.mxu0 0.0
    %v4810 = vand.u32 %v232, 4294901760
    %v4811 = vsub.f32 %v232, %v4810
    %v4812 = vand.u32 %v4811, 4294901760
    %v4813 = vsub.f32 %v4811, %v4812
    %v4814 = vand.u32 %v4813, 4294901760
    %4815 = vmatpush2.msra.mxu0 %v4814
    %4816 = vmatprep.subr.mxu0 0.0
    %v4817 = vand.u32 %v231, 4294901760
    %v4818 = vsub.f32 %v231, %v4817
    %v4819 = vand.u32 %v4818, 4294901760
    %v4820 = vsub.f32 %v4818, %v4819
    %v4821 = vand.u32 %v4820, 4294901760
    %4822 = vmatpush2.msra.mxu0 %v4821
    %4823 = vmatprep.subr.mxu0 0.0
    %v4824 = vand.u32 %v230, 4294901760
    %v4825 = vsub.f32 %v230, %v4824
    %v4826 = vand.u32 %v4825, 4294901760
    %v4827 = vsub.f32 %v4825, %v4826
    %v4828 = vand.u32 %v4827, 4294901760
    %4829 = vmatpush2.msra.mxu0 %v4828
    %4830 = vmatprep.subr.mxu0 0.0
    %v4831 = vand.u32 %v229, 4294901760
    %v4832 = vsub.f32 %v229, %v4831
    %v4833 = vand.u32 %v4832, 4294901760
    %v4834 = vsub.f32 %v4832, %v4833
    %v4835 = vand.u32 %v4834, 4294901760
    %4836 = vmatpush2.msra.mxu0 %v4835
    %4837 = vmatprep.subr.mxu0 0.0
    %v4838 = vand.u32 %v228, 4294901760
    %v4839 = vsub.f32 %v228, %v4838
    %v4840 = vand.u32 %v4839, 4294901760
    %v4841 = vsub.f32 %v4839, %v4840
    %v4842 = vand.u32 %v4841, 4294901760
    %4843 = vmatpush2.msra.mxu0 %v4842
    %4844 = vmatprep.subr.mxu0 0.0
    %v4845 = vand.u32 %v227, 4294901760
    %v4846 = vsub.f32 %v227, %v4845
    %v4847 = vand.u32 %v4846, 4294901760
    %v4848 = vsub.f32 %v4846, %v4847
    %v4849 = vand.u32 %v4848, 4294901760
    %4850 = vmatpush2.msra.mxu0 %v4849
    %4851 = vmatprep.subr.mxu0 0.0
    %v4852 = vand.u32 %v226, 4294901760
    %v4853 = vsub.f32 %v226, %v4852
    %v4854 = vand.u32 %v4853, 4294901760
    %v4855 = vsub.f32 %v4853, %v4854
    %v4856 = vand.u32 %v4855, 4294901760
    %4857 = vmatpush2.msra.mxu0 %v4856
    %4858 = vmatprep.subr.mxu0 0.0
    %v4859 = vand.u32 %v225, 4294901760
    %v4860 = vsub.f32 %v225, %v4859
    %v4861 = vand.u32 %v4860, 4294901760
    %v4862 = vsub.f32 %v4860, %v4861
    %v4863 = vand.u32 %v4862, 4294901760
    %4864 = vmatpush2.msra.mxu0 %v4863
    %4865 = vmatprep.subr.mxu0 0.0
    %v4866 = vand.u32 %v224, 4294901760
    %v4867 = vsub.f32 %v224, %v4866
    %v4868 = vand.u32 %v4867, 4294901760
    %v4869 = vsub.f32 %v4867, %v4868
    %v4870 = vand.u32 %v4869, 4294901760
    %4871 = vmatpush2.msra.mxu0 %v4870
    %4872 = vmatprep.subr.mxu0 0.0
    %v4873 = vand.u32 %v223, 4294901760
    %v4874 = vsub.f32 %v223, %v4873
    %v4875 = vand.u32 %v4874, 4294901760
    %v4876 = vsub.f32 %v4874, %v4875
    %v4877 = vand.u32 %v4876, 4294901760
    %4878 = vmatpush2.msra.mxu0 %v4877
    %4879 = vmatprep.subr.mxu0 0.0
    %v4880 = vand.u32 %v222, 4294901760
    %v4881 = vsub.f32 %v222, %v4880
    %v4882 = vand.u32 %v4881, 4294901760
    %v4883 = vsub.f32 %v4881, %v4882
    %v4884 = vand.u32 %v4883, 4294901760
    %4885 = vmatpush2.msra.mxu0 %v4884
    %4886 = vmatprep.subr.mxu0 0.0
    %v4887 = vand.u32 %v221, 4294901760
    %v4888 = vsub.f32 %v221, %v4887
    %v4889 = vand.u32 %v4888, 4294901760
    %v4890 = vsub.f32 %v4888, %v4889
    %v4891 = vand.u32 %v4890, 4294901760
    %4892 = vmatpush2.msra.mxu0 %v4891
    %4893 = vmatprep.subr.mxu0 0.0
    %v4894 = vand.u32 %v220, 4294901760
    %v4895 = vsub.f32 %v220, %v4894
    %v4896 = vand.u32 %v4895, 4294901760
    %v4897 = vsub.f32 %v4895, %v4896
    %v4898 = vand.u32 %v4897, 4294901760
    %4899 = vmatpush2.msra.mxu0 %v4898
    %v4900 = vand.u32 %v247, 4294901760
    %4901 = vmatprep.mubr.f32.mxu0 %v4900
    %v4902 = vand.u32 %v43, 4294901760
    %4903 = vmatmul.mubr.f32.gmra.mxu0 %v4902
    %v4904 = vpop.f32.mrf.mxu0
    %v4905 = vadd.f32 %v4673, %v4904
    %v4906 = vpop.f32.mrf.mxu0
    %4907 = vdwg.mxu0
    %4908 = vmatprep.subr.mxu0 0.0
    %v4909 = vand.u32 %v219, 4294901760
    %v4910 = vsub.f32 %v219, %v4909
    %4911 = vmatpush1.msra.mxu0 %v4910
    %4912 = vmatprep.subr.mxu0 0.0
    %v4913 = vand.u32 %v218, 4294901760
    %v4914 = vsub.f32 %v218, %v4913
    %4915 = vmatpush1.msra.mxu0 %v4914
    %4916 = vmatprep.subr.mxu0 0.0
    %v4917 = vand.u32 %v217, 4294901760
    %v4918 = vsub.f32 %v217, %v4917
    %4919 = vmatpush1.msra.mxu0 %v4918
    %4920 = vmatprep.subr.mxu0 0.0
    %v4921 = vand.u32 %v216, 4294901760
    %v4922 = vsub.f32 %v216, %v4921
    %4923 = vmatpush1.msra.mxu0 %v4922
    %4924 = vmatprep.subr.mxu0 0.0
    %v4925 = vand.u32 %v215, 4294901760
    %v4926 = vsub.f32 %v215, %v4925
    %4927 = vmatpush1.msra.mxu0 %v4926
    %4928 = vmatprep.subr.mxu0 0.0
    %v4929 = vand.u32 %v214, 4294901760
    %v4930 = vsub.f32 %v214, %v4929
    %4931 = vmatpush1.msra.mxu0 %v4930
    %4932 = vmatprep.subr.mxu0 0.0
    %v4933 = vand.u32 %v213, 4294901760
    %v4934 = vsub.f32 %v213, %v4933
    %4935 = vmatpush1.msra.mxu0 %v4934
    %4936 = vmatprep.subr.mxu0 0.0
    %v4937 = vand.u32 %v212, 4294901760
    %v4938 = vsub.f32 %v212, %v4937
    %4939 = vmatpush1.msra.mxu0 %v4938
    %4940 = vmatprep.subr.mxu0 0.0
    %v4941 = vand.u32 %v211, 4294901760
    %v4942 = vsub.f32 %v211, %v4941
    %4943 = vmatpush1.msra.mxu0 %v4942
    %4944 = vmatprep.subr.mxu0 0.0
    %v4945 = vand.u32 %v210, 4294901760
    %v4946 = vsub.f32 %v210, %v4945
    %4947 = vmatpush1.msra.mxu0 %v4946
    %4948 = vmatprep.subr.mxu0 0.0
    %v4949 = vand.u32 %v209, 4294901760
    %v4950 = vsub.f32 %v209, %v4949
    %4951 = vmatpush1.msra.mxu0 %v4950
    %4952 = vmatprep.subr.mxu0 0.0
    %v4953 = vand.u32 %v208, 4294901760
    %v4954 = vsub.f32 %v208, %v4953
    %4955 = vmatpush1.msra.mxu0 %v4954
    %4956 = vmatprep.subr.mxu0 0.0
    %v4957 = vand.u32 %v207, 4294901760
    %v4958 = vsub.f32 %v207, %v4957
    %4959 = vmatpush1.msra.mxu0 %v4958
    %4960 = vmatprep.subr.mxu0 0.0
    %v4961 = vand.u32 %v206, 4294901760
    %v4962 = vsub.f32 %v206, %v4961
    %4963 = vmatpush1.msra.mxu0 %v4962
    %4964 = vmatprep.subr.mxu0 0.0
    %v4965 = vand.u32 %v205, 4294901760
    %v4966 = vsub.f32 %v205, %v4965
    %4967 = vmatpush1.msra.mxu0 %v4966
    %4968 = vmatprep.subr.mxu0 0.0
    %v4969 = vand.u32 %v204, 4294901760
    %v4970 = vsub.f32 %v204, %v4969
    %4971 = vmatpush1.msra.mxu0 %v4970
    %4972 = vmatprep.subr.mxu0 0.0
    %v4973 = vand.u32 %v235, 4294901760
    %v4974 = vsub.f32 %v235, %v4973
    %4975 = vmatpush2.msra.mxu0 %v4974
    %4976 = vmatprep.subr.mxu0 0.0
    %v4977 = vand.u32 %v234, 4294901760
    %v4978 = vsub.f32 %v234, %v4977
    %4979 = vmatpush2.msra.mxu0 %v4978
    %4980 = vmatprep.subr.mxu0 0.0
    %v4981 = vand.u32 %v233, 4294901760
    %v4982 = vsub.f32 %v233, %v4981
    %4983 = vmatpush2.msra.mxu0 %v4982
    %4984 = vmatprep.subr.mxu0 0.0
    %v4985 = vand.u32 %v232, 4294901760
    %v4986 = vsub.f32 %v232, %v4985
    %4987 = vmatpush2.msra.mxu0 %v4986
    %4988 = vmatprep.subr.mxu0 0.0
    %v4989 = vand.u32 %v231, 4294901760
    %v4990 = vsub.f32 %v231, %v4989
    %4991 = vmatpush2.msra.mxu0 %v4990
    %4992 = vmatprep.subr.mxu0 0.0
    %v4993 = vand.u32 %v230, 4294901760
    %v4994 = vsub.f32 %v230, %v4993
    %4995 = vmatpush2.msra.mxu0 %v4994
    %4996 = vmatprep.subr.mxu0 0.0
    %v4997 = vand.u32 %v229, 4294901760
    %v4998 = vsub.f32 %v229, %v4997
    %4999 = vmatpush2.msra.mxu0 %v4998
    %5000 = vmatprep.subr.mxu0 0.0
    %v5001 = vand.u32 %v228, 4294901760
    %v5002 = vsub.f32 %v228, %v5001
    %5003 = vmatpush2.msra.mxu0 %v5002
    %5004 = vmatprep.subr.mxu0 0.0
    %v5005 = vand.u32 %v227, 4294901760
    %v5006 = vsub.f32 %v227, %v5005
    %5007 = vmatpush2.msra.mxu0 %v5006
    %5008 = vmatprep.subr.mxu0 0.0
    %v5009 = vand.u32 %v226, 4294901760
    %v5010 = vsub.f32 %v226, %v5009
    %5011 = vmatpush2.msra.mxu0 %v5010
    %5012 = vmatprep.subr.mxu0 0.0
    %v5013 = vand.u32 %v225, 4294901760
    %v5014 = vsub.f32 %v225, %v5013
    %5015 = vmatpush2.msra.mxu0 %v5014
    %5016 = vmatprep.subr.mxu0 0.0
    %v5017 = vand.u32 %v224, 4294901760
    %v5018 = vsub.f32 %v224, %v5017
    %5019 = vmatpush2.msra.mxu0 %v5018
    %5020 = vmatprep.subr.mxu0 0.0
    %v5021 = vand.u32 %v223, 4294901760
    %v5022 = vsub.f32 %v223, %v5021
    %5023 = vmatpush2.msra.mxu0 %v5022
    %5024 = vmatprep.subr.mxu0 0.0
    %v5025 = vand.u32 %v222, 4294901760
    %v5026 = vsub.f32 %v222, %v5025
    %5027 = vmatpush2.msra.mxu0 %v5026
    %5028 = vmatprep.subr.mxu0 0.0
    %v5029 = vand.u32 %v221, 4294901760
    %v5030 = vsub.f32 %v221, %v5029
    %5031 = vmatpush2.msra.mxu0 %v5030
    %5032 = vmatprep.subr.mxu0 0.0
    %v5033 = vand.u32 %v220, 4294901760
    %v5034 = vsub.f32 %v220, %v5033
    %5035 = vmatpush2.msra.mxu0 %v5034
    %v5036 = vand.u32 %v247, 4294901760
    %v5037 = vsub.f32 %v247, %v5036
    %5038 = vmatprep.mubr.f32.mxu0 %v5037
    %v5039 = vand.u32 %v43, 4294901760
    %v5040 = vsub.f32 %v43, %v5039
    %5041 = vmatmul.mubr.f32.gmra.mxu0 %v5040
    %v5042 = vpop.f32.mrf.mxu0
    %v5043 = vadd.f32 %v4905, %v5042
    %v5044 = vpop.f32.mrf.mxu0
    %5045 = vdwg.mxu0
    %5046 = vmatprep.subr.mxu0 0.0
    %v5047 = vand.u32 %v219, 4294901760
    %5048 = vmatpush1.msra.mxu0 %v5047
    %5049 = vmatprep.subr.mxu0 0.0
    %v5050 = vand.u32 %v218, 4294901760
    %5051 = vmatpush1.msra.mxu0 %v5050
    %5052 = vmatprep.subr.mxu0 0.0
    %v5053 = vand.u32 %v217, 4294901760
    %5054 = vmatpush1.msra.mxu0 %v5053
    %5055 = vmatprep.subr.mxu0 0.0
    %v5056 = vand.u32 %v216, 4294901760
    %5057 = vmatpush1.msra.mxu0 %v5056
    %5058 = vmatprep.subr.mxu0 0.0
    %v5059 = vand.u32 %v215, 4294901760
    %5060 = vmatpush1.msra.mxu0 %v5059
    %5061 = vmatprep.subr.mxu0 0.0
    %v5062 = vand.u32 %v214, 4294901760
    %5063 = vmatpush1.msra.mxu0 %v5062
    %5064 = vmatprep.subr.mxu0 0.0
    %v5065 = vand.u32 %v213, 4294901760
    %5066 = vmatpush1.msra.mxu0 %v5065
    %5067 = vmatprep.subr.mxu0 0.0
    %v5068 = vand.u32 %v212, 4294901760
    %5069 = vmatpush1.msra.mxu0 %v5068
    %5070 = vmatprep.subr.mxu0 0.0
    %v5071 = vand.u32 %v211, 4294901760
    %5072 = vmatpush1.msra.mxu0 %v5071
    %5073 = vmatprep.subr.mxu0 0.0
    %v5074 = vand.u32 %v210, 4294901760
    %5075 = vmatpush1.msra.mxu0 %v5074
    %5076 = vmatprep.subr.mxu0 0.0
    %v5077 = vand.u32 %v209, 4294901760
    %5078 = vmatpush1.msra.mxu0 %v5077
    %5079 = vmatprep.subr.mxu0 0.0
    %v5080 = vand.u32 %v208, 4294901760
    %5081 = vmatpush1.msra.mxu0 %v5080
    %5082 = vmatprep.subr.mxu0 0.0
    %v5083 = vand.u32 %v207, 4294901760
    %5084 = vmatpush1.msra.mxu0 %v5083
    %5085 = vmatprep.subr.mxu0 0.0
    %v5086 = vand.u32 %v206, 4294901760
    %5087 = vmatpush1.msra.mxu0 %v5086
    %5088 = vmatprep.subr.mxu0 0.0
    %v5089 = vand.u32 %v205, 4294901760
    %5090 = vmatpush1.msra.mxu0 %v5089
    %5091 = vmatprep.subr.mxu0 0.0
    %v5092 = vand.u32 %v204, 4294901760
    %5093 = vmatpush1.msra.mxu0 %v5092
    %5094 = vmatprep.subr.mxu0 0.0
    %v5095 = vand.u32 %v235, 4294901760
    %5096 = vmatpush2.msra.mxu0 %v5095
    %5097 = vmatprep.subr.mxu0 0.0
    %v5098 = vand.u32 %v234, 4294901760
    %5099 = vmatpush2.msra.mxu0 %v5098
    %5100 = vmatprep.subr.mxu0 0.0
    %v5101 = vand.u32 %v233, 4294901760
    %5102 = vmatpush2.msra.mxu0 %v5101
    %5103 = vmatprep.subr.mxu0 0.0
    %v5104 = vand.u32 %v232, 4294901760
    %5105 = vmatpush2.msra.mxu0 %v5104
    %5106 = vmatprep.subr.mxu0 0.0
    %v5107 = vand.u32 %v231, 4294901760
    %5108 = vmatpush2.msra.mxu0 %v5107
    %5109 = vmatprep.subr.mxu0 0.0
    %v5110 = vand.u32 %v230, 4294901760
    %5111 = vmatpush2.msra.mxu0 %v5110
    %5112 = vmatprep.subr.mxu0 0.0
    %v5113 = vand.u32 %v229, 4294901760
    %5114 = vmatpush2.msra.mxu0 %v5113
    %5115 = vmatprep.subr.mxu0 0.0
    %v5116 = vand.u32 %v228, 4294901760
    %5117 = vmatpush2.msra.mxu0 %v5116
    %5118 = vmatprep.subr.mxu0 0.0
    %v5119 = vand.u32 %v227, 4294901760
    %5120 = vmatpush2.msra.mxu0 %v5119
    %5121 = vmatprep.subr.mxu0 0.0
    %v5122 = vand.u32 %v226, 4294901760
    %5123 = vmatpush2.msra.mxu0 %v5122
    %5124 = vmatprep.subr.mxu0 0.0
    %v5125 = vand.u32 %v225, 4294901760
    %5126 = vmatpush2.msra.mxu0 %v5125
    %5127 = vmatprep.subr.mxu0 0.0
    %v5128 = vand.u32 %v224, 4294901760
    %5129 = vmatpush2.msra.mxu0 %v5128
    %5130 = vmatprep.subr.mxu0 0.0
    %v5131 = vand.u32 %v223, 4294901760
    %5132 = vmatpush2.msra.mxu0 %v5131
    %5133 = vmatprep.subr.mxu0 0.0
    %v5134 = vand.u32 %v222, 4294901760
    %5135 = vmatpush2.msra.mxu0 %v5134
    %5136 = vmatprep.subr.mxu0 0.0
    %v5137 = vand.u32 %v221, 4294901760
    %5138 = vmatpush2.msra.mxu0 %v5137
    %5139 = vmatprep.subr.mxu0 0.0
    %v5140 = vand.u32 %v220, 4294901760
    %5141 = vmatpush2.msra.mxu0 %v5140
    %v5142 = vand.u32 %v247, 4294901760
    %v5143 = vsub.f32 %v247, %v5142
    %v5144 = vand.u32 %v5143, 4294901760
    %5145 = vmatprep.mubr.f32.mxu0 %v5144
    %v5146 = vand.u32 %v43, 4294901760
    %v5147 = vsub.f32 %v43, %v5146
    %v5148 = vand.u32 %v5147, 4294901760
    %5149 = vmatmul.mubr.f32.gmra.mxu0 %v5148
    %v5150 = vpop.f32.mrf.mxu0
    %v5151 = vadd.f32 %v5043, %v5150
    %v5152 = vpop.f32.mrf.mxu0
    %5153 = vdwg.mxu0
    %5154 = vmatprep.subr.mxu0 0.0
    %v5155 = vand.u32 %v219, 4294901760
    %v5156 = vsub.f32 %v219, %v5155
    %v5157 = vand.u32 %v5156, 4294901760
    %5158 = vmatpush1.msra.mxu0 %v5157
    %5159 = vmatprep.subr.mxu0 0.0
    %v5160 = vand.u32 %v218, 4294901760
    %v5161 = vsub.f32 %v218, %v5160
    %v5162 = vand.u32 %v5161, 4294901760
    %5163 = vmatpush1.msra.mxu0 %v5162
    %5164 = vmatprep.subr.mxu0 0.0
    %v5165 = vand.u32 %v217, 4294901760
    %v5166 = vsub.f32 %v217, %v5165
    %v5167 = vand.u32 %v5166, 4294901760
    %5168 = vmatpush1.msra.mxu0 %v5167
    %5169 = vmatprep.subr.mxu0 0.0
    %v5170 = vand.u32 %v216, 4294901760
    %v5171 = vsub.f32 %v216, %v5170
    %v5172 = vand.u32 %v5171, 4294901760
    %5173 = vmatpush1.msra.mxu0 %v5172
    %5174 = vmatprep.subr.mxu0 0.0
    %v5175 = vand.u32 %v215, 4294901760
    %v5176 = vsub.f32 %v215, %v5175
    %v5177 = vand.u32 %v5176, 4294901760
    %5178 = vmatpush1.msra.mxu0 %v5177
    %5179 = vmatprep.subr.mxu0 0.0
    %v5180 = vand.u32 %v214, 4294901760
    %v5181 = vsub.f32 %v214, %v5180
    %v5182 = vand.u32 %v5181, 4294901760
    %5183 = vmatpush1.msra.mxu0 %v5182
    %5184 = vmatprep.subr.mxu0 0.0
    %v5185 = vand.u32 %v213, 4294901760
    %v5186 = vsub.f32 %v213, %v5185
    %v5187 = vand.u32 %v5186, 4294901760
    %5188 = vmatpush1.msra.mxu0 %v5187
    %5189 = vmatprep.subr.mxu0 0.0
    %v5190 = vand.u32 %v212, 4294901760
    %v5191 = vsub.f32 %v212, %v5190
    %v5192 = vand.u32 %v5191, 4294901760
    %5193 = vmatpush1.msra.mxu0 %v5192
    %5194 = vmatprep.subr.mxu0 0.0
    %v5195 = vand.u32 %v211, 4294901760
    %v5196 = vsub.f32 %v211, %v5195
    %v5197 = vand.u32 %v5196, 4294901760
    %5198 = vmatpush1.msra.mxu0 %v5197
    %5199 = vmatprep.subr.mxu0 0.0
    %v5200 = vand.u32 %v210, 4294901760
    %v5201 = vsub.f32 %v210, %v5200
    %v5202 = vand.u32 %v5201, 4294901760
    %5203 = vmatpush1.msra.mxu0 %v5202
    %5204 = vmatprep.subr.mxu0 0.0
    %v5205 = vand.u32 %v209, 4294901760
    %v5206 = vsub.f32 %v209, %v5205
    %v5207 = vand.u32 %v5206, 4294901760
    %5208 = vmatpush1.msra.mxu0 %v5207
    %5209 = vmatprep.subr.mxu0 0.0
    %v5210 = vand.u32 %v208, 4294901760
    %v5211 = vsub.f32 %v208, %v5210
    %v5212 = vand.u32 %v5211, 4294901760
    %5213 = vmatpush1.msra.mxu0 %v5212
    %5214 = vmatprep.subr.mxu0 0.0
    %v5215 = vand.u32 %v207, 4294901760
    %v5216 = vsub.f32 %v207, %v5215
    %v5217 = vand.u32 %v5216, 4294901760
    %5218 = vmatpush1.msra.mxu0 %v5217
    %5219 = vmatprep.subr.mxu0 0.0
    %v5220 = vand.u32 %v206, 4294901760
    %v5221 = vsub.f32 %v206, %v5220
    %v5222 = vand.u32 %v5221, 4294901760
    %5223 = vmatpush1.msra.mxu0 %v5222
    %5224 = vmatprep.subr.mxu0 0.0
    %v5225 = vand.u32 %v205, 4294901760
    %v5226 = vsub.f32 %v205, %v5225
    %v5227 = vand.u32 %v5226, 4294901760
    %5228 = vmatpush1.msra.mxu0 %v5227
    %5229 = vmatprep.subr.mxu0 0.0
    %v5230 = vand.u32 %v204, 4294901760
    %v5231 = vsub.f32 %v204, %v5230
    %v5232 = vand.u32 %v5231, 4294901760
    %5233 = vmatpush1.msra.mxu0 %v5232
    %5234 = vmatprep.subr.mxu0 0.0
    %v5235 = vand.u32 %v235, 4294901760
    %v5236 = vsub.f32 %v235, %v5235
    %v5237 = vand.u32 %v5236, 4294901760
    %5238 = vmatpush2.msra.mxu0 %v5237
    %5239 = vmatprep.subr.mxu0 0.0
    %v5240 = vand.u32 %v234, 4294901760
    %v5241 = vsub.f32 %v234, %v5240
    %v5242 = vand.u32 %v5241, 4294901760
    %5243 = vmatpush2.msra.mxu0 %v5242
    %5244 = vmatprep.subr.mxu0 0.0
    %v5245 = vand.u32 %v233, 4294901760
    %v5246 = vsub.f32 %v233, %v5245
    %v5247 = vand.u32 %v5246, 4294901760
    %5248 = vmatpush2.msra.mxu0 %v5247
    %5249 = vmatprep.subr.mxu0 0.0
    %v5250 = vand.u32 %v232, 4294901760
    %v5251 = vsub.f32 %v232, %v5250
    %v5252 = vand.u32 %v5251, 4294901760
    %5253 = vmatpush2.msra.mxu0 %v5252
    %5254 = vmatprep.subr.mxu0 0.0
    %v5255 = vand.u32 %v231, 4294901760
    %v5256 = vsub.f32 %v231, %v5255
    %v5257 = vand.u32 %v5256, 4294901760
    %5258 = vmatpush2.msra.mxu0 %v5257
    %5259 = vmatprep.subr.mxu0 0.0
    %v5260 = vand.u32 %v230, 4294901760
    %v5261 = vsub.f32 %v230, %v5260
    %v5262 = vand.u32 %v5261, 4294901760
    %5263 = vmatpush2.msra.mxu0 %v5262
    %5264 = vmatprep.subr.mxu0 0.0
    %v5265 = vand.u32 %v229, 4294901760
    %v5266 = vsub.f32 %v229, %v5265
    %v5267 = vand.u32 %v5266, 4294901760
    %5268 = vmatpush2.msra.mxu0 %v5267
    %5269 = vmatprep.subr.mxu0 0.0
    %v5270 = vand.u32 %v228, 4294901760
    %v5271 = vsub.f32 %v228, %v5270
    %v5272 = vand.u32 %v5271, 4294901760
    %5273 = vmatpush2.msra.mxu0 %v5272
    %5274 = vmatprep.subr.mxu0 0.0
    %v5275 = vand.u32 %v227, 4294901760
    %v5276 = vsub.f32 %v227, %v5275
    %v5277 = vand.u32 %v5276, 4294901760
    %5278 = vmatpush2.msra.mxu0 %v5277
    %5279 = vmatprep.subr.mxu0 0.0
    %v5280 = vand.u32 %v226, 4294901760
    %v5281 = vsub.f32 %v226, %v5280
    %v5282 = vand.u32 %v5281, 4294901760
    %5283 = vmatpush2.msra.mxu0 %v5282
    %5284 = vmatprep.subr.mxu0 0.0
    %v5285 = vand.u32 %v225, 4294901760
    %v5286 = vsub.f32 %v225, %v5285
    %v5287 = vand.u32 %v5286, 4294901760
    %5288 = vmatpush2.msra.mxu0 %v5287
    %5289 = vmatprep.subr.mxu0 0.0
    %v5290 = vand.u32 %v224, 4294901760
    %v5291 = vsub.f32 %v224, %v5290
    %v5292 = vand.u32 %v5291, 4294901760
    %5293 = vmatpush2.msra.mxu0 %v5292
    %5294 = vmatprep.subr.mxu0 0.0
    %v5295 = vand.u32 %v223, 4294901760
    %v5296 = vsub.f32 %v223, %v5295
    %v5297 = vand.u32 %v5296, 4294901760
    %5298 = vmatpush2.msra.mxu0 %v5297
    %5299 = vmatprep.subr.mxu0 0.0
    %v5300 = vand.u32 %v222, 4294901760
    %v5301 = vsub.f32 %v222, %v5300
    %v5302 = vand.u32 %v5301, 4294901760
    %5303 = vmatpush2.msra.mxu0 %v5302
    %5304 = vmatprep.subr.mxu0 0.0
    %v5305 = vand.u32 %v221, 4294901760
    %v5306 = vsub.f32 %v221, %v5305
    %v5307 = vand.u32 %v5306, 4294901760
    %5308 = vmatpush2.msra.mxu0 %v5307
    %5309 = vmatprep.subr.mxu0 0.0
    %v5310 = vand.u32 %v220, 4294901760
    %v5311 = vsub.f32 %v220, %v5310
    %v5312 = vand.u32 %v5311, 4294901760
    %5313 = vmatpush2.msra.mxu0 %v5312
    %v5314 = vand.u32 %v247, 4294901760
    %5315 = vmatprep.mubr.f32.mxu0 %v5314
    %v5316 = vand.u32 %v43, 4294901760
    %5317 = vmatmul.mubr.f32.gmra.mxu0 %v5316
    %v5318 = vpop.f32.mrf.mxu0
    %v5319 = vadd.f32 %v5151, %v5318
    %v5320 = vpop.f32.mrf.mxu0
    %5321 = vdwg.mxu0
    %5322 = vmatprep.subr.mxu0 0.0
    %v5323 = vand.u32 %v219, 4294901760
    %5324 = vmatpush1.msra.mxu0 %v5323
    %5325 = vmatprep.subr.mxu0 0.0
    %v5326 = vand.u32 %v218, 4294901760
    %5327 = vmatpush1.msra.mxu0 %v5326
    %5328 = vmatprep.subr.mxu0 0.0
    %v5329 = vand.u32 %v217, 4294901760
    %5330 = vmatpush1.msra.mxu0 %v5329
    %5331 = vmatprep.subr.mxu0 0.0
    %v5332 = vand.u32 %v216, 4294901760
    %5333 = vmatpush1.msra.mxu0 %v5332
    %5334 = vmatprep.subr.mxu0 0.0
    %v5335 = vand.u32 %v215, 4294901760
    %5336 = vmatpush1.msra.mxu0 %v5335
    %5337 = vmatprep.subr.mxu0 0.0
    %v5338 = vand.u32 %v214, 4294901760
    %5339 = vmatpush1.msra.mxu0 %v5338
    %5340 = vmatprep.subr.mxu0 0.0
    %v5341 = vand.u32 %v213, 4294901760
    %5342 = vmatpush1.msra.mxu0 %v5341
    %5343 = vmatprep.subr.mxu0 0.0
    %v5344 = vand.u32 %v212, 4294901760
    %5345 = vmatpush1.msra.mxu0 %v5344
    %5346 = vmatprep.subr.mxu0 0.0
    %v5347 = vand.u32 %v211, 4294901760
    %5348 = vmatpush1.msra.mxu0 %v5347
    %5349 = vmatprep.subr.mxu0 0.0
    %v5350 = vand.u32 %v210, 4294901760
    %5351 = vmatpush1.msra.mxu0 %v5350
    %5352 = vmatprep.subr.mxu0 0.0
    %v5353 = vand.u32 %v209, 4294901760
    %5354 = vmatpush1.msra.mxu0 %v5353
    %5355 = vmatprep.subr.mxu0 0.0
    %v5356 = vand.u32 %v208, 4294901760
    %5357 = vmatpush1.msra.mxu0 %v5356
    %5358 = vmatprep.subr.mxu0 0.0
    %v5359 = vand.u32 %v207, 4294901760
    %5360 = vmatpush1.msra.mxu0 %v5359
    %5361 = vmatprep.subr.mxu0 0.0
    %v5362 = vand.u32 %v206, 4294901760
    %5363 = vmatpush1.msra.mxu0 %v5362
    %5364 = vmatprep.subr.mxu0 0.0
    %v5365 = vand.u32 %v205, 4294901760
    %5366 = vmatpush1.msra.mxu0 %v5365
    %5367 = vmatprep.subr.mxu0 0.0
    %v5368 = vand.u32 %v204, 4294901760
    %5369 = vmatpush1.msra.mxu0 %v5368
    %5370 = vmatprep.subr.mxu0 0.0
    %v5371 = vand.u32 %v235, 4294901760
    %5372 = vmatpush2.msra.mxu0 %v5371
    %5373 = vmatprep.subr.mxu0 0.0
    %v5374 = vand.u32 %v234, 4294901760
    %5375 = vmatpush2.msra.mxu0 %v5374
    %5376 = vmatprep.subr.mxu0 0.0
    %v5377 = vand.u32 %v233, 4294901760
    %5378 = vmatpush2.msra.mxu0 %v5377
    %5379 = vmatprep.subr.mxu0 0.0
    %v5380 = vand.u32 %v232, 4294901760
    %5381 = vmatpush2.msra.mxu0 %v5380
    %5382 = vmatprep.subr.mxu0 0.0
    %v5383 = vand.u32 %v231, 4294901760
    %5384 = vmatpush2.msra.mxu0 %v5383
    %5385 = vmatprep.subr.mxu0 0.0
    %v5386 = vand.u32 %v230, 4294901760
    %5387 = vmatpush2.msra.mxu0 %v5386
    %5388 = vmatprep.subr.mxu0 0.0
    %v5389 = vand.u32 %v229, 4294901760
    %5390 = vmatpush2.msra.mxu0 %v5389
    %5391 = vmatprep.subr.mxu0 0.0
    %v5392 = vand.u32 %v228, 4294901760
    %5393 = vmatpush2.msra.mxu0 %v5392
    %5394 = vmatprep.subr.mxu0 0.0
    %v5395 = vand.u32 %v227, 4294901760
    %5396 = vmatpush2.msra.mxu0 %v5395
    %5397 = vmatprep.subr.mxu0 0.0
    %v5398 = vand.u32 %v226, 4294901760
    %5399 = vmatpush2.msra.mxu0 %v5398
    %5400 = vmatprep.subr.mxu0 0.0
    %v5401 = vand.u32 %v225, 4294901760
    %5402 = vmatpush2.msra.mxu0 %v5401
    %5403 = vmatprep.subr.mxu0 0.0
    %v5404 = vand.u32 %v224, 4294901760
    %5405 = vmatpush2.msra.mxu0 %v5404
    %5406 = vmatprep.subr.mxu0 0.0
    %v5407 = vand.u32 %v223, 4294901760
    %5408 = vmatpush2.msra.mxu0 %v5407
    %5409 = vmatprep.subr.mxu0 0.0
    %v5410 = vand.u32 %v222, 4294901760
    %5411 = vmatpush2.msra.mxu0 %v5410
    %5412 = vmatprep.subr.mxu0 0.0
    %v5413 = vand.u32 %v221, 4294901760
    %5414 = vmatpush2.msra.mxu0 %v5413
    %5415 = vmatprep.subr.mxu0 0.0
    %v5416 = vand.u32 %v220, 4294901760
    %5417 = vmatpush2.msra.mxu0 %v5416
    %v5418 = vand.u32 %v247, 4294901760
    %5419 = vmatprep.mubr.f32.mxu0 %v5418
    %v5420 = vand.u32 %v43, 4294901760
    %5421 = vmatmul.mubr.f32.gmra.mxu0 %v5420
    %v5422 = vpop.f32.mrf.mxu0
    %v5423 = vadd.f32 %v5319, %v5422
    %v5424 = vpop.f32.mrf.mxu0
    %5425 = vdwg.mxu0
    %5426 = vst [vmem:[#allocation7] sm:$0xf] %v5423
    // Predicated region
    $region18: #{tpu_custom_call.1} parent=1 // pred_check
      _
    $region19: #{tpu_custom_call.1} parent=1 // pred_check_branch
      %5428 = sbr.rel (0) target = $region21
    $region20: #{tpu_custom_call.1} parent=1 // pred_region
      %s5430 = ssub.s32 64, 64
      %5431 = vsyncadd [#allocation4], %s5430
      %s5433 = sshll.u32 [#allocation7], 4
      %s5434 = int_to_ptr.vmem [resolvable:$true] %s5433
      %5436 = dma.vmem_to_hbm [thread:$0]  %s5434, 64, %s2, [#allocation4]
    $region21: #{tpu_custom_call.1} parent=1 // pred_fallthru
      _
    // Predicated region
    $region22: #{tpu_custom_call.1} parent=1 // pred_check
      _
    $region23: #{tpu_custom_call.1} parent=1 // pred_check_branch
      %5438 = sbr.rel (0) target = $region25
    $region24: #{tpu_custom_call.1} parent=1 // pred_region
      %5439 = dma.done [#allocation4], 64
    $region25: #{tpu_custom_call.1} parent=1 // pred_fallthru
      _
    %5440 = vsyncpa [#allocation3], 1
    %5441 = vsyncpa [#allocation6], 1
    %5442 = vsyncpa [#allocation4], 1

</llo_original>
